<compile_context>
chip_gen: v5e
topology: v5e:2x2
jax: 0.10.0
libtpu: 0.0.40
codegen_flags: <defaults>
</compile_context>

<pallas_src>
import functools
import math

import jax
import jax.numpy as jnp
import numpy as np
from jax import lax
from jax.experimental import pallas as pl
from jax.experimental.pallas import tpu as pltpu

LANE = 128       # lane width (last dim)
PACK = 16        # bf16 sublane pack: 2 rows/sublane * 8 sublanes
BN_EPS = 1e-5


def _round_up(n, m):
    return ((n + m - 1) // m) * m


# ----------------------------- kernel helpers ------------------------------

def _gelu(x, approximate):
    if approximate:
        # tanh approximation -> tanh runs on the EUP slot (frees VALU).
        c = math.sqrt(2.0 / math.pi)
        return 0.5 * x * (1.0 + jnp.tanh(c * (x + 0.044715 * x * x * x)))
    return 0.5 * x * (1.0 + lax.erf(x * (1.0 / math.sqrt(2.0))))


def _batchnorm_batch_stats(h, gamma, beta, n_valid, eps=BN_EPS):
    """Training-mode BatchNorm1d (biased variance) over the first n_valid rows."""
    bt = h.shape[0]
    if n_valid == bt:
        mean = jnp.mean(h, axis=0, keepdims=True)
        var = jnp.mean(jnp.square(h - mean), axis=0, keepdims=True)
    else:  # batch was padded to a sublane-pack multiple -> mask the padded rows
        mask = (lax.broadcasted_iota(jnp.int32, (bt, 1), 0) < n_valid).astype(h.dtype)
        inv_n = 1.0 / float(n_valid)
        mean = jnp.sum(h * mask, axis=0, keepdims=True) * inv_n
        diff = (h - mean) * mask
        var = jnp.sum(diff * diff, axis=0, keepdims=True) * inv_n
    return (h - mean) * lax.rsqrt(var + eps) * gamma + beta


def _mxu(a, w):
    """MXU matmul: bf16 operands, f32 accumulation."""
    return jnp.dot(a.astype(jnp.bfloat16), w, preferred_element_type=jnp.float32)


# ------------------------------- the kernel --------------------------------

def resnet_mlp_kernel(
    x_ref,                                   # (bt, Din_p)  bf16
    w1_ref, b1_ref, s1_ref, t1_ref,          # fc1 (+ optional in-kernel bn1)
    w2_ref, b2_ref, s2_ref, t2_ref,          # fc2 (+ optional in-kernel bn2)
    rw1_ref, rb1_ref, rs1_ref, rt1_ref,      # residual first linears  (nb, R_p, R_p)
    rw2_ref, rb2_ref, rs2_ref, rt2_ref,      # residual second linears
    wout_ref, bout_ref,                      # fc_out
    out_ref,                                 # (bt, O_p) f32
    *,
    bn_in_kernel: bool,
    n_valid: int,
    gelu_approx: bool,
    ew_dtype,
    unroll_blocks: bool,
):
    ew = ew_dtype

    def bn(h, s, t):
        # Eval-mode BN is folded into W/b by the wrapper; only training-mode
        # (full-batch statistics) BN runs in-kernel.
        if not bn_in_kernel:
            return h
        return _batchnorm_batch_stats(h, s, t, n_valid)

    x = x_ref[...]                           # bf16

    h = (_mxu(x, w1_ref[...]) + b1_ref[...]).astype(ew)
    h = _gelu(bn(h, s1_ref[...], t1_ref[...]), gelu_approx)

    h = (_mxu(h, w2_ref[...]) + b2_ref[...]).astype(ew)
    h = _gelu(bn(h, s2_ref[...], t2_ref[...]), gelu_approx)

    num_blocks = rw1_ref.shape[0]

    def block_body(i, h):
        res = h
        h = (_mxu(h, rw1_ref[i]) + rb1_ref[i]).astype(ew)
        h = _gelu(bn(h, rs1_ref[i], rt1_ref[i]), gelu_approx)
        h = (_mxu(h, rw2_ref[i]) + rb2_ref[i]).astype(ew)
        h = bn(h, rs2_ref[i], rt2_ref[i])
        h = _gelu((h + res).astype(ew), gelu_approx)
        return h

    if unroll_blocks:
        for i in range(num_blocks):          # static unroll (small block counts)
            h = block_body(i, h)
    else:
        # Compact body + dynamic ref indexing bounds live ranges for large nb.
        h = lax.fori_loop(0, num_blocks, block_body, h)

    out = _mxu(h, wout_ref[...]) + bout_ref[...]
    # TODO(synk): on v5e, a bf16 output store would halve the padded writeback
    # if downstream tolerates it; kept f32 for exact module semantics.
    out_ref[...] = out.astype(out_ref.dtype)


# ------------------------------ python wrapper ------------------------------

def _pad_to(a, shape, fill=0.0):
    pads = [(0, s - d) for d, s in zip(a.shape, shape)]
    if all(p == (0, 0) for p in pads):
        return a
    return jnp.pad(a, pads, constant_values=fill)


def _prepare_kernel_params(params, *, batch_norm, bn_batch_stats, eps=BN_EPS):
    din, h1 = params["w1"].shape
    r = params["w2"].shape[1]
    odim = params["wout"].shape[1]
    nb = params["rw1"].shape[0]
    din_p, h1_p, r_p, o_p = (_round_up(d, LANE) for d in (din, h1, r, odim))

    fold = batch_norm and not bn_batch_stats   # eval-mode BN -> fold into W, b

    def prep(w, b, gamma, beta, mean, var):
        if fold:
            s = gamma * lax.rsqrt(var + eps)
            t = beta - mean * s
            w = w * s                          # per-output-column scale, pre-bf16 cast
            b = b * s + t
            s, t = jnp.ones_like(gamma), jnp.zeros_like(beta)   # unused in kernel
        elif batch_norm:
            s, t = gamma, beta                 # in-kernel batch statistics
        else:
            s, t = jnp.ones_like(gamma), jnp.zeros_like(beta)   # unused placeholders
        return w, b, s, t

    w1, b1, s1, t1 = prep(params["w1"], params["b1"], params["g1"], params["be1"],
                          params["rm1"], params["rv1"])
    w2, b2, s2, t2 = prep(params["w2"], params["b2"], params["g2"], params["be2"],
                          params["rm2"], params["rv2"])
    rw1, rb1, rs1, rt1 = prep(params["rw1"], params["rb1"], params["rg1"],
                              params["rbe1"], params["rrm1"], params["rrv1"])
    rw2, rb2, rs2, rt2 = prep(params["rw2"], params["rb2"], params["rg2"],
                              params["rbe2"], params["rrm2"], params["rrv2"])

    kp = dict(
        w1=_pad_to(w1, (din_p, h1_p)).astype(jnp.bfloat16),
        b1=_pad_to(b1, (1, h1_p)),
        s1=_pad_to(s1, (1, h1_p), 1.0),
        t1=_pad_to(t1, (1, h1_p)),
        w2=_pad_to(w2, (h1_p, r_p)).astype(jnp.bfloat16),
        b2=_pad_to(b2, (1, r_p)),
        s2=_pad_to(s2, (1, r_p), 1.0),
        t2=_pad_to(t2, (1, r_p)),
        rw1=_pad_to(rw1, (nb, r_p, r_p)).astype(jnp.bfloat16),
        rb1=_pad_to(rb1, (nb, 1, r_p)),
        rs1=_pad_to(rs1, (nb, 1, r_p), 1.0),
        rt1=_pad_to(rt1, (nb, 1, r_p)),
        rw2=_pad_to(rw2, (nb, r_p, r_p)).astype(jnp.bfloat16),
        rb2=_pad_to(rb2, (nb, 1, r_p)),
        rs2=_pad_to(rs2, (nb, 1, r_p), 1.0),
        rt2=_pad_to(rt2, (nb, 1, r_p)),
        wout=_pad_to(params["wout"], (r_p, o_p)).astype(jnp.bfloat16),
        bout=_pad_to(params["bout"], (1, o_p)),
    )
    dims = dict(din=din, din_p=din_p, h1_p=h1_p, r_p=r_p, odim=odim, o_p=o_p, nb=nb)
    return kp, dims


def _supports_bf16_elementwise():
    """bf16 VALU/EUP exists on v6e/v7x; keep f32 on v5e and older."""
    try:
        kind = jax.devices()[0].device_kind.lower()
    except Exception:
        return False
    return not any(g in kind for g in ("v2", "v3", "v4", "v5"))


def _vmem_capacity_bytes():
    try:
        return int(pltpu.get_tpu_info().vmem_capacity_bytes)
    except Exception:
        return 64 * 2**20   # conservative (v7x-sized) fallback


def _resident_spec(shape, single_buffer):
    """Weight BlockSpec: constant index_map, optionally pinned to one buffer."""
    nd = len(shape)
    idx = lambda i, nd=nd: (0,) * nd
    if single_buffer and hasattr(pl, "Buffered"):
        return pl.BlockSpec(shape, idx, pipeline_mode=pl.Buffered(1))
    return pl.BlockSpec(shape, idx)


def resnet_forward(states_nnet, params, *, batch_norm=True, bn_batch_stats=True,
                   batch_tile=512, gelu_approx=True, elementwise_bf16=None):
    """Mirror of ResnetModel.forward.  states_nnet: (B, state_dim) integer.

    bn_batch_stats=True  -> training-mode BN (full-batch statistics, like the
                            nn.Module in train mode); the whole batch is one tile.
    bn_batch_stats=False -> eval-mode BN (running stats folded into W/b);
                            batch is tiled across a "parallel" grid.
    """
    B, state_dim = states_nnet.shape
    bn_in_kernel = batch_norm and bn_batch_stats
    kp, dims = _prepare_kernel_params(params, batch_norm=batch_norm,
                                      bn_batch_stats=bn_batch_stats)

    # Embedding gather + flatten (glue): gather directly in bf16 (single cast),
    # pad once in bf16.
    # TODO(synk): fuse the gather in-kernel (scalar-prefetch row gather, or a
    # one-hot matmul with emb folded into fc1) to avoid the HBM round trip of
    # the (B, Din) activations — biggest win on v5e.
    emb_bf16 = params["emb"].astype(jnp.bfloat16)
    x = jnp.take(emb_bf16, states_nnet.astype(jnp.int32), axis=0)
    x = x.reshape(B, state_dim * params["emb"].shape[1])

    if bn_in_kernel:
        # Full-batch statistics need the whole batch in one tile.
        # TODO(synk): two-pass statistics (tile-reduce mean/var, then apply)
        # to restore batch tiling / megacore sharding for large B.
        bt = _round_up(B, PACK)
    else:
        bt = _round_up(min(batch_tile, _round_up(B, PACK)), PACK)
    Bp = _round_up(B, bt)
    nbt = Bp // bt

    x = jnp.pad(x, ((0, Bp - B), (0, dims["din_p"] - dims["din"])))

    if elementwise_bf16 is None:
        elementwise_bf16 = _supports_bf16_elementwise()
    ew_dtype = jnp.bfloat16 if (elementwise_bf16 and not bn_in_kernel) else jnp.float32

    args = (
        x,
        kp["w1"], kp["b1"], kp["s1"], kp["t1"],
        kp["w2"], kp["b2"], kp["s2"], kp["t2"],
        kp["rw1"], kp["rb1"], kp["rs1"], kp["rt1"],
        kp["rw2"], kp["rb2"], kp["rs2"], kp["rt2"],
        kp["wout"], kp["bout"],
    )

    # VMEM budget: single-buffered resident weights + double-buffered I/O tiles
    # + activation temporaries, with headroom below physical capacity.
    weight_bytes = sum(int(np.prod(a.shape)) * a.dtype.itemsize for a in args[1:])
    io_bytes = 2 * (bt * dims["din_p"] * 2 + bt * dims["o_p"] * 4)
    act_bytes = 8 * bt * dims["r_p"] * 4
    needed = weight_bytes + io_bytes + act_bytes
    vmem_cap = _vmem_capacity_bytes()
    vmem_limit = int(min(int(vmem_cap * 0.8), max(16 * 2**20, 2 * needed)))

    kernel = functools.partial(
        resnet_mlp_kernel,
        bn_in_kernel=bn_in_kernel,
        n_valid=B if nbt == 1 else bt,
        gelu_approx=gelu_approx,
        ew_dtype=ew_dtype,
        unroll_blocks=dims["nb"] <= 4,
    )

    def run(single_buffer_weights):
        in_specs = [pl.BlockSpec((bt, dims["din_p"]), lambda i: (i, 0))]
        in_specs += [_resident_spec(a.shape, single_buffer_weights) for a in args[1:]]
        out_spec = pl.BlockSpec((bt, dims["o_p"]), lambda i: (i, 0))
        return pl.pallas_call(
            kernel,
            out_shape=jax.ShapeDtypeStruct((Bp, dims["o_p"]), jnp.float32),
            grid_spec=pltpu.PrefetchScalarGridSpec(
                num_scalar_prefetch=0,
                grid=(nbt,),
                in_specs=in_specs,
                out_specs=out_spec,
            ),
            compiler_params=pltpu.CompilerParams(
                dimension_semantics=("parallel",),   # batch tiles independent
                vmem_limit_bytes=vmem_limit,
            ),
        )(*args)

    try:
        out = run(True)              # single-buffered resident weights
    except Exception:
        out = run(False)             # fall back to default buffering
    return out[:B, :dims["odim"]]


# --------------------------- deterministic params ---------------------------

def init_params(key, state_dim, one_hot_depth, emb_dim, h1_dim, resnet_dim,
                num_resnet_blocks, out_dim):
    ks = iter(jax.random.split(key, 8 + 4 * num_resnet_blocks))

    def linear(k, fan_in, fan_out):
        kw, kb = jax.random.split(k)
        bound = 1.0 / math.sqrt(fan_in)
        w = jax.random.uniform(kw, (fan_in, fan_out), jnp.float32, -bound, bound)
        b = jax.random.uniform(kb, (1, fan_out), jnp.float32, -bound, bound)
        return w, b

    p = {}
    p["emb"] = jax.random.normal(next(ks), (one_hot_depth, emb_dim), jnp.float32)

    p["w1"], p["b1"] = linear(next(ks), state_dim * emb_dim, h1_dim)
    p["g1"], p["be1"] = jnp.ones((1, h1_dim), jnp.float32), jnp.zeros((1, h1_dim), jnp.float32)
    p["rm1"], p["rv1"] = jnp.zeros((1, h1_dim), jnp.float32), jnp.ones((1, h1_dim), jnp.float32)

    p["w2"], p["b2"] = linear(next(ks), h1_dim, resnet_dim)
    p["g2"], p["be2"] = jnp.ones((1, resnet_dim), jnp.float32), jnp.zeros((1, resnet_dim), jnp.float32)
    p["rm2"], p["rv2"] = jnp.zeros((1, resnet_dim), jnp.float32), jnp.ones((1, resnet_dim), jnp.float32)

    rw1, rb1, rw2, rb2 = [], [], [], []
    for _ in range(num_resnet_blocks):
        w_a, b_a = linear(next(ks), resnet_dim, resnet_dim)
        w_b, b_b = linear(next(ks), resnet_dim, resnet_dim)
        rw1.append(w_a); rb1.append(b_a); rw2.append(w_b); rb2.append(b_b)
    p["rw1"], p["rb1"] = jnp.stack(rw1), jnp.stack(rb1)
    p["rw2"], p["rb2"] = jnp.stack(rw2), jnp.stack(rb2)
    shp = (num_resnet_blocks, 1, resnet_dim)
    p["rg1"], p["rbe1"] = jnp.ones(shp, jnp.float32), jnp.zeros(shp, jnp.float32)
    p["rrm1"], p["rrv1"] = jnp.zeros(shp, jnp.float32), jnp.ones(shp, jnp.float32)
    p["rg2"], p["rbe2"] = jnp.ones(shp, jnp.float32), jnp.zeros(shp, jnp.float32)
    p["rrm2"], p["rrv2"] = jnp.zeros(shp, jnp.float32), jnp.ones(shp, jnp.float32)

    p["wout"], p["bout"] = linear(next(ks), resnet_dim, out_dim)
    return p


# ------------------------------ pure-JAX reference ---------------------------

def reference_forward(states_nnet, params, *, batch_norm=True, bn_batch_stats=True,
                      eps=BN_EPS):
    B = states_nnet.shape[0]
    x = jnp.take(params["emb"], states_nnet.astype(jnp.int32), axis=0).reshape(B, -1)

    def dot(a, b):
        return jnp.dot(a, b, precision=lax.Precision.HIGHEST)

    def bn(h, g, be, rm, rv):
        if not batch_norm:
            return h
        if bn_batch_stats:
            mean = jnp.mean(h, axis=0, keepdims=True)
            var = jnp.mean(jnp.square(h - mean), axis=0, keepdims=True)
        else:
            mean, var = rm, rv
        return (h - mean) * lax.rsqrt(var + eps) * g + be

    gelu = lambda v: jax.nn.gelu(v, approximate=False)   # exact erf (F.gelu default)

    h = dot(x, params["w1"]) + params["b1"]
    h = gelu(bn(h, params["g1"], params["be1"], params["rm1"], params["rv1"]))
    h = dot(h, params["w2"]) + params["b2"]
    h = gelu(bn(h, params["g2"], params["be2"], params["rm2"], params["rv2"]))
    for i in range(params["rw1"].shape[0]):
        res = h
        h = dot(h, params["rw1"][i]) + params["rb1"][i]
        h = gelu(bn(h, params["rg1"][i], params["rbe1"][i],
                    params["rrm1"][i], params["rrv1"][i]))
        h = dot(h, params["rw2"][i]) + params["rb2"][i]
        h = bn(h, params["rg2"][i], params["rbe2"][i],
               params["rrm2"][i], params["rrv2"][i])
        h = gelu(h + res)
    return dot(h, params["wout"]) + params["bout"]


# ---------------------------------- main ------------------------------------

if __name__ == "__main__":
    state_dim = 8
    one_hot_depth = 6
    emb_dim = 16          # state_dim * emb_dim = 128 (lane aligned)
    h1_dim = 64           # zero-padded to 128 lanes inside the wrapper
    resnet_dim = 128
    num_resnet_blocks = 2
    out_dim = 1           # padded to a 128-lane output tile, then sliced
    batch_norm = True

    key = jax.random.PRNGKey(0)
    k_params, k_states1, k_states2 = jax.random.split(key, 3)

    params = init_params(k_params, state_dim, one_hot_depth, emb_dim, h1_dim,
                         resnet_dim, num_resnet_blocks, out_dim)

    # Tolerances: bf16 MXU operands + tanh-GELU (and, on v6e/v7x, bf16
    # elementwise) in the kernel vs an exact-erf f32 reference.  Intentional
    # approximations; gelu_approx=False / elementwise_bf16=False restore parity.
    RTOL1 = ATOL1 = 5e-2

    # --- Test 1: training-mode BN (full-batch statistics), single batch tile,
    #     f32 elementwise (stats accuracy).
    B1 = 8
    states1 = jax.random.randint(k_states1, (B1, state_dim), 0, one_hot_depth,
                                 dtype=jnp.int32)
    out1 = jax.block_until_ready(
        resnet_forward(states1, params, batch_norm=batch_norm, bn_batch_stats=True))
    ref1 = reference_forward(states1, params, batch_norm=batch_norm, bn_batch_stats=True)
    np.testing.assert_allclose(np.asarray(out1), np.asarray(ref1), rtol=RTOL1, atol=ATOL1)

    # --- Test 2: eval-mode BN folded into weights, multi-tile "parallel" batch
    #     grid (bt=512), bf16 elementwise where supported.
    RTOL2 = ATOL2 = 6e-2
    B2 = 1200
    states2 = jax.random.randint(k_states2, (B2, state_dim), 0, one_hot_depth,
                                 dtype=jnp.int32)
    out2 = jax.block_until_ready(
        resnet_forward(states2, params, batch_norm=batch_norm, bn_batch_stats=False,
                       batch_tile=512))
    ref2 = reference_forward(states2, params, batch_norm=batch_norm, bn_batch_stats=False)
    np.testing.assert_allclose(np.asarray(out2), np.asarray(ref2), rtol=RTOL2, atol=ATOL2)

    print("KERNEL_OK")
</pallas_src>

<mosaic_0001>
module attributes {stable_mosaic.version = 11 : i64} {
  func.func @resnet_mlp_kernel(%arg0: i32, %arg1: memref<16x128xbf16, #tpu.memory_space<vmem>>, %arg2: memref<128x128xbf16, #tpu.memory_space<vmem>>, %arg3: memref<1x128xf32, #tpu.memory_space<vmem>>, %arg4: memref<1x128xf32, #tpu.memory_space<vmem>>, %arg5: memref<1x128xf32, #tpu.memory_space<vmem>>, %arg6: memref<128x128xbf16, #tpu.memory_space<vmem>>, %arg7: memref<1x128xf32, #tpu.memory_space<vmem>>, %arg8: memref<1x128xf32, #tpu.memory_space<vmem>>, %arg9: memref<1x128xf32, #tpu.memory_space<vmem>>, %arg10: memref<2x128x128xbf16, #tpu.memory_space<vmem>>, %arg11: memref<2x1x128xf32, #tpu.memory_space<vmem>>, %arg12: memref<2x1x128xf32, #tpu.memory_space<vmem>>, %arg13: memref<2x1x128xf32, #tpu.memory_space<vmem>>, %arg14: memref<2x128x128xbf16, #tpu.memory_space<vmem>>, %arg15: memref<2x1x128xf32, #tpu.memory_space<vmem>>, %arg16: memref<2x1x128xf32, #tpu.memory_space<vmem>>, %arg17: memref<2x1x128xf32, #tpu.memory_space<vmem>>, %arg18: memref<128x128xbf16, #tpu.memory_space<vmem>>, %arg19: memref<1x128xf32, #tpu.memory_space<vmem>>, %arg20: memref<16x128xf32, #tpu.memory_space<vmem>>) attributes {dimension_semantics = [#tpu.dimension_semantics<parallel>], iteration_bounds = array<i64: 1>, scalar_prefetch = 0 : i64, scratch_operands = 0 : i64, tpu.core_type = #tpu.core_type<tc>, window_params = [{transform_indices = @transform_0, window_bounds = array<i64: 16, 128>}, {pipeline_mode = #tpu.pipeline_mode<synchronous>, transform_indices = @transform_1, window_bounds = array<i64: 128, 128>}, {pipeline_mode = #tpu.pipeline_mode<synchronous>, transform_indices = @transform_2, window_bounds = array<i64: 1, 128>}, {pipeline_mode = #tpu.pipeline_mode<synchronous>, transform_indices = @transform_3, window_bounds = array<i64: 1, 128>}, {pipeline_mode = #tpu.pipeline_mode<synchronous>, transform_indices = @transform_4, window_bounds = array<i64: 1, 128>}, {pipeline_mode = #tpu.pipeline_mode<synchronous>, transform_indices = @transform_5, window_bounds = array<i64: 128, 128>}, {pipeline_mode = #tpu.pipeline_mode<synchronous>, transform_indices = @transform_6, window_bounds = array<i64: 1, 128>}, {pipeline_mode = #tpu.pipeline_mode<synchronous>, transform_indices = @transform_7, window_bounds = array<i64: 1, 128>}, {pipeline_mode = #tpu.pipeline_mode<synchronous>, transform_indices = @transform_8, window_bounds = array<i64: 1, 128>}, {pipeline_mode = #tpu.pipeline_mode<synchronous>, transform_indices = @transform_9, window_bounds = array<i64: 2, 128, 128>}, {pipeline_mode = #tpu.pipeline_mode<synchronous>, transform_indices = @transform_10, window_bounds = array<i64: 2, 1, 128>}, {pipeline_mode = #tpu.pipeline_mode<synchronous>, transform_indices = @transform_11, window_bounds = array<i64: 2, 1, 128>}, {pipeline_mode = #tpu.pipeline_mode<synchronous>, transform_indices = @transform_12, window_bounds = array<i64: 2, 1, 128>}, {pipeline_mode = #tpu.pipeline_mode<synchronous>, transform_indices = @transform_13, window_bounds = array<i64: 2, 128, 128>}, {pipeline_mode = #tpu.pipeline_mode<synchronous>, transform_indices = @transform_14, window_bounds = array<i64: 2, 1, 128>}, {pipeline_mode = #tpu.pipeline_mode<synchronous>, transform_indices = @transform_15, window_bounds = array<i64: 2, 1, 128>}, {pipeline_mode = #tpu.pipeline_mode<synchronous>, transform_indices = @transform_16, window_bounds = array<i64: 2, 1, 128>}, {pipeline_mode = #tpu.pipeline_mode<synchronous>, transform_indices = @transform_17, window_bounds = array<i64: 128, 128>}, {pipeline_mode = #tpu.pipeline_mode<synchronous>, transform_indices = @transform_18, window_bounds = array<i64: 1, 128>}, {transform_indices = @transform_19, window_bounds = array<i64: 16, 128>}]} {
    %c0 = arith.constant 0 : index
    %c0_0 = arith.constant 0 : index
    %0 = vector.load %arg1[%c0, %c0_0] : memref<16x128xbf16, #tpu.memory_space<vmem>>, vector<16x128xbf16>
    %c0_1 = arith.constant 0 : index
    %c0_2 = arith.constant 0 : index
    %1 = vector.load %arg2[%c0_1, %c0_2] : memref<128x128xbf16, #tpu.memory_space<vmem>>, vector<128x128xbf16>
    %cst = arith.constant dense<0.000000e+00> : vector<16x128xf32>
    %2 = tpu.matmul %0, %1, %cst {dimension_numbers = #tpu.dot_dimension_numbers<[1], [0], [0], [1], [0, 0, 1, 1], [], []>} : vector<16x128xbf16>, vector<128x128xbf16>, vector<16x128xf32> -> vector<16x128xf32>
    %c0_3 = arith.constant 0 : index
    %c0_4 = arith.constant 0 : index
    %3 = vector.load %arg3[%c0_3, %c0_4] : memref<1x128xf32, #tpu.memory_space<vmem>>, vector<1x128xf32>
    %4 = vector.broadcast %3 : vector<1x128xf32> to vector<16x128xf32>
    %5 = arith.addf %2, %4 : vector<16x128xf32>
    %c0_5 = arith.constant 0 : index
    %c0_6 = arith.constant 0 : index
    %6 = vector.load %arg4[%c0_5, %c0_6] : memref<1x128xf32, #tpu.memory_space<vmem>>, vector<1x128xf32>
    %c0_7 = arith.constant 0 : index
    %c0_8 = arith.constant 0 : index
    %7 = vector.load %arg5[%c0_7, %c0_8] : memref<1x128xf32, #tpu.memory_space<vmem>>, vector<1x128xf32>
    %8 = tpu.iota {dimensions = array<i32: 0>} : vector<16x1xi32>
    %c8_i32 = arith.constant 8 : i32
    %9 = vector.broadcast %c8_i32 : i32 to vector<16x1xi32>
    %10 = arith.cmpi slt, %8, %9 : vector<16x1xi32>
    %11 = arith.extui %10 : vector<16x1xi1> to vector<16x1xi32>
    %12 = arith.sitofp %11 : vector<16x1xi32> to vector<16x1xf32>
    %13 = vector.broadcast %12 : vector<16x1xf32> to vector<16x128xf32>
    %14 = arith.mulf %5, %13 : vector<16x128xf32>
    %cst_9 = arith.constant dense<0.000000e+00> : vector<128xf32>
    %15 = vector.multi_reduction <add>, %14, %cst_9 [0] : vector<16x128xf32> to vector<128xf32>
    %16 = vector.shape_cast %15 : vector<128xf32> to vector<1x128xf32>
    %cst_10 = arith.constant 1.250000e-01 : f32
    %17 = vector.broadcast %cst_10 : f32 to vector<1x128xf32>
    %18 = arith.mulf %16, %17 : vector<1x128xf32>
    %19 = vector.broadcast %18 : vector<1x128xf32> to vector<16x128xf32>
    %20 = arith.subf %5, %19 : vector<16x128xf32>
    %21 = vector.broadcast %12 : vector<16x1xf32> to vector<16x128xf32>
    %22 = arith.mulf %20, %21 : vector<16x128xf32>
    %23 = arith.mulf %22, %22 : vector<16x128xf32>
    %cst_11 = arith.constant dense<0.000000e+00> : vector<128xf32>
    %24 = vector.multi_reduction <add>, %23, %cst_11 [0] : vector<16x128xf32> to vector<128xf32>
    %25 = vector.shape_cast %24 : vector<128xf32> to vector<1x128xf32>
    %cst_12 = arith.constant 1.250000e-01 : f32
    %26 = vector.broadcast %cst_12 : f32 to vector<1x128xf32>
    %27 = arith.mulf %25, %26 : vector<1x128xf32>
    %28 = vector.broadcast %18 : vector<1x128xf32> to vector<16x128xf32>
    %29 = arith.subf %5, %28 : vector<16x128xf32>
    %cst_13 = arith.constant 9.99999974E-6 : f32
    %30 = vector.broadcast %cst_13 : f32 to vector<1x128xf32>
    %31 = arith.addf %27, %30 : vector<1x128xf32>
    %32 = math.rsqrt %31 : vector<1x128xf32>
    %33 = vector.broadcast %32 : vector<1x128xf32> to vector<16x128xf32>
    %34 = arith.mulf %29, %33 : vector<16x128xf32>
    %35 = vector.broadcast %6 : vector<1x128xf32> to vector<16x128xf32>
    %36 = arith.mulf %34, %35 : vector<16x128xf32>
    %37 = vector.broadcast %7 : vector<1x128xf32> to vector<16x128xf32>
    %38 = arith.addf %36, %37 : vector<16x128xf32>
    %cst_14 = arith.constant 5.000000e-01 : f32
    %39 = vector.broadcast %cst_14 : f32 to vector<16x128xf32>
    %40 = arith.mulf %39, %38 : vector<16x128xf32>
    %cst_15 = arith.constant 4.471500e-02 : f32
    %41 = vector.broadcast %cst_15 : f32 to vector<16x128xf32>
    %42 = arith.mulf %41, %38 : vector<16x128xf32>
    %43 = arith.mulf %42, %38 : vector<16x128xf32>
    %44 = arith.mulf %43, %38 : vector<16x128xf32>
    %45 = arith.addf %38, %44 : vector<16x128xf32>
    %cst_16 = arith.constant 0.797884583 : f32
    %46 = vector.broadcast %cst_16 : f32 to vector<16x128xf32>
    %47 = arith.mulf %46, %45 : vector<16x128xf32>
    %48 = math.tanh %47 : vector<16x128xf32>
    %cst_17 = arith.constant 1.000000e+00 : f32
    %49 = vector.broadcast %cst_17 : f32 to vector<16x128xf32>
    %50 = arith.addf %49, %48 : vector<16x128xf32>
    %51 = arith.mulf %40, %50 : vector<16x128xf32>
    %c0_18 = arith.constant 0 : index
    %c0_19 = arith.constant 0 : index
    %52 = vector.load %arg6[%c0_18, %c0_19] : memref<128x128xbf16, #tpu.memory_space<vmem>>, vector<128x128xbf16>
    %53 = arith.truncf %51 : vector<16x128xf32> to vector<16x128xbf16>
    %cst_20 = arith.constant dense<0.000000e+00> : vector<16x128xf32>
    %54 = tpu.matmul %53, %52, %cst_20 {dimension_numbers = #tpu.dot_dimension_numbers<[1], [0], [0], [1], [0, 0, 1, 1], [], []>} : vector<16x128xbf16>, vector<128x128xbf16>, vector<16x128xf32> -> vector<16x128xf32>
    %c0_21 = arith.constant 0 : index
    %c0_22 = arith.constant 0 : index
    %55 = vector.load %arg7[%c0_21, %c0_22] : memref<1x128xf32, #tpu.memory_space<vmem>>, vector<1x128xf32>
    %56 = vector.broadcast %55 : vector<1x128xf32> to vector<16x128xf32>
    %57 = arith.addf %54, %56 : vector<16x128xf32>
    %c0_23 = arith.constant 0 : index
    %c0_24 = arith.constant 0 : index
    %58 = vector.load %arg8[%c0_23, %c0_24] : memref<1x128xf32, #tpu.memory_space<vmem>>, vector<1x128xf32>
    %c0_25 = arith.constant 0 : index
    %c0_26 = arith.constant 0 : index
    %59 = vector.load %arg9[%c0_25, %c0_26] : memref<1x128xf32, #tpu.memory_space<vmem>>, vector<1x128xf32>
    %60 = tpu.iota {dimensions = array<i32: 0>} : vector<16x1xi32>
    %c8_i32_27 = arith.constant 8 : i32
    %61 = vector.broadcast %c8_i32_27 : i32 to vector<16x1xi32>
    %62 = arith.cmpi slt, %60, %61 : vector<16x1xi32>
    %63 = arith.extui %62 : vector<16x1xi1> to vector<16x1xi32>
    %64 = arith.sitofp %63 : vector<16x1xi32> to vector<16x1xf32>
    %65 = vector.broadcast %64 : vector<16x1xf32> to vector<16x128xf32>
    %66 = arith.mulf %57, %65 : vector<16x128xf32>
    %cst_28 = arith.constant dense<0.000000e+00> : vector<128xf32>
    %67 = vector.multi_reduction <add>, %66, %cst_28 [0] : vector<16x128xf32> to vector<128xf32>
    %68 = vector.shape_cast %67 : vector<128xf32> to vector<1x128xf32>
    %cst_29 = arith.constant 1.250000e-01 : f32
    %69 = vector.broadcast %cst_29 : f32 to vector<1x128xf32>
    %70 = arith.mulf %68, %69 : vector<1x128xf32>
    %71 = vector.broadcast %70 : vector<1x128xf32> to vector<16x128xf32>
    %72 = arith.subf %57, %71 : vector<16x128xf32>
    %73 = vector.broadcast %64 : vector<16x1xf32> to vector<16x128xf32>
    %74 = arith.mulf %72, %73 : vector<16x128xf32>
    %75 = arith.mulf %74, %74 : vector<16x128xf32>
    %cst_30 = arith.constant dense<0.000000e+00> : vector<128xf32>
    %76 = vector.multi_reduction <add>, %75, %cst_30 [0] : vector<16x128xf32> to vector<128xf32>
    %77 = vector.shape_cast %76 : vector<128xf32> to vector<1x128xf32>
    %cst_31 = arith.constant 1.250000e-01 : f32
    %78 = vector.broadcast %cst_31 : f32 to vector<1x128xf32>
    %79 = arith.mulf %77, %78 : vector<1x128xf32>
    %80 = vector.broadcast %70 : vector<1x128xf32> to vector<16x128xf32>
    %81 = arith.subf %57, %80 : vector<16x128xf32>
    %cst_32 = arith.constant 9.99999974E-6 : f32
    %82 = vector.broadcast %cst_32 : f32 to vector<1x128xf32>
    %83 = arith.addf %79, %82 : vector<1x128xf32>
    %84 = math.rsqrt %83 : vector<1x128xf32>
    %85 = vector.broadcast %84 : vector<1x128xf32> to vector<16x128xf32>
    %86 = arith.mulf %81, %85 : vector<16x128xf32>
    %87 = vector.broadcast %58 : vector<1x128xf32> to vector<16x128xf32>
    %88 = arith.mulf %86, %87 : vector<16x128xf32>
    %89 = vector.broadcast %59 : vector<1x128xf32> to vector<16x128xf32>
    %90 = arith.addf %88, %89 : vector<16x128xf32>
    %cst_33 = arith.constant 5.000000e-01 : f32
    %91 = vector.broadcast %cst_33 : f32 to vector<16x128xf32>
    %92 = arith.mulf %91, %90 : vector<16x128xf32>
    %cst_34 = arith.constant 4.471500e-02 : f32
    %93 = vector.broadcast %cst_34 : f32 to vector<16x128xf32>
    %94 = arith.mulf %93, %90 : vector<16x128xf32>
    %95 = arith.mulf %94, %90 : vector<16x128xf32>
    %96 = arith.mulf %95, %90 : vector<16x128xf32>
    %97 = arith.addf %90, %96 : vector<16x128xf32>
    %cst_35 = arith.constant 0.797884583 : f32
    %98 = vector.broadcast %cst_35 : f32 to vector<16x128xf32>
    %99 = arith.mulf %98, %97 : vector<16x128xf32>
    %100 = math.tanh %99 : vector<16x128xf32>
    %cst_36 = arith.constant 1.000000e+00 : f32
    %101 = vector.broadcast %cst_36 : f32 to vector<16x128xf32>
    %102 = arith.addf %101, %100 : vector<16x128xf32>
    %103 = arith.mulf %92, %102 : vector<16x128xf32>
    %c0_37 = arith.constant 0 : index
    %c0_38 = arith.constant 0 : index
    %c0_39 = arith.constant 0 : index
    %104 = vector.load %arg10[%c0_37, %c0_38, %c0_39] : memref<2x128x128xbf16, #tpu.memory_space<vmem>>, vector<1x128x128xbf16>
    %105 = vector.shape_cast %104 : vector<1x128x128xbf16> to vector<128x128xbf16>
    %106 = arith.truncf %103 : vector<16x128xf32> to vector<16x128xbf16>
    %cst_40 = arith.constant dense<0.000000e+00> : vector<16x128xf32>
    %107 = tpu.matmul %106, %105, %cst_40 {dimension_numbers = #tpu.dot_dimension_numbers<[1], [0], [0], [1], [0, 0, 1, 1], [], []>} : vector<16x128xbf16>, vector<128x128xbf16>, vector<16x128xf32> -> vector<16x128xf32>
    %c0_41 = arith.constant 0 : index
    %c0_42 = arith.constant 0 : index
    %c0_43 = arith.constant 0 : index
    %108 = vector.load %arg11[%c0_41, %c0_42, %c0_43] : memref<2x1x128xf32, #tpu.memory_space<vmem>>, vector<1x1x128xf32>
    %109 = vector.shape_cast %108 : vector<1x1x128xf32> to vector<1x128xf32>
    %110 = vector.broadcast %109 : vector<1x128xf32> to vector<16x128xf32>
    %111 = arith.addf %107, %110 : vector<16x128xf32>
    %c0_44 = arith.constant 0 : index
    %c0_45 = arith.constant 0 : index
    %c0_46 = arith.constant 0 : index
    %112 = vector.load %arg12[%c0_44, %c0_45, %c0_46] : memref<2x1x128xf32, #tpu.memory_space<vmem>>, vector<1x1x128xf32>
    %113 = vector.shape_cast %112 : vector<1x1x128xf32> to vector<1x128xf32>
    %c0_47 = arith.constant 0 : index
    %c0_48 = arith.constant 0 : index
    %c0_49 = arith.constant 0 : index
    %114 = vector.load %arg13[%c0_47, %c0_48, %c0_49] : memref<2x1x128xf32, #tpu.memory_space<vmem>>, vector<1x1x128xf32>
    %115 = vector.shape_cast %114 : vector<1x1x128xf32> to vector<1x128xf32>
    %116 = tpu.iota {dimensions = array<i32: 0>} : vector<16x1xi32>
    %c8_i32_50 = arith.constant 8 : i32
    %117 = vector.broadcast %c8_i32_50 : i32 to vector<16x1xi32>
    %118 = arith.cmpi slt, %116, %117 : vector<16x1xi32>
    %119 = arith.extui %118 : vector<16x1xi1> to vector<16x1xi32>
    %120 = arith.sitofp %119 : vector<16x1xi32> to vector<16x1xf32>
    %121 = vector.broadcast %120 : vector<16x1xf32> to vector<16x128xf32>
    %122 = arith.mulf %111, %121 : vector<16x128xf32>
    %cst_51 = arith.constant dense<0.000000e+00> : vector<128xf32>
    %123 = vector.multi_reduction <add>, %122, %cst_51 [0] : vector<16x128xf32> to vector<128xf32>
    %124 = vector.shape_cast %123 : vector<128xf32> to vector<1x128xf32>
    %cst_52 = arith.constant 1.250000e-01 : f32
    %125 = vector.broadcast %cst_52 : f32 to vector<1x128xf32>
    %126 = arith.mulf %124, %125 : vector<1x128xf32>
    %127 = vector.broadcast %126 : vector<1x128xf32> to vector<16x128xf32>
    %128 = arith.subf %111, %127 : vector<16x128xf32>
    %129 = vector.broadcast %120 : vector<16x1xf32> to vector<16x128xf32>
    %130 = arith.mulf %128, %129 : vector<16x128xf32>
    %131 = arith.mulf %130, %130 : vector<16x128xf32>
    %cst_53 = arith.constant dense<0.000000e+00> : vector<128xf32>
    %132 = vector.multi_reduction <add>, %131, %cst_53 [0] : vector<16x128xf32> to vector<128xf32>
    %133 = vector.shape_cast %132 : vector<128xf32> to vector<1x128xf32>
    %cst_54 = arith.constant 1.250000e-01 : f32
    %134 = vector.broadcast %cst_54 : f32 to vector<1x128xf32>
    %135 = arith.mulf %133, %134 : vector<1x128xf32>
    %136 = vector.broadcast %126 : vector<1x128xf32> to vector<16x128xf32>
    %137 = arith.subf %111, %136 : vector<16x128xf32>
    %cst_55 = arith.constant 9.99999974E-6 : f32
    %138 = vector.broadcast %cst_55 : f32 to vector<1x128xf32>
    %139 = arith.addf %135, %138 : vector<1x128xf32>
    %140 = math.rsqrt %139 : vector<1x128xf32>
    %141 = vector.broadcast %140 : vector<1x128xf32> to vector<16x128xf32>
    %142 = arith.mulf %137, %141 : vector<16x128xf32>
    %143 = vector.broadcast %113 : vector<1x128xf32> to vector<16x128xf32>
    %144 = arith.mulf %142, %143 : vector<16x128xf32>
    %145 = vector.broadcast %115 : vector<1x128xf32> to vector<16x128xf32>
    %146 = arith.addf %144, %145 : vector<16x128xf32>
    %cst_56 = arith.constant 5.000000e-01 : f32
    %147 = vector.broadcast %cst_56 : f32 to vector<16x128xf32>
    %148 = arith.mulf %147, %146 : vector<16x128xf32>
    %cst_57 = arith.constant 4.471500e-02 : f32
    %149 = vector.broadcast %cst_57 : f32 to vector<16x128xf32>
    %150 = arith.mulf %149, %146 : vector<16x128xf32>
    %151 = arith.mulf %150, %146 : vector<16x128xf32>
    %152 = arith.mulf %151, %146 : vector<16x128xf32>
    %153 = arith.addf %146, %152 : vector<16x128xf32>
    %cst_58 = arith.constant 0.797884583 : f32
    %154 = vector.broadcast %cst_58 : f32 to vector<16x128xf32>
    %155 = arith.mulf %154, %153 : vector<16x128xf32>
    %156 = math.tanh %155 : vector<16x128xf32>
    %cst_59 = arith.constant 1.000000e+00 : f32
    %157 = vector.broadcast %cst_59 : f32 to vector<16x128xf32>
    %158 = arith.addf %157, %156 : vector<16x128xf32>
    %159 = arith.mulf %148, %158 : vector<16x128xf32>
    %c0_60 = arith.constant 0 : index
    %c0_61 = arith.constant 0 : index
    %c0_62 = arith.constant 0 : index
    %160 = vector.load %arg14[%c0_60, %c0_61, %c0_62] : memref<2x128x128xbf16, #tpu.memory_space<vmem>>, vector<1x128x128xbf16>
    %161 = vector.shape_cast %160 : vector<1x128x128xbf16> to vector<128x128xbf16>
    %162 = arith.truncf %159 : vector<16x128xf32> to vector<16x128xbf16>
    %cst_63 = arith.constant dense<0.000000e+00> : vector<16x128xf32>
    %163 = tpu.matmul %162, %161, %cst_63 {dimension_numbers = #tpu.dot_dimension_numbers<[1], [0], [0], [1], [0, 0, 1, 1], [], []>} : vector<16x128xbf16>, vector<128x128xbf16>, vector<16x128xf32> -> vector<16x128xf32>
    %c0_64 = arith.constant 0 : index
    %c0_65 = arith.constant 0 : index
    %c0_66 = arith.constant 0 : index
    %164 = vector.load %arg15[%c0_64, %c0_65, %c0_66] : memref<2x1x128xf32, #tpu.memory_space<vmem>>, vector<1x1x128xf32>
    %165 = vector.shape_cast %164 : vector<1x1x128xf32> to vector<1x128xf32>
    %166 = vector.broadcast %165 : vector<1x128xf32> to vector<16x128xf32>
    %167 = arith.addf %163, %166 : vector<16x128xf32>
    %c0_67 = arith.constant 0 : index
    %c0_68 = arith.constant 0 : index
    %c0_69 = arith.constant 0 : index
    %168 = vector.load %arg16[%c0_67, %c0_68, %c0_69] : memref<2x1x128xf32, #tpu.memory_space<vmem>>, vector<1x1x128xf32>
    %169 = vector.shape_cast %168 : vector<1x1x128xf32> to vector<1x128xf32>
    %c0_70 = arith.constant 0 : index
    %c0_71 = arith.constant 0 : index
    %c0_72 = arith.constant 0 : index
    %170 = vector.load %arg17[%c0_70, %c0_71, %c0_72] : memref<2x1x128xf32, #tpu.memory_space<vmem>>, vector<1x1x128xf32>
    %171 = vector.shape_cast %170 : vector<1x1x128xf32> to vector<1x128xf32>
    %172 = tpu.iota {dimensions = array<i32: 0>} : vector<16x1xi32>
    %c8_i32_73 = arith.constant 8 : i32
    %173 = vector.broadcast %c8_i32_73 : i32 to vector<16x1xi32>
    %174 = arith.cmpi slt, %172, %173 : vector<16x1xi32>
    %175 = arith.extui %174 : vector<16x1xi1> to vector<16x1xi32>
    %176 = arith.sitofp %175 : vector<16x1xi32> to vector<16x1xf32>
    %177 = vector.broadcast %176 : vector<16x1xf32> to vector<16x128xf32>
    %178 = arith.mulf %167, %177 : vector<16x128xf32>
    %cst_74 = arith.constant dense<0.000000e+00> : vector<128xf32>
    %179 = vector.multi_reduction <add>, %178, %cst_74 [0] : vector<16x128xf32> to vector<128xf32>
    %180 = vector.shape_cast %179 : vector<128xf32> to vector<1x128xf32>
    %cst_75 = arith.constant 1.250000e-01 : f32
    %181 = vector.broadcast %cst_75 : f32 to vector<1x128xf32>
    %182 = arith.mulf %180, %181 : vector<1x128xf32>
    %183 = vector.broadcast %182 : vector<1x128xf32> to vector<16x128xf32>
    %184 = arith.subf %167, %183 : vector<16x128xf32>
    %185 = vector.broadcast %176 : vector<16x1xf32> to vector<16x128xf32>
    %186 = arith.mulf %184, %185 : vector<16x128xf32>
    %187 = arith.mulf %186, %186 : vector<16x128xf32>
    %cst_76 = arith.constant dense<0.000000e+00> : vector<128xf32>
    %188 = vector.multi_reduction <add>, %187, %cst_76 [0] : vector<16x128xf32> to vector<128xf32>
    %189 = vector.shape_cast %188 : vector<128xf32> to vector<1x128xf32>
    %cst_77 = arith.constant 1.250000e-01 : f32
    %190 = vector.broadcast %cst_77 : f32 to vector<1x128xf32>
    %191 = arith.mulf %189, %190 : vector<1x128xf32>
    %192 = vector.broadcast %182 : vector<1x128xf32> to vector<16x128xf32>
    %193 = arith.subf %167, %192 : vector<16x128xf32>
    %cst_78 = arith.constant 9.99999974E-6 : f32
    %194 = vector.broadcast %cst_78 : f32 to vector<1x128xf32>
    %195 = arith.addf %191, %194 : vector<1x128xf32>
    %196 = math.rsqrt %195 : vector<1x128xf32>
    %197 = vector.broadcast %196 : vector<1x128xf32> to vector<16x128xf32>
    %198 = arith.mulf %193, %197 : vector<16x128xf32>
    %199 = vector.broadcast %169 : vector<1x128xf32> to vector<16x128xf32>
    %200 = arith.mulf %198, %199 : vector<16x128xf32>
    %201 = vector.broadcast %171 : vector<1x128xf32> to vector<16x128xf32>
    %202 = arith.addf %200, %201 : vector<16x128xf32>
    %203 = arith.addf %202, %103 : vector<16x128xf32>
    %cst_79 = arith.constant 5.000000e-01 : f32
    %204 = vector.broadcast %cst_79 : f32 to vector<16x128xf32>
    %205 = arith.mulf %204, %203 : vector<16x128xf32>
    %cst_80 = arith.constant 4.471500e-02 : f32
    %206 = vector.broadcast %cst_80 : f32 to vector<16x128xf32>
    %207 = arith.mulf %206, %203 : vector<16x128xf32>
    %208 = arith.mulf %207, %203 : vector<16x128xf32>
    %209 = arith.mulf %208, %203 : vector<16x128xf32>
    %210 = arith.addf %203, %209 : vector<16x128xf32>
    %cst_81 = arith.constant 0.797884583 : f32
    %211 = vector.broadcast %cst_81 : f32 to vector<16x128xf32>
    %212 = arith.mulf %211, %210 : vector<16x128xf32>
    %213 = math.tanh %212 : vector<16x128xf32>
    %cst_82 = arith.constant 1.000000e+00 : f32
    %214 = vector.broadcast %cst_82 : f32 to vector<16x128xf32>
    %215 = arith.addf %214, %213 : vector<16x128xf32>
    %216 = arith.mulf %205, %215 : vector<16x128xf32>
    %c1 = arith.constant 1 : index
    %c0_83 = arith.constant 0 : index
    %c0_84 = arith.constant 0 : index
    %217 = vector.load %arg10[%c1, %c0_83, %c0_84] : memref<2x128x128xbf16, #tpu.memory_space<vmem>>, vector<1x128x128xbf16>
    %218 = vector.shape_cast %217 : vector<1x128x128xbf16> to vector<128x128xbf16>
    %219 = arith.truncf %216 : vector<16x128xf32> to vector<16x128xbf16>
    %cst_85 = arith.constant dense<0.000000e+00> : vector<16x128xf32>
    %220 = tpu.matmul %219, %218, %cst_85 {dimension_numbers = #tpu.dot_dimension_numbers<[1], [0], [0], [1], [0, 0, 1, 1], [], []>} : vector<16x128xbf16>, vector<128x128xbf16>, vector<16x128xf32> -> vector<16x128xf32>
    %c1_86 = arith.constant 1 : index
    %c0_87 = arith.constant 0 : index
    %c0_88 = arith.constant 0 : index
    %221 = vector.load %arg11[%c1_86, %c0_87, %c0_88] : memref<2x1x128xf32, #tpu.memory_space<vmem>>, vector<1x1x128xf32>
    %222 = vector.shape_cast %221 : vector<1x1x128xf32> to vector<1x128xf32>
    %223 = vector.broadcast %222 : vector<1x128xf32> to vector<16x128xf32>
    %224 = arith.addf %220, %223 : vector<16x128xf32>
    %c1_89 = arith.constant 1 : index
    %c0_90 = arith.constant 0 : index
    %c0_91 = arith.constant 0 : index
    %225 = vector.load %arg12[%c1_89, %c0_90, %c0_91] : memref<2x1x128xf32, #tpu.memory_space<vmem>>, vector<1x1x128xf32>
    %226 = vector.shape_cast %225 : vector<1x1x128xf32> to vector<1x128xf32>
    %c1_92 = arith.constant 1 : index
    %c0_93 = arith.constant 0 : index
    %c0_94 = arith.constant 0 : index
    %227 = vector.load %arg13[%c1_92, %c0_93, %c0_94] : memref<2x1x128xf32, #tpu.memory_space<vmem>>, vector<1x1x128xf32>
    %228 = vector.shape_cast %227 : vector<1x1x128xf32> to vector<1x128xf32>
    %229 = tpu.iota {dimensions = array<i32: 0>} : vector<16x1xi32>
    %c8_i32_95 = arith.constant 8 : i32
    %230 = vector.broadcast %c8_i32_95 : i32 to vector<16x1xi32>
    %231 = arith.cmpi slt, %229, %230 : vector<16x1xi32>
    %232 = arith.extui %231 : vector<16x1xi1> to vector<16x1xi32>
    %233 = arith.sitofp %232 : vector<16x1xi32> to vector<16x1xf32>
    %234 = vector.broadcast %233 : vector<16x1xf32> to vector<16x128xf32>
    %235 = arith.mulf %224, %234 : vector<16x128xf32>
    %cst_96 = arith.constant dense<0.000000e+00> : vector<128xf32>
    %236 = vector.multi_reduction <add>, %235, %cst_96 [0] : vector<16x128xf32> to vector<128xf32>
    %237 = vector.shape_cast %236 : vector<128xf32> to vector<1x128xf32>
    %cst_97 = arith.constant 1.250000e-01 : f32
    %238 = vector.broadcast %cst_97 : f32 to vector<1x128xf32>
    %239 = arith.mulf %237, %238 : vector<1x128xf32>
    %240 = vector.broadcast %239 : vector<1x128xf32> to vector<16x128xf32>
    %241 = arith.subf %224, %240 : vector<16x128xf32>
    %242 = vector.broadcast %233 : vector<16x1xf32> to vector<16x128xf32>
    %243 = arith.mulf %241, %242 : vector<16x128xf32>
    %244 = arith.mulf %243, %243 : vector<16x128xf32>
    %cst_98 = arith.constant dense<0.000000e+00> : vector<128xf32>
    %245 = vector.multi_reduction <add>, %244, %cst_98 [0] : vector<16x128xf32> to vector<128xf32>
    %246 = vector.shape_cast %245 : vector<128xf32> to vector<1x128xf32>
    %cst_99 = arith.constant 1.250000e-01 : f32
    %247 = vector.broadcast %cst_99 : f32 to vector<1x128xf32>
    %248 = arith.mulf %246, %247 : vector<1x128xf32>
    %249 = vector.broadcast %239 : vector<1x128xf32> to vector<16x128xf32>
    %250 = arith.subf %224, %249 : vector<16x128xf32>
    %cst_100 = arith.constant 9.99999974E-6 : f32
    %251 = vector.broadcast %cst_100 : f32 to vector<1x128xf32>
    %252 = arith.addf %248, %251 : vector<1x128xf32>
    %253 = math.rsqrt %252 : vector<1x128xf32>
    %254 = vector.broadcast %253 : vector<1x128xf32> to vector<16x128xf32>
    %255 = arith.mulf %250, %254 : vector<16x128xf32>
    %256 = vector.broadcast %226 : vector<1x128xf32> to vector<16x128xf32>
    %257 = arith.mulf %255, %256 : vector<16x128xf32>
    %258 = vector.broadcast %228 : vector<1x128xf32> to vector<16x128xf32>
    %259 = arith.addf %257, %258 : vector<16x128xf32>
    %cst_101 = arith.constant 5.000000e-01 : f32
    %260 = vector.broadcast %cst_101 : f32 to vector<16x128xf32>
    %261 = arith.mulf %260, %259 : vector<16x128xf32>
    %cst_102 = arith.constant 4.471500e-02 : f32
    %262 = vector.broadcast %cst_102 : f32 to vector<16x128xf32>
    %263 = arith.mulf %262, %259 : vector<16x128xf32>
    %264 = arith.mulf %263, %259 : vector<16x128xf32>
    %265 = arith.mulf %264, %259 : vector<16x128xf32>
    %266 = arith.addf %259, %265 : vector<16x128xf32>
    %cst_103 = arith.constant 0.797884583 : f32
    %267 = vector.broadcast %cst_103 : f32 to vector<16x128xf32>
    %268 = arith.mulf %267, %266 : vector<16x128xf32>
    %269 = math.tanh %268 : vector<16x128xf32>
    %cst_104 = arith.constant 1.000000e+00 : f32
    %270 = vector.broadcast %cst_104 : f32 to vector<16x128xf32>
    %271 = arith.addf %270, %269 : vector<16x128xf32>
    %272 = arith.mulf %261, %271 : vector<16x128xf32>
    %c1_105 = arith.constant 1 : index
    %c0_106 = arith.constant 0 : index
    %c0_107 = arith.constant 0 : index
    %273 = vector.load %arg14[%c1_105, %c0_106, %c0_107] : memref<2x128x128xbf16, #tpu.memory_space<vmem>>, vector<1x128x128xbf16>
    %274 = vector.shape_cast %273 : vector<1x128x128xbf16> to vector<128x128xbf16>
    %275 = arith.truncf %272 : vector<16x128xf32> to vector<16x128xbf16>
    %cst_108 = arith.constant dense<0.000000e+00> : vector<16x128xf32>
    %276 = tpu.matmul %275, %274, %cst_108 {dimension_numbers = #tpu.dot_dimension_numbers<[1], [0], [0], [1], [0, 0, 1, 1], [], []>} : vector<16x128xbf16>, vector<128x128xbf16>, vector<16x128xf32> -> vector<16x128xf32>
    %c1_109 = arith.constant 1 : index
    %c0_110 = arith.constant 0 : index
    %c0_111 = arith.constant 0 : index
    %277 = vector.load %arg15[%c1_109, %c0_110, %c0_111] : memref<2x1x128xf32, #tpu.memory_space<vmem>>, vector<1x1x128xf32>
    %278 = vector.shape_cast %277 : vector<1x1x128xf32> to vector<1x128xf32>
    %279 = vector.broadcast %278 : vector<1x128xf32> to vector<16x128xf32>
    %280 = arith.addf %276, %279 : vector<16x128xf32>
    %c1_112 = arith.constant 1 : index
    %c0_113 = arith.constant 0 : index
    %c0_114 = arith.constant 0 : index
    %281 = vector.load %arg16[%c1_112, %c0_113, %c0_114] : memref<2x1x128xf32, #tpu.memory_space<vmem>>, vector<1x1x128xf32>
    %282 = vector.shape_cast %281 : vector<1x1x128xf32> to vector<1x128xf32>
    %c1_115 = arith.constant 1 : index
    %c0_116 = arith.constant 0 : index
    %c0_117 = arith.constant 0 : index
    %283 = vector.load %arg17[%c1_115, %c0_116, %c0_117] : memref<2x1x128xf32, #tpu.memory_space<vmem>>, vector<1x1x128xf32>
    %284 = vector.shape_cast %283 : vector<1x1x128xf32> to vector<1x128xf32>
    %285 = tpu.iota {dimensions = array<i32: 0>} : vector<16x1xi32>
    %c8_i32_118 = arith.constant 8 : i32
    %286 = vector.broadcast %c8_i32_118 : i32 to vector<16x1xi32>
    %287 = arith.cmpi slt, %285, %286 : vector<16x1xi32>
    %288 = arith.extui %287 : vector<16x1xi1> to vector<16x1xi32>
    %289 = arith.sitofp %288 : vector<16x1xi32> to vector<16x1xf32>
    %290 = vector.broadcast %289 : vector<16x1xf32> to vector<16x128xf32>
    %291 = arith.mulf %280, %290 : vector<16x128xf32>
    %cst_119 = arith.constant dense<0.000000e+00> : vector<128xf32>
    %292 = vector.multi_reduction <add>, %291, %cst_119 [0] : vector<16x128xf32> to vector<128xf32>
    %293 = vector.shape_cast %292 : vector<128xf32> to vector<1x128xf32>
    %cst_120 = arith.constant 1.250000e-01 : f32
    %294 = vector.broadcast %cst_120 : f32 to vector<1x128xf32>
    %295 = arith.mulf %293, %294 : vector<1x128xf32>
    %296 = vector.broadcast %295 : vector<1x128xf32> to vector<16x128xf32>
    %297 = arith.subf %280, %296 : vector<16x128xf32>
    %298 = vector.broadcast %289 : vector<16x1xf32> to vector<16x128xf32>
    %299 = arith.mulf %297, %298 : vector<16x128xf32>
    %300 = arith.mulf %299, %299 : vector<16x128xf32>
    %cst_121 = arith.constant dense<0.000000e+00> : vector<128xf32>
    %301 = vector.multi_reduction <add>, %300, %cst_121 [0] : vector<16x128xf32> to vector<128xf32>
    %302 = vector.shape_cast %301 : vector<128xf32> to vector<1x128xf32>
    %cst_122 = arith.constant 1.250000e-01 : f32
    %303 = vector.broadcast %cst_122 : f32 to vector<1x128xf32>
    %304 = arith.mulf %302, %303 : vector<1x128xf32>
    %305 = vector.broadcast %295 : vector<1x128xf32> to vector<16x128xf32>
    %306 = arith.subf %280, %305 : vector<16x128xf32>
    %cst_123 = arith.constant 9.99999974E-6 : f32
    %307 = vector.broadcast %cst_123 : f32 to vector<1x128xf32>
    %308 = arith.addf %304, %307 : vector<1x128xf32>
    %309 = math.rsqrt %308 : vector<1x128xf32>
    %310 = vector.broadcast %309 : vector<1x128xf32> to vector<16x128xf32>
    %311 = arith.mulf %306, %310 : vector<16x128xf32>
    %312 = vector.broadcast %282 : vector<1x128xf32> to vector<16x128xf32>
    %313 = arith.mulf %311, %312 : vector<16x128xf32>
    %314 = vector.broadcast %284 : vector<1x128xf32> to vector<16x128xf32>
    %315 = arith.addf %313, %314 : vector<16x128xf32>
    %316 = arith.addf %315, %216 : vector<16x128xf32>
    %cst_124 = arith.constant 5.000000e-01 : f32
    %317 = vector.broadcast %cst_124 : f32 to vector<16x128xf32>
    %318 = arith.mulf %317, %316 : vector<16x128xf32>
    %cst_125 = arith.constant 4.471500e-02 : f32
    %319 = vector.broadcast %cst_125 : f32 to vector<16x128xf32>
    %320 = arith.mulf %319, %316 : vector<16x128xf32>
    %321 = arith.mulf %320, %316 : vector<16x128xf32>
    %322 = arith.mulf %321, %316 : vector<16x128xf32>
    %323 = arith.addf %316, %322 : vector<16x128xf32>
    %cst_126 = arith.constant 0.797884583 : f32
    %324 = vector.broadcast %cst_126 : f32 to vector<16x128xf32>
    %325 = arith.mulf %324, %323 : vector<16x128xf32>
    %326 = math.tanh %325 : vector<16x128xf32>
    %cst_127 = arith.constant 1.000000e+00 : f32
    %327 = vector.broadcast %cst_127 : f32 to vector<16x128xf32>
    %328 = arith.addf %327, %326 : vector<16x128xf32>
    %329 = arith.mulf %318, %328 : vector<16x128xf32>
    %c0_128 = arith.constant 0 : index
    %c0_129 = arith.constant 0 : index
    %330 = vector.load %arg18[%c0_128, %c0_129] : memref<128x128xbf16, #tpu.memory_space<vmem>>, vector<128x128xbf16>
    %331 = arith.truncf %329 : vector<16x128xf32> to vector<16x128xbf16>
    %cst_130 = arith.constant dense<0.000000e+00> : vector<16x128xf32>
    %332 = tpu.matmul %331, %330, %cst_130 {dimension_numbers = #tpu.dot_dimension_numbers<[1], [0], [0], [1], [0, 0, 1, 1], [], []>} : vector<16x128xbf16>, vector<128x128xbf16>, vector<16x128xf32> -> vector<16x128xf32>
    %c0_131 = arith.constant 0 : index
    %c0_132 = arith.constant 0 : index
    %333 = vector.load %arg19[%c0_131, %c0_132] : memref<1x128xf32, #tpu.memory_space<vmem>>, vector<1x128xf32>
    %334 = vector.broadcast %333 : vector<1x128xf32> to vector<16x128xf32>
    %335 = arith.addf %332, %334 : vector<16x128xf32>
    %c0_133 = arith.constant 0 : index
    %c0_134 = arith.constant 0 : index
    %336 = vector.load %arg20[%c0_133, %c0_134] : memref<16x128xf32, #tpu.memory_space<vmem>>, vector<16x128xf32>
    tpu.vector_store %arg20[%c0_133, %c0_134], %335 {strides = array<i32>} : memref<16x128xf32, #tpu.memory_space<vmem>>, vector<16x128xf32>,
    return
  }
  func.func @transform_0(%arg0: i32) -> (i32, i32) {
    %c0_i32 = arith.constant 0 : i32
    %c0_i32_0 = arith.constant 0 : i32
    return %arg0, %c0_i32 : i32, i32
  }
  func.func @transform_1(%arg0: i32) -> (i32, i32) {
    %c0_i32 = arith.constant 0 : i32
    %c0_i32_0 = arith.constant 0 : i32
    %c0_i32_1 = arith.constant 0 : i32
    return %c0_i32, %c0_i32_0 : i32, i32
  }
  func.func @transform_2(%arg0: i32) -> (i32, i32) {
    %c0_i32 = arith.constant 0 : i32
    %c0_i32_0 = arith.constant 0 : i32
    %c0_i32_1 = arith.constant 0 : i32
    return %c0_i32, %c0_i32_0 : i32, i32
  }
  func.func @transform_3(%arg0: i32) -> (i32, i32) {
    %c0_i32 = arith.constant 0 : i32
    %c0_i32_0 = arith.constant 0 : i32
    %c0_i32_1 = arith.constant 0 : i32
    return %c0_i32, %c0_i32_0 : i32, i32
  }
  func.func @transform_4(%arg0: i32) -> (i32, i32) {
    %c0_i32 = arith.constant 0 : i32
    %c0_i32_0 = arith.constant 0 : i32
    %c0_i32_1 = arith.constant 0 : i32
    return %c0_i32, %c0_i32_0 : i32, i32
  }
  func.func @transform_5(%arg0: i32) -> (i32, i32) {
    %c0_i32 = arith.constant 0 : i32
    %c0_i32_0 = arith.constant 0 : i32
    %c0_i32_1 = arith.constant 0 : i32
    return %c0_i32, %c0_i32_0 : i32, i32
  }
  func.func @transform_6(%arg0: i32) -> (i32, i32) {
    %c0_i32 = arith.constant 0 : i32
    %c0_i32_0 = arith.constant 0 : i32
    %c0_i32_1 = arith.constant 0 : i32
    return %c0_i32, %c0_i32_0 : i32, i32
  }
  func.func @transform_7(%arg0: i32) -> (i32, i32) {
    %c0_i32 = arith.constant 0 : i32
    %c0_i32_0 = arith.constant 0 : i32
    %c0_i32_1 = arith.constant 0 : i32
    return %c0_i32, %c0_i32_0 : i32, i32
  }
  func.func @transform_8(%arg0: i32) -> (i32, i32) {
    %c0_i32 = arith.constant 0 : i32
    %c0_i32_0 = arith.constant 0 : i32
    %c0_i32_1 = arith.constant 0 : i32
    return %c0_i32, %c0_i32_0 : i32, i32
  }
  func.func @transform_9(%arg0: i32) -> (i32, i32, i32) {
    %c0_i32 = arith.constant 0 : i32
    %c0_i32_0 = arith.constant 0 : i32
    %c0_i32_1 = arith.constant 0 : i32
    %c0_i32_2 = arith.constant 0 : i32
    return %c0_i32, %c0_i32_0, %c0_i32_1 : i32, i32, i32
  }
  func.func @transform_10(%arg0: i32) -> (i32, i32, i32) {
    %c0_i32 = arith.constant 0 : i32
    %c0_i32_0 = arith.constant 0 : i32
    %c0_i32_1 = arith.constant 0 : i32
    %c0_i32_2 = arith.constant 0 : i32
    return %c0_i32, %c0_i32_0, %c0_i32_1 : i32, i32, i32
  }
  func.func @transform_11(%arg0: i32) -> (i32, i32, i32) {
    %c0_i32 = arith.constant 0 : i32
    %c0_i32_0 = arith.constant 0 : i32
    %c0_i32_1 = arith.constant 0 : i32
    %c0_i32_2 = arith.constant 0 : i32
    return %c0_i32, %c0_i32_0, %c0_i32_1 : i32, i32, i32
  }
  func.func @transform_12(%arg0: i32) -> (i32, i32, i32) {
    %c0_i32 = arith.constant 0 : i32
    %c0_i32_0 = arith.constant 0 : i32
    %c0_i32_1 = arith.constant 0 : i32
    %c0_i32_2 = arith.constant 0 : i32
    return %c0_i32, %c0_i32_0, %c0_i32_1 : i32, i32, i32
  }
  func.func @transform_13(%arg0: i32) -> (i32, i32, i32) {
    %c0_i32 = arith.constant 0 : i32
    %c0_i32_0 = arith.constant 0 : i32
    %c0_i32_1 = arith.constant 0 : i32
    %c0_i32_2 = arith.constant 0 : i32
    return %c0_i32, %c0_i32_0, %c0_i32_1 : i32, i32, i32
  }
  func.func @transform_14(%arg0: i32) -> (i32, i32, i32) {
    %c0_i32 = arith.constant 0 : i32
    %c0_i32_0 = arith.constant 0 : i32
    %c0_i32_1 = arith.constant 0 : i32
    %c0_i32_2 = arith.constant 0 : i32
    return %c0_i32, %c0_i32_0, %c0_i32_1 : i32, i32, i32
  }
  func.func @transform_15(%arg0: i32) -> (i32, i32, i32) {
    %c0_i32 = arith.constant 0 : i32
    %c0_i32_0 = arith.constant 0 : i32
    %c0_i32_1 = arith.constant 0 : i32
    %c0_i32_2 = arith.constant 0 : i32
    return %c0_i32, %c0_i32_0, %c0_i32_1 : i32, i32, i32
  }
  func.func @transform_16(%arg0: i32) -> (i32, i32, i32) {
    %c0_i32 = arith.constant 0 : i32
    %c0_i32_0 = arith.constant 0 : i32
    %c0_i32_1 = arith.constant 0 : i32
    %c0_i32_2 = arith.constant 0 : i32
    return %c0_i32, %c0_i32_0, %c0_i32_1 : i32, i32, i32
  }
  func.func @transform_17(%arg0: i32) -> (i32, i32) {
    %c0_i32 = arith.constant 0 : i32
    %c0_i32_0 = arith.constant 0 : i32
    %c0_i32_1 = arith.constant 0 : i32
    return %c0_i32, %c0_i32_0 : i32, i32
  }
  func.func @transform_18(%arg0: i32) -> (i32, i32) {
    %c0_i32 = arith.constant 0 : i32
    %c0_i32_0 = arith.constant 0 : i32
    %c0_i32_1 = arith.constant 0 : i32
    return %c0_i32, %c0_i32_0 : i32, i32
  }
  func.func @transform_19(%arg0: i32) -> (i32, i32) {
    %c0_i32 = arith.constant 0 : i32
    %c0_i32_0 = arith.constant 0 : i32
    return %arg0, %c0_i32 : i32, i32
  }
}

module attributes {stable_mosaic.version = 11 : i64} {
  func.func @resnet_mlp_kernel(%arg0: i32, %arg1: memref<16x128xbf16, #tpu.memory_space<vmem>>, %arg2: memref<128x128xbf16, #tpu.memory_space<vmem>>, %arg3: memref<1x128xf32, #tpu.memory_space<vmem>>, %arg4: memref<1x128xf32, #tpu.memory_space<vmem>>, %arg5: memref<1x128xf32, #tpu.memory_space<vmem>>, %arg6: memref<128x128xbf16, #tpu.memory_space<vmem>>, %arg7: memref<1x128xf32, #tpu.memory_space<vmem>>, %arg8: memref<1x128xf32, #tpu.memory_space<vmem>>, %arg9: memref<1x128xf32, #tpu.memory_space<vmem>>, %arg10: memref<2x128x128xbf16, #tpu.memory_space<vmem>>, %arg11: memref<2x1x128xf32, #tpu.memory_space<vmem>>, %arg12: memref<2x1x128xf32, #tpu.memory_space<vmem>>, %arg13: memref<2x1x128xf32, #tpu.memory_space<vmem>>, %arg14: memref<2x128x128xbf16, #tpu.memory_space<vmem>>, %arg15: memref<2x1x128xf32, #tpu.memory_space<vmem>>, %arg16: memref<2x1x128xf32, #tpu.memory_space<vmem>>, %arg17: memref<2x1x128xf32, #tpu.memory_space<vmem>>, %arg18: memref<128x128xbf16, #tpu.memory_space<vmem>>, %arg19: memref<1x128xf32, #tpu.memory_space<vmem>>, %arg20: memref<16x128xf32, #tpu.memory_space<vmem>>) attributes {dimension_semantics = [#tpu.dimension_semantics<parallel>], iteration_bounds = array<i64: 1>, scalar_prefetch = 0 : i64, scratch_operands = 0 : i64, tpu.core_type = #tpu.core_type<tc>, window_params = [{transform_indices = @transform_0, window_bounds = array<i64: 16, 128>}, {pipeline_mode = #tpu.pipeline_mode<synchronous>, transform_indices = @transform_1, window_bounds = array<i64: 128, 128>}, {pipeline_mode = #tpu.pipeline_mode<synchronous>, transform_indices = @transform_2, window_bounds = array<i64: 1, 128>}, {pipeline_mode = #tpu.pipeline_mode<synchronous>, transform_indices = @transform_3, window_bounds = array<i64: 1, 128>}, {pipeline_mode = #tpu.pipeline_mode<synchronous>, transform_indices = @transform_4, window_bounds = array<i64: 1, 128>}, {pipeline_mode = #tpu.pipeline_mode<synchronous>, transform_indices = @transform_5, window_bounds = array<i64: 128, 128>}, {pipeline_mode = #tpu.pipeline_mode<synchronous>, transform_indices = @transform_6, window_bounds = array<i64: 1, 128>}, {pipeline_mode = #tpu.pipeline_mode<synchronous>, transform_indices = @transform_7, window_bounds = array<i64: 1, 128>}, {pipeline_mode = #tpu.pipeline_mode<synchronous>, transform_indices = @transform_8, window_bounds = array<i64: 1, 128>}, {pipeline_mode = #tpu.pipeline_mode<synchronous>, transform_indices = @transform_9, window_bounds = array<i64: 2, 128, 128>}, {pipeline_mode = #tpu.pipeline_mode<synchronous>, transform_indices = @transform_10, window_bounds = array<i64: 2, 1, 128>}, {pipeline_mode = #tpu.pipeline_mode<synchronous>, transform_indices = @transform_11, window_bounds = array<i64: 2, 1, 128>}, {pipeline_mode = #tpu.pipeline_mode<synchronous>, transform_indices = @transform_12, window_bounds = array<i64: 2, 1, 128>}, {pipeline_mode = #tpu.pipeline_mode<synchronous>, transform_indices = @transform_13, window_bounds = array<i64: 2, 128, 128>}, {pipeline_mode = #tpu.pipeline_mode<synchronous>, transform_indices = @transform_14, window_bounds = array<i64: 2, 1, 128>}, {pipeline_mode = #tpu.pipeline_mode<synchronous>, transform_indices = @transform_15, window_bounds = array<i64: 2, 1, 128>}, {pipeline_mode = #tpu.pipeline_mode<synchronous>, transform_indices = @transform_16, window_bounds = array<i64: 2, 1, 128>}, {pipeline_mode = #tpu.pipeline_mode<synchronous>, transform_indices = @transform_17, window_bounds = array<i64: 128, 128>}, {pipeline_mode = #tpu.pipeline_mode<synchronous>, transform_indices = @transform_18, window_bounds = array<i64: 1, 128>}, {transform_indices = @transform_19, window_bounds = array<i64: 16, 128>}]} {
    %c0 = arith.constant 0 : index
    %c0_0 = arith.constant 0 : index
    %0 = vector.load %arg1[%c0, %c0_0] : memref<16x128xbf16, #tpu.memory_space<vmem>>, vector<16x128xbf16>
    %c0_1 = arith.constant 0 : index
    %c0_2 = arith.constant 0 : index
    %1 = vector.load %arg2[%c0_1, %c0_2] : memref<128x128xbf16, #tpu.memory_space<vmem>>, vector<128x128xbf16>
    %cst = arith.constant dense<0.000000e+00> : vector<16x128xf32>
    %2 = tpu.matmul %0, %1, %cst {dimension_numbers = #tpu.dot_dimension_numbers<[1], [0], [0], [1], [0, 0, 1, 1], [], []>} : vector<16x128xbf16>, vector<128x128xbf16>, vector<16x128xf32> -> vector<16x128xf32>
    %c0_3 = arith.constant 0 : index
    %c0_4 = arith.constant 0 : index
    %3 = vector.load %arg3[%c0_3, %c0_4] : memref<1x128xf32, #tpu.memory_space<vmem>>, vector<1x128xf32>
    %4 = vector.broadcast %3 : vector<1x128xf32> to vector<16x128xf32>
    %5 = arith.addf %2, %4 : vector<16x128xf32>
    %c0_5 = arith.constant 0 : index
    %c0_6 = arith.constant 0 : index
    %6 = vector.load %arg4[%c0_5, %c0_6] : memref<1x128xf32, #tpu.memory_space<vmem>>, vector<1x128xf32>
    %c0_7 = arith.constant 0 : index
    %c0_8 = arith.constant 0 : index
    %7 = vector.load %arg5[%c0_7, %c0_8] : memref<1x128xf32, #tpu.memory_space<vmem>>, vector<1x128xf32>
    %8 = tpu.iota {dimensions = array<i32: 0>} : vector<16x1xi32>
    %c8_i32 = arith.constant 8 : i32
    %9 = vector.broadcast %c8_i32 : i32 to vector<16x1xi32>
    %10 = arith.cmpi slt, %8, %9 : vector<16x1xi32>
    %11 = arith.extui %10 : vector<16x1xi1> to vector<16x1xi32>
    %12 = arith.sitofp %11 : vector<16x1xi32> to vector<16x1xf32>
    %13 = vector.broadcast %12 : vector<16x1xf32> to vector<16x128xf32>
    %14 = arith.mulf %5, %13 : vector<16x128xf32>
    %cst_9 = arith.constant dense<0.000000e+00> : vector<128xf32>
    %15 = vector.multi_reduction <add>, %14, %cst_9 [0] : vector<16x128xf32> to vector<128xf32>
    %16 = vector.shape_cast %15 : vector<128xf32> to vector<1x128xf32>
    %cst_10 = arith.constant 1.250000e-01 : f32
    %17 = vector.broadcast %cst_10 : f32 to vector<1x128xf32>
    %18 = arith.mulf %16, %17 : vector<1x128xf32>
    %19 = vector.broadcast %18 : vector<1x128xf32> to vector<16x128xf32>
    %20 = arith.subf %5, %19 : vector<16x128xf32>
    %21 = vector.broadcast %12 : vector<16x1xf32> to vector<16x128xf32>
    %22 = arith.mulf %20, %21 : vector<16x128xf32>
    %23 = arith.mulf %22, %22 : vector<16x128xf32>
    %cst_11 = arith.constant dense<0.000000e+00> : vector<128xf32>
    %24 = vector.multi_reduction <add>, %23, %cst_11 [0] : vector<16x128xf32> to vector<128xf32>
    %25 = vector.shape_cast %24 : vector<128xf32> to vector<1x128xf32>
    %cst_12 = arith.constant 1.250000e-01 : f32
    %26 = vector.broadcast %cst_12 : f32 to vector<1x128xf32>
    %27 = arith.mulf %25, %26 : vector<1x128xf32>
    %28 = vector.broadcast %18 : vector<1x128xf32> to vector<16x128xf32>
    %29 = arith.subf %5, %28 : vector<16x128xf32>
    %cst_13 = arith.constant 9.99999974E-6 : f32
    %30 = vector.broadcast %cst_13 : f32 to vector<1x128xf32>
    %31 = arith.addf %27, %30 : vector<1x128xf32>
    %32 = math.rsqrt %31 : vector<1x128xf32>
    %33 = vector.broadcast %32 : vector<1x128xf32> to vector<16x128xf32>
    %34 = arith.mulf %29, %33 : vector<16x128xf32>
    %35 = vector.broadcast %6 : vector<1x128xf32> to vector<16x128xf32>
    %36 = arith.mulf %34, %35 : vector<16x128xf32>
    %37 = vector.broadcast %7 : vector<1x128xf32> to vector<16x128xf32>
    %38 = arith.addf %36, %37 : vector<16x128xf32>
    %cst_14 = arith.constant 5.000000e-01 : f32
    %39 = vector.broadcast %cst_14 : f32 to vector<16x128xf32>
    %40 = arith.mulf %39, %38 : vector<16x128xf32>
    %cst_15 = arith.constant 4.471500e-02 : f32
    %41 = vector.broadcast %cst_15 : f32 to vector<16x128xf32>
    %42 = arith.mulf %41, %38 : vector<16x128xf32>
    %43 = arith.mulf %42, %38 : vector<16x128xf32>
    %44 = arith.mulf %43, %38 : vector<16x128xf32>
    %45 = arith.addf %38, %44 : vector<16x128xf32>
    %cst_16 = arith.constant 0.797884583 : f32
    %46 = vector.broadcast %cst_16 : f32 to vector<16x128xf32>
    %47 = arith.mulf %46, %45 : vector<16x128xf32>
    %48 = math.tanh %47 : vector<16x128xf32>
    %cst_17 = arith.constant 1.000000e+00 : f32
    %49 = vector.broadcast %cst_17 : f32 to vector<16x128xf32>
    %50 = arith.addf %49, %48 : vector<16x128xf32>
    %51 = arith.mulf %40, %50 : vector<16x128xf32>
    %c0_18 = arith.constant 0 : index
    %c0_19 = arith.constant 0 : index
    %52 = vector.load %arg6[%c0_18, %c0_19] : memref<128x128xbf16, #tpu.memory_space<vmem>>, vector<128x128xbf16>
    %53 = arith.truncf %51 : vector<16x128xf32> to vector<16x128xbf16>
    %cst_20 = arith.constant dense<0.000000e+00> : vector<16x128xf32>
    %54 = tpu.matmul %53, %52, %cst_20 {dimension_numbers = #tpu.dot_dimension_numbers<[1], [0], [0], [1], [0, 0, 1, 1], [], []>} : vector<16x128xbf16>, vector<128x128xbf16>, vector<16x128xf32> -> vector<16x128xf32>
    %c0_21 = arith.constant 0 : index
    %c0_22 = arith.constant 0 : index
    %55 = vector.load %arg7[%c0_21, %c0_22] : memref<1x128xf32, #tpu.memory_space<vmem>>, vector<1x128xf32>
    %56 = vector.broadcast %55 : vector<1x128xf32> to vector<16x128xf32>
    %57 = arith.addf %54, %56 : vector<16x128xf32>
    %c0_23 = arith.constant 0 : index
    %c0_24 = arith.constant 0 : index
    %58 = vector.load %arg8[%c0_23, %c0_24] : memref<1x128xf32, #tpu.memory_space<vmem>>, vector<1x128xf32>
    %c0_25 = arith.constant 0 : index
    %c0_26 = arith.constant 0 : index
    %59 = vector.load %arg9[%c0_25, %c0_26] : memref<1x128xf32, #tpu.memory_space<vmem>>, vector<1x128xf32>
    %60 = tpu.iota {dimensions = array<i32: 0>} : vector<16x1xi32>
    %c8_i32_27 = arith.constant 8 : i32
    %61 = vector.broadcast %c8_i32_27 : i32 to vector<16x1xi32>
    %62 = arith.cmpi slt, %60, %61 : vector<16x1xi32>
    %63 = arith.extui %62 : vector<16x1xi1> to vector<16x1xi32>
    %64 = arith.sitofp %63 : vector<16x1xi32> to vector<16x1xf32>
    %65 = vector.broadcast %64 : vector<16x1xf32> to vector<16x128xf32>
    %66 = arith.mulf %57, %65 : vector<16x128xf32>
    %cst_28 = arith.constant dense<0.000000e+00> : vector<128xf32>
    %67 = vector.multi_reduction <add>, %66, %cst_28 [0] : vector<16x128xf32> to vector<128xf32>
    %68 = vector.shape_cast %67 : vector<128xf32> to vector<1x128xf32>
    %cst_29 = arith.constant 1.250000e-01 : f32
    %69 = vector.broadcast %cst_29 : f32 to vector<1x128xf32>
    %70 = arith.mulf %68, %69 : vector<1x128xf32>
    %71 = vector.broadcast %70 : vector<1x128xf32> to vector<16x128xf32>
    %72 = arith.subf %57, %71 : vector<16x128xf32>
    %73 = vector.broadcast %64 : vector<16x1xf32> to vector<16x128xf32>
    %74 = arith.mulf %72, %73 : vector<16x128xf32>
    %75 = arith.mulf %74, %74 : vector<16x128xf32>
    %cst_30 = arith.constant dense<0.000000e+00> : vector<128xf32>
    %76 = vector.multi_reduction <add>, %75, %cst_30 [0] : vector<16x128xf32> to vector<128xf32>
    %77 = vector.shape_cast %76 : vector<128xf32> to vector<1x128xf32>
    %cst_31 = arith.constant 1.250000e-01 : f32
    %78 = vector.broadcast %cst_31 : f32 to vector<1x128xf32>
    %79 = arith.mulf %77, %78 : vector<1x128xf32>
    %80 = vector.broadcast %70 : vector<1x128xf32> to vector<16x128xf32>
    %81 = arith.subf %57, %80 : vector<16x128xf32>
    %cst_32 = arith.constant 9.99999974E-6 : f32
    %82 = vector.broadcast %cst_32 : f32 to vector<1x128xf32>
    %83 = arith.addf %79, %82 : vector<1x128xf32>
    %84 = math.rsqrt %83 : vector<1x128xf32>
    %85 = vector.broadcast %84 : vector<1x128xf32> to vector<16x128xf32>
    %86 = arith.mulf %81, %85 : vector<16x128xf32>
    %87 = vector.broadcast %58 : vector<1x128xf32> to vector<16x128xf32>
    %88 = arith.mulf %86, %87 : vector<16x128xf32>
    %89 = vector.broadcast %59 : vector<1x128xf32> to vector<16x128xf32>
    %90 = arith.addf %88, %89 : vector<16x128xf32>
    %cst_33 = arith.constant 5.000000e-01 : f32
    %91 = vector.broadcast %cst_33 : f32 to vector<16x128xf32>
    %92 = arith.mulf %91, %90 : vector<16x128xf32>
    %cst_34 = arith.constant 4.471500e-02 : f32
    %93 = vector.broadcast %cst_34 : f32 to vector<16x128xf32>
    %94 = arith.mulf %93, %90 : vector<16x128xf32>
    %95 = arith.mulf %94, %90 : vector<16x128xf32>
    %96 = arith.mulf %95, %90 : vector<16x128xf32>
    %97 = arith.addf %90, %96 : vector<16x128xf32>
    %cst_35 = arith.constant 0.797884583 : f32
    %98 = vector.broadcast %cst_35 : f32 to vector<16x128xf32>
    %99 = arith.mulf %98, %97 : vector<16x128xf32>
    %100 = math.tanh %99 : vector<16x128xf32>
    %cst_36 = arith.constant 1.000000e+00 : f32
    %101 = vector.broadcast %cst_36 : f32 to vector<16x128xf32>
    %102 = arith.addf %101, %100 : vector<16x128xf32>
    %103 = arith.mulf %92, %102 : vector<16x128xf32>
    %c0_37 = arith.constant 0 : index
    %c0_38 = arith.constant 0 : index
    %c0_39 = arith.constant 0 : index
    %104 = vector.load %arg10[%c0_37, %c0_38, %c0_39] : memref<2x128x128xbf16, #tpu.memory_space<vmem>>, vector<1x128x128xbf16>
    %105 = vector.shape_cast %104 : vector<1x128x128xbf16> to vector<128x128xbf16>
    %106 = arith.truncf %103 : vector<16x128xf32> to vector<16x128xbf16>
    %cst_40 = arith.constant dense<0.000000e+00> : vector<16x128xf32>
    %107 = tpu.matmul %106, %105, %cst_40 {dimension_numbers = #tpu.dot_dimension_numbers<[1], [0], [0], [1], [0, 0, 1, 1], [], []>} : vector<16x128xbf16>, vector<128x128xbf16>, vector<16x128xf32> -> vector<16x128xf32>
    %c0_41 = arith.constant 0 : index
    %c0_42 = arith.constant 0 : index
    %c0_43 = arith.constant 0 : index
    %108 = vector.load %arg11[%c0_41, %c0_42, %c0_43] : memref<2x1x128xf32, #tpu.memory_space<vmem>>, vector<1x1x128xf32>
    %109 = vector.shape_cast %108 : vector<1x1x128xf32> to vector<1x128xf32>
    %110 = vector.broadcast %109 : vector<1x128xf32> to vector<16x128xf32>
    %111 = arith.addf %107, %110 : vector<16x128xf32>
    %c0_44 = arith.constant 0 : index
    %c0_45 = arith.constant 0 : index
    %c0_46 = arith.constant 0 : index
    %112 = vector.load %arg12[%c0_44, %c0_45, %c0_46] : memref<2x1x128xf32, #tpu.memory_space<vmem>>, vector<1x1x128xf32>
    %113 = vector.shape_cast %112 : vector<1x1x128xf32> to vector<1x128xf32>
    %c0_47 = arith.constant 0 : index
    %c0_48 = arith.constant 0 : index
    %c0_49 = arith.constant 0 : index
    %114 = vector.load %arg13[%c0_47, %c0_48, %c0_49] : memref<2x1x128xf32, #tpu.memory_space<vmem>>, vector<1x1x128xf32>
    %115 = vector.shape_cast %114 : vector<1x1x128xf32> to vector<1x128xf32>
    %116 = tpu.iota {dimensions = array<i32: 0>} : vector<16x1xi32>
    %c8_i32_50 = arith.constant 8 : i32
    %117 = vector.broadcast %c8_i32_50 : i32 to vector<16x1xi32>
    %118 = arith.cmpi slt, %116, %117 : vector<16x1xi32>
    %119 = arith.extui %118 : vector<16x1xi1> to vector<16x1xi32>
    %120 = arith.sitofp %119 : vector<16x1xi32> to vector<16x1xf32>
    %121 = vector.broadcast %120 : vector<16x1xf32> to vector<16x128xf32>
    %122 = arith.mulf %111, %121 : vector<16x128xf32>
    %cst_51 = arith.constant dense<0.000000e+00> : vector<128xf32>
    %123 = vector.multi_reduction <add>, %122, %cst_51 [0] : vector<16x128xf32> to vector<128xf32>
    %124 = vector.shape_cast %123 : vector<128xf32> to vector<1x128xf32>
    %cst_52 = arith.constant 1.250000e-01 : f32
    %125 = vector.broadcast %cst_52 : f32 to vector<1x128xf32>
    %126 = arith.mulf %124, %125 : vector<1x128xf32>
    %127 = vector.broadcast %126 : vector<1x128xf32> to vector<16x128xf32>
    %128 = arith.subf %111, %127 : vector<16x128xf32>
    %129 = vector.broadcast %120 : vector<16x1xf32> to vector<16x128xf32>
    %130 = arith.mulf %128, %129 : vector<16x128xf32>
    %131 = arith.mulf %130, %130 : vector<16x128xf32>
    %cst_53 = arith.constant dense<0.000000e+00> : vector<128xf32>
    %132 = vector.multi_reduction <add>, %131, %cst_53 [0] : vector<16x128xf32> to vector<128xf32>
    %133 = vector.shape_cast %132 : vector<128xf32> to vector<1x128xf32>
    %cst_54 = arith.constant 1.250000e-01 : f32
    %134 = vector.broadcast %cst_54 : f32 to vector<1x128xf32>
    %135 = arith.mulf %133, %134 : vector<1x128xf32>
    %136 = vector.broadcast %126 : vector<1x128xf32> to vector<16x128xf32>
    %137 = arith.subf %111, %136 : vector<16x128xf32>
    %cst_55 = arith.constant 9.99999974E-6 : f32
    %138 = vector.broadcast %cst_55 : f32 to vector<1x128xf32>
    %139 = arith.addf %135, %138 : vector<1x128xf32>
    %140 = math.rsqrt %139 : vector<1x128xf32>
    %141 = vector.broadcast %140 : vector<1x128xf32> to vector<16x128xf32>
    %142 = arith.mulf %137, %141 : vector<16x128xf32>
    %143 = vector.broadcast %113 : vector<1x128xf32> to vector<16x128xf32>
    %144 = arith.mulf %142, %143 : vector<16x128xf32>
    %145 = vector.broadcast %115 : vector<1x128xf32> to vector<16x128xf32>
    %146 = arith.addf %144, %145 : vector<16x128xf32>
    %cst_56 = arith.constant 5.000000e-01 : f32
    %147 = vector.broadcast %cst_56 : f32 to vector<16x128xf32>
    %148 = arith.mulf %147, %146 : vector<16x128xf32>
    %cst_57 = arith.constant 4.471500e-02 : f32
    %149 = vector.broadcast %cst_57 : f32 to vector<16x128xf32>
    %150 = arith.mulf %149, %146 : vector<16x128xf32>
    %151 = arith.mulf %150, %146 : vector<16x128xf32>
    %152 = arith.mulf %151, %146 : vector<16x128xf32>
    %153 = arith.addf %146, %152 : vector<16x128xf32>
    %cst_58 = arith.constant 0.797884583 : f32
    %154 = vector.broadcast %cst_58 : f32 to vector<16x128xf32>
    %155 = arith.mulf %154, %153 : vector<16x128xf32>
    %156 = math.tanh %155 : vector<16x128xf32>
    %cst_59 = arith.constant 1.000000e+00 : f32
    %157 = vector.broadcast %cst_59 : f32 to vector<16x128xf32>
    %158 = arith.addf %157, %156 : vector<16x128xf32>
    %159 = arith.mulf %148, %158 : vector<16x128xf32>
    %c0_60 = arith.constant 0 : index
    %c0_61 = arith.constant 0 : index
    %c0_62 = arith.constant 0 : index
    %160 = vector.load %arg14[%c0_60, %c0_61, %c0_62] : memref<2x128x128xbf16, #tpu.memory_space<vmem>>, vector<1x128x128xbf16>
    %161 = vector.shape_cast %160 : vector<1x128x128xbf16> to vector<128x128xbf16>
    %162 = arith.truncf %159 : vector<16x128xf32> to vector<16x128xbf16>
    %cst_63 = arith.constant dense<0.000000e+00> : vector<16x128xf32>
    %163 = tpu.matmul %162, %161, %cst_63 {dimension_numbers = #tpu.dot_dimension_numbers<[1], [0], [0], [1], [0, 0, 1, 1], [], []>} : vector<16x128xbf16>, vector<128x128xbf16>, vector<16x128xf32> -> vector<16x128xf32>
    %c0_64 = arith.constant 0 : index
    %c0_65 = arith.constant 0 : index
    %c0_66 = arith.constant 0 : index
    %164 = vector.load %arg15[%c0_64, %c0_65, %c0_66] : memref<2x1x128xf32, #tpu.memory_space<vmem>>, vector<1x1x128xf32>
    %165 = vector.shape_cast %164 : vector<1x1x128xf32> to vector<1x128xf32>
    %166 = vector.broadcast %165 : vector<1x128xf32> to vector<16x128xf32>
    %167 = arith.addf %163, %166 : vector<16x128xf32>
    %c0_67 = arith.constant 0 : index
    %c0_68 = arith.constant 0 : index
    %c0_69 = arith.constant 0 : index
    %168 = vector.load %arg16[%c0_67, %c0_68, %c0_69] : memref<2x1x128xf32, #tpu.memory_space<vmem>>, vector<1x1x128xf32>
    %169 = vector.shape_cast %168 : vector<1x1x128xf32> to vector<1x128xf32>
    %c0_70 = arith.constant 0 : index
    %c0_71 = arith.constant 0 : index
    %c0_72 = arith.constant 0 : index
    %170 = vector.load %arg17[%c0_70, %c0_71, %c0_72] : memref<2x1x128xf32, #tpu.memory_space<vmem>>, vector<1x1x128xf32>
    %171 = vector.shape_cast %170 : vector<1x1x128xf32> to vector<1x128xf32>
    %172 = tpu.iota {dimensions = array<i32: 0>} : vector<16x1xi32>
    %c8_i32_73 = arith.constant 8 : i32
    %173 = vector.broadcast %c8_i32_73 : i32 to vector<16x1xi32>
    %174 = arith.cmpi slt, %172, %173 : vector<16x1xi32>
    %175 = arith.extui %174 : vector<16x1xi1> to vector<16x1xi32>
    %176 = arith.sitofp %175 : vector<16x1xi32> to vector<16x1xf32>
    %177 = vector.broadcast %176 : vector<16x1xf32> to vector<16x128xf32>
    %178 = arith.mulf %167, %177 : vector<16x128xf32>
    %cst_74 = arith.constant dense<0.000000e+00> : vector<128xf32>
    %179 = vector.multi_reduction <add>, %178, %cst_74 [0] : vector<16x128xf32> to vector<128xf32>
    %180 = vector.shape_cast %179 : vector<128xf32> to vector<1x128xf32>
    %cst_75 = arith.constant 1.250000e-01 : f32
    %181 = vector.broadcast %cst_75 : f32 to vector<1x128xf32>
    %182 = arith.mulf %180, %181 : vector<1x128xf32>
    %183 = vector.broadcast %182 : vector<1x128xf32> to vector<16x128xf32>
    %184 = arith.subf %167, %183 : vector<16x128xf32>
    %185 = vector.broadcast %176 : vector<16x1xf32> to vector<16x128xf32>
    %186 = arith.mulf %184, %185 : vector<16x128xf32>
    %187 = arith.mulf %186, %186 : vector<16x128xf32>
    %cst_76 = arith.constant dense<0.000000e+00> : vector<128xf32>
    %188 = vector.multi_reduction <add>, %187, %cst_76 [0] : vector<16x128xf32> to vector<128xf32>
    %189 = vector.shape_cast %188 : vector<128xf32> to vector<1x128xf32>
    %cst_77 = arith.constant 1.250000e-01 : f32
    %190 = vector.broadcast %cst_77 : f32 to vector<1x128xf32>
    %191 = arith.mulf %189, %190 : vector<1x128xf32>
    %192 = vector.broadcast %182 : vector<1x128xf32> to vector<16x128xf32>
    %193 = arith.subf %167, %192 : vector<16x128xf32>
    %cst_78 = arith.constant 9.99999974E-6 : f32
    %194 = vector.broadcast %cst_78 : f32 to vector<1x128xf32>
    %195 = arith.addf %191, %194 : vector<1x128xf32>
    %196 = math.rsqrt %195 : vector<1x128xf32>
    %197 = vector.broadcast %196 : vector<1x128xf32> to vector<16x128xf32>
    %198 = arith.mulf %193, %197 : vector<16x128xf32>
    %199 = vector.broadcast %169 : vector<1x128xf32> to vector<16x128xf32>
    %200 = arith.mulf %198, %199 : vector<16x128xf32>
    %201 = vector.broadcast %171 : vector<1x128xf32> to vector<16x128xf32>
    %202 = arith.addf %200, %201 : vector<16x128xf32>
    %203 = arith.addf %202, %103 : vector<16x128xf32>
    %cst_79 = arith.constant 5.000000e-01 : f32
    %204 = vector.broadcast %cst_79 : f32 to vector<16x128xf32>
    %205 = arith.mulf %204, %203 : vector<16x128xf32>
    %cst_80 = arith.constant 4.471500e-02 : f32
    %206 = vector.broadcast %cst_80 : f32 to vector<16x128xf32>
    %207 = arith.mulf %206, %203 : vector<16x128xf32>
    %208 = arith.mulf %207, %203 : vector<16x128xf32>
    %209 = arith.mulf %208, %203 : vector<16x128xf32>
    %210 = arith.addf %203, %209 : vector<16x128xf32>
    %cst_81 = arith.constant 0.797884583 : f32
    %211 = vector.broadcast %cst_81 : f32 to vector<16x128xf32>
    %212 = arith.mulf %211, %210 : vector<16x128xf32>
    %213 = math.tanh %212 : vector<16x128xf32>
    %cst_82 = arith.constant 1.000000e+00 : f32
    %214 = vector.broadcast %cst_82 : f32 to vector<16x128xf32>
    %215 = arith.addf %214, %213 : vector<16x128xf32>
    %216 = arith.mulf %205, %215 : vector<16x128xf32>
    %c1 = arith.constant 1 : index
    %c0_83 = arith.constant 0 : index
    %c0_84 = arith.constant 0 : index
    %217 = vector.load %arg10[%c1, %c0_83, %c0_84] : memref<2x128x128xbf16, #tpu.memory_space<vmem>>, vector<1x128x128xbf16>
    %218 = vector.shape_cast %217 : vector<1x128x128xbf16> to vector<128x128xbf16>
    %219 = arith.truncf %216 : vector<16x128xf32> to vector<16x128xbf16>
    %cst_85 = arith.constant dense<0.000000e+00> : vector<16x128xf32>
    %220 = tpu.matmul %219, %218, %cst_85 {dimension_numbers = #tpu.dot_dimension_numbers<[1], [0], [0], [1], [0, 0, 1, 1], [], []>} : vector<16x128xbf16>, vector<128x128xbf16>, vector<16x128xf32> -> vector<16x128xf32>
    %c1_86 = arith.constant 1 : index
    %c0_87 = arith.constant 0 : index
    %c0_88 = arith.constant 0 : index
    %221 = vector.load %arg11[%c1_86, %c0_87, %c0_88] : memref<2x1x128xf32, #tpu.memory_space<vmem>>, vector<1x1x128xf32>
    %222 = vector.shape_cast %221 : vector<1x1x128xf32> to vector<1x128xf32>
    %223 = vector.broadcast %222 : vector<1x128xf32> to vector<16x128xf32>
    %224 = arith.addf %220, %223 : vector<16x128xf32>
    %c1_89 = arith.constant 1 : index
    %c0_90 = arith.constant 0 : index
    %c0_91 = arith.constant 0 : index
    %225 = vector.load %arg12[%c1_89, %c0_90, %c0_91] : memref<2x1x128xf32, #tpu.memory_space<vmem>>, vector<1x1x128xf32>
    %226 = vector.shape_cast %225 : vector<1x1x128xf32> to vector<1x128xf32>
    %c1_92 = arith.constant 1 : index
    %c0_93 = arith.constant 0 : index
    %c0_94 = arith.constant 0 : index
    %227 = vector.load %arg13[%c1_92, %c0_93, %c0_94] : memref<2x1x128xf32, #tpu.memory_space<vmem>>, vector<1x1x128xf32>
    %228 = vector.shape_cast %227 : vector<1x1x128xf32> to vector<1x128xf32>
    %229 = tpu.iota {dimensions = array<i32: 0>} : vector<16x1xi32>
    %c8_i32_95 = arith.constant 8 : i32
    %230 = vector.broadcast %c8_i32_95 : i32 to vector<16x1xi32>
    %231 = arith.cmpi slt, %229, %230 : vector<16x1xi32>
    %232 = arith.extui %231 : vector<16x1xi1> to vector<16x1xi32>
    %233 = arith.sitofp %232 : vector<16x1xi32> to vector<16x1xf32>
    %234 = vector.broadcast %233 : vector<16x1xf32> to vector<16x128xf32>
    %235 = arith.mulf %224, %234 : vector<16x128xf32>
    %cst_96 = arith.constant dense<0.000000e+00> : vector<128xf32>
    %236 = vector.multi_reduction <add>, %235, %cst_96 [0] : vector<16x128xf32> to vector<128xf32>
    %237 = vector.shape_cast %236 : vector<128xf32> to vector<1x128xf32>
    %cst_97 = arith.constant 1.250000e-01 : f32
    %238 = vector.broadcast %cst_97 : f32 to vector<1x128xf32>
    %239 = arith.mulf %237, %238 : vector<1x128xf32>
    %240 = vector.broadcast %239 : vector<1x128xf32> to vector<16x128xf32>
    %241 = arith.subf %224, %240 : vector<16x128xf32>
    %242 = vector.broadcast %233 : vector<16x1xf32> to vector<16x128xf32>
    %243 = arith.mulf %241, %242 : vector<16x128xf32>
    %244 = arith.mulf %243, %243 : vector<16x128xf32>
    %cst_98 = arith.constant dense<0.000000e+00> : vector<128xf32>
    %245 = vector.multi_reduction <add>, %244, %cst_98 [0] : vector<16x128xf32> to vector<128xf32>
    %246 = vector.shape_cast %245 : vector<128xf32> to vector<1x128xf32>
    %cst_99 = arith.constant 1.250000e-01 : f32
    %247 = vector.broadcast %cst_99 : f32 to vector<1x128xf32>
    %248 = arith.mulf %246, %247 : vector<1x128xf32>
    %249 = vector.broadcast %239 : vector<1x128xf32> to vector<16x128xf32>
    %250 = arith.subf %224, %249 : vector<16x128xf32>
    %cst_100 = arith.constant 9.99999974E-6 : f32
    %251 = vector.broadcast %cst_100 : f32 to vector<1x128xf32>
    %252 = arith.addf %248, %251 : vector<1x128xf32>
    %253 = math.rsqrt %252 : vector<1x128xf32>
    %254 = vector.broadcast %253 : vector<1x128xf32> to vector<16x128xf32>
    %255 = arith.mulf %250, %254 : vector<16x128xf32>
    %256 = vector.broadcast %226 : vector<1x128xf32> to vector<16x128xf32>
    %257 = arith.mulf %255, %256 : vector<16x128xf32>
    %258 = vector.broadcast %228 : vector<1x128xf32> to vector<16x128xf32>
    %259 = arith.addf %257, %258 : vector<16x128xf32>
    %cst_101 = arith.constant 5.000000e-01 : f32
    %260 = vector.broadcast %cst_101 : f32 to vector<16x128xf32>
    %261 = arith.mulf %260, %259 : vector<16x128xf32>
    %cst_102 = arith.constant 4.471500e-02 : f32
    %262 = vector.broadcast %cst_102 : f32 to vector<16x128xf32>
    %263 = arith.mulf %262, %259 : vector<16x128xf32>
    %264 = arith.mulf %263, %259 : vector<16x128xf32>
    %265 = arith.mulf %264, %259 : vector<16x128xf32>
    %266 = arith.addf %259, %265 : vector<16x128xf32>
    %cst_103 = arith.constant 0.797884583 : f32
    %267 = vector.broadcast %cst_103 : f32 to vector<16x128xf32>
    %268 = arith.mulf %267, %266 : vector<16x128xf32>
    %269 = math.tanh %268 : vector<16x128xf32>
    %cst_104 = arith.constant 1.000000e+00 : f32
    %270 = vector.broadcast %cst_104 : f32 to vector<16x128xf32>
    %271 = arith.addf %270, %269 : vector<16x128xf32>
    %272 = arith.mulf %261, %271 : vector<16x128xf32>
    %c1_105 = arith.constant 1 : index
    %c0_106 = arith.constant 0 : index
    %c0_107 = arith.constant 0 : index
    %273 = vector.load %arg14[%c1_105, %c0_106, %c0_107] : memref<2x128x128xbf16, #tpu.memory_space<vmem>>, vector<1x128x128xbf16>
    %274 = vector.shape_cast %273 : vector<1x128x128xbf16> to vector<128x128xbf16>
    %275 = arith.truncf %272 : vector<16x128xf32> to vector<16x128xbf16>
    %cst_108 = arith.constant dense<0.000000e+00> : vector<16x128xf32>
    %276 = tpu.matmul %275, %274, %cst_108 {dimension_numbers = #tpu.dot_dimension_numbers<[1], [0], [0], [1], [0, 0, 1, 1], [], []>} : vector<16x128xbf16>, vector<128x128xbf16>, vector<16x128xf32> -> vector<16x128xf32>
    %c1_109 = arith.constant 1 : index
    %c0_110 = arith.constant 0 : index
    %c0_111 = arith.constant 0 : index
    %277 = vector.load %arg15[%c1_109, %c0_110, %c0_111] : memref<2x1x128xf32, #tpu.memory_space<vmem>>, vector<1x1x128xf32>
    %278 = vector.shape_cast %277 : vector<1x1x128xf32> to vector<1x128xf32>
    %279 = vector.broadcast %278 : vector<1x128xf32> to vector<16x128xf32>
    %280 = arith.addf %276, %279 : vector<16x128xf32>
    %c1_112 = arith.constant 1 : index
    %c0_113 = arith.constant 0 : index
    %c0_114 = arith.constant 0 : index
    %281 = vector.load %arg16[%c1_112, %c0_113, %c0_114] : memref<2x1x128xf32, #tpu.memory_space<vmem>>, vector<1x1x128xf32>
    %282 = vector.shape_cast %281 : vector<1x1x128xf32> to vector<1x128xf32>
    %c1_115 = arith.constant 1 : index
    %c0_116 = arith.constant 0 : index
    %c0_117 = arith.constant 0 : index
    %283 = vector.load %arg17[%c1_115, %c0_116, %c0_117] : memref<2x1x128xf32, #tpu.memory_space<vmem>>, vector<1x1x128xf32>
    %284 = vector.shape_cast %283 : vector<1x1x128xf32> to vector<1x128xf32>
    %285 = tpu.iota {dimensions = array<i32: 0>} : vector<16x1xi32>
    %c8_i32_118 = arith.constant 8 : i32
    %286 = vector.broadcast %c8_i32_118 : i32 to vector<16x1xi32>
    %287 = arith.cmpi slt, %285, %286 : vector<16x1xi32>
    %288 = arith.extui %287 : vector<16x1xi1> to vector<16x1xi32>
    %289 = arith.sitofp %288 : vector<16x1xi32> to vector<16x1xf32>
    %290 = vector.broadcast %289 : vector<16x1xf32> to vector<16x128xf32>
    %291 = arith.mulf %280, %290 : vector<16x128xf32>
    %cst_119 = arith.constant dense<0.000000e+00> : vector<128xf32>
    %292 = vector.multi_reduction <add>, %291, %cst_119 [0] : vector<16x128xf32> to vector<128xf32>
    %293 = vector.shape_cast %292 : vector<128xf32> to vector<1x128xf32>
    %cst_120 = arith.constant 1.250000e-01 : f32
    %294 = vector.broadcast %cst_120 : f32 to vector<1x128xf32>
    %295 = arith.mulf %293, %294 : vector<1x128xf32>
    %296 = vector.broadcast %295 : vector<1x128xf32> to vector<16x128xf32>
    %297 = arith.subf %280, %296 : vector<16x128xf32>
    %298 = vector.broadcast %289 : vector<16x1xf32> to vector<16x128xf32>
    %299 = arith.mulf %297, %298 : vector<16x128xf32>
    %300 = arith.mulf %299, %299 : vector<16x128xf32>
    %cst_121 = arith.constant dense<0.000000e+00> : vector<128xf32>
    %301 = vector.multi_reduction <add>, %300, %cst_121 [0] : vector<16x128xf32> to vector<128xf32>
    %302 = vector.shape_cast %301 : vector<128xf32> to vector<1x128xf32>
    %cst_122 = arith.constant 1.250000e-01 : f32
    %303 = vector.broadcast %cst_122 : f32 to vector<1x128xf32>
    %304 = arith.mulf %302, %303 : vector<1x128xf32>
    %305 = vector.broadcast %295 : vector<1x128xf32> to vector<16x128xf32>
    %306 = arith.subf %280, %305 : vector<16x128xf32>
    %cst_123 = arith.constant 9.99999974E-6 : f32
    %307 = vector.broadcast %cst_123 : f32 to vector<1x128xf32>
    %308 = arith.addf %304, %307 : vector<1x128xf32>
    %309 = math.rsqrt %308 : vector<1x128xf32>
    %310 = vector.broadcast %309 : vector<1x128xf32> to vector<16x128xf32>
    %311 = arith.mulf %306, %310 : vector<16x128xf32>
    %312 = vector.broadcast %282 : vector<1x128xf32> to vector<16x128xf32>
    %313 = arith.mulf %311, %312 : vector<16x128xf32>
    %314 = vector.broadcast %284 : vector<1x128xf32> to vector<16x128xf32>
    %315 = arith.addf %313, %314 : vector<16x128xf32>
    %316 = arith.addf %315, %216 : vector<16x128xf32>
    %cst_124 = arith.constant 5.000000e-01 : f32
    %317 = vector.broadcast %cst_124 : f32 to vector<16x128xf32>
    %318 = arith.mulf %317, %316 : vector<16x128xf32>
    %cst_125 = arith.constant 4.471500e-02 : f32
    %319 = vector.broadcast %cst_125 : f32 to vector<16x128xf32>
    %320 = arith.mulf %319, %316 : vector<16x128xf32>
    %321 = arith.mulf %320, %316 : vector<16x128xf32>
    %322 = arith.mulf %321, %316 : vector<16x128xf32>
    %323 = arith.addf %316, %322 : vector<16x128xf32>
    %cst_126 = arith.constant 0.797884583 : f32
    %324 = vector.broadcast %cst_126 : f32 to vector<16x128xf32>
    %325 = arith.mulf %324, %323 : vector<16x128xf32>
    %326 = math.tanh %325 : vector<16x128xf32>
    %cst_127 = arith.constant 1.000000e+00 : f32
    %327 = vector.broadcast %cst_127 : f32 to vector<16x128xf32>
    %328 = arith.addf %327, %326 : vector<16x128xf32>
    %329 = arith.mulf %318, %328 : vector<16x128xf32>
    %c0_128 = arith.constant 0 : index
    %c0_129 = arith.constant 0 : index
    %330 = vector.load %arg18[%c0_128, %c0_129] : memref<128x128xbf16, #tpu.memory_space<vmem>>, vector<128x128xbf16>
    %331 = arith.truncf %329 : vector<16x128xf32> to vector<16x128xbf16>
    %cst_130 = arith.constant dense<0.000000e+00> : vector<16x128xf32>
    %332 = tpu.matmul %331, %330, %cst_130 {dimension_numbers = #tpu.dot_dimension_numbers<[1], [0], [0], [1], [0, 0, 1, 1], [], []>} : vector<16x128xbf16>, vector<128x128xbf16>, vector<16x128xf32> -> vector<16x128xf32>
    %c0_131 = arith.constant 0 : index
    %c0_132 = arith.constant 0 : index
    %333 = vector.load %arg19[%c0_131, %c0_132] : memref<1x128xf32, #tpu.memory_space<vmem>>, vector<1x128xf32>
    %334 = vector.broadcast %333 : vector<1x128xf32> to vector<16x128xf32>
    %335 = arith.addf %332, %334 : vector<16x128xf32>
    %c0_133 = arith.constant 0 : index
    %c0_134 = arith.constant 0 : index
    %336 = vector.load %arg20[%c0_133, %c0_134] : memref<16x128xf32, #tpu.memory_space<vmem>>, vector<16x128xf32>
    tpu.vector_store %arg20[%c0_133, %c0_134], %335 {strides = array<i32>} : memref<16x128xf32, #tpu.memory_space<vmem>>, vector<16x128xf32>,
    return
  }
  func.func @transform_0(%arg0: i32) -> (i32, i32) {
    %c0_i32 = arith.constant 0 : i32
    %c0_i32_0 = arith.constant 0 : i32
    return %arg0, %c0_i32 : i32, i32
  }
  func.func @transform_1(%arg0: i32) -> (i32, i32) {
    %c0_i32 = arith.constant 0 : i32
    %c0_i32_0 = arith.constant 0 : i32
    %c0_i32_1 = arith.constant 0 : i32
    return %c0_i32, %c0_i32_0 : i32, i32
  }
  func.func @transform_2(%arg0: i32) -> (i32, i32) {
    %c0_i32 = arith.constant 0 : i32
    %c0_i32_0 = arith.constant 0 : i32
    %c0_i32_1 = arith.constant 0 : i32
    return %c0_i32, %c0_i32_0 : i32, i32
  }
  func.func @transform_3(%arg0: i32) -> (i32, i32) {
    %c0_i32 = arith.constant 0 : i32
    %c0_i32_0 = arith.constant 0 : i32
    %c0_i32_1 = arith.constant 0 : i32
    return %c0_i32, %c0_i32_0 : i32, i32
  }
  func.func @transform_4(%arg0: i32) -> (i32, i32) {
    %c0_i32 = arith.constant 0 : i32
    %c0_i32_0 = arith.constant 0 : i32
    %c0_i32_1 = arith.constant 0 : i32
    return %c0_i32, %c0_i32_0 : i32, i32
  }
  func.func @transform_5(%arg0: i32) -> (i32, i32) {
    %c0_i32 = arith.constant 0 : i32
    %c0_i32_0 = arith.constant 0 : i32
    %c0_i32_1 = arith.constant 0 : i32
    return %c0_i32, %c0_i32_0 : i32, i32
  }
  func.func @transform_6(%arg0: i32) -> (i32, i32) {
    %c0_i32 = arith.constant 0 : i32
    %c0_i32_0 = arith.constant 0 : i32
    %c0_i32_1 = arith.constant 0 : i32
    return %c0_i32, %c0_i32_0 : i32, i32
  }
  func.func @transform_7(%arg0: i32) -> (i32, i32) {
    %c0_i32 = arith.constant 0 : i32
    %c0_i32_0 = arith.constant 0 : i32
    %c0_i32_1 = arith.constant 0 : i32
    return %c0_i32, %c0_i32_0 : i32, i32
  }
  func.func @transform_8(%arg0: i32) -> (i32, i32) {
    %c0_i32 = arith.constant 0 : i32
    %c0_i32_0 = arith.constant 0 : i32
    %c0_i32_1 = arith.constant 0 : i32
    return %c0_i32, %c0_i32_0 : i32, i32
  }
  func.func @transform_9(%arg0: i32) -> (i32, i32, i32) {
    %c0_i32 = arith.constant 0 : i32
    %c0_i32_0 = arith.constant 0 : i32
    %c0_i32_1 = arith.constant 0 : i32
    %c0_i32_2 = arith.constant 0 : i32
    return %c0_i32, %c0_i32_0, %c0_i32_1 : i32, i32, i32
  }
  func.func @transform_10(%arg0: i32) -> (i32, i32, i32) {
    %c0_i32 = arith.constant 0 : i32
    %c0_i32_0 = arith.constant 0 : i32
    %c0_i32_1 = arith.constant 0 : i32
    %c0_i32_2 = arith.constant 0 : i32
    return %c0_i32, %c0_i32_0, %c0_i32_1 : i32, i32, i32
  }
  func.func @transform_11(%arg0: i32) -> (i32, i32, i32) {
    %c0_i32 = arith.constant 0 : i32
    %c0_i32_0 = arith.constant 0 : i32
    %c0_i32_1 = arith.constant 0 : i32
    %c0_i32_2 = arith.constant 0 : i32
    return %c0_i32, %c0_i32_0, %c0_i32_1 : i32, i32, i32
  }
  func.func @transform_12(%arg0: i32) -> (i32, i32, i32) {
    %c0_i32 = arith.constant 0 : i32
    %c0_i32_0 = arith.constant 0 : i32
    %c0_i32_1 = arith.constant 0 : i32
    %c0_i32_2 = arith.constant 0 : i32
    return %c0_i32, %c0_i32_0, %c0_i32_1 : i32, i32, i32
  }
  func.func @transform_13(%arg0: i32) -> (i32, i32, i32) {
    %c0_i32 = arith.constant 0 : i32
    %c0_i32_0 = arith.constant 0 : i32
    %c0_i32_1 = arith.constant 0 : i32
    %c0_i32_2 = arith.constant 0 : i32
    return %c0_i32, %c0_i32_0, %c0_i32_1 : i32, i32, i32
  }
  func.func @transform_14(%arg0: i32) -> (i32, i32, i32) {
    %c0_i32 = arith.constant 0 : i32
    %c0_i32_0 = arith.constant 0 : i32
    %c0_i32_1 = arith.constant 0 : i32
    %c0_i32_2 = arith.constant 0 : i32
    return %c0_i32, %c0_i32_0, %c0_i32_1 : i32, i32, i32
  }
  func.func @transform_15(%arg0: i32) -> (i32, i32, i32) {
    %c0_i32 = arith.constant 0 : i32
    %c0_i32_0 = arith.constant 0 : i32
    %c0_i32_1 = arith.constant 0 : i32
    %c0_i32_2 = arith.constant 0 : i32
    return %c0_i32, %c0_i32_0, %c0_i32_1 : i32, i32, i32
  }
  func.func @transform_16(%arg0: i32) -> (i32, i32, i32) {
    %c0_i32 = arith.constant 0 : i32
    %c0_i32_0 = arith.constant 0 : i32
    %c0_i32_1 = arith.constant 0 : i32
    %c0_i32_2 = arith.constant 0 : i32
    return %c0_i32, %c0_i32_0, %c0_i32_1 : i32, i32, i32
  }
  func.func @transform_17(%arg0: i32) -> (i32, i32) {
    %c0_i32 = arith.constant 0 : i32
    %c0_i32_0 = arith.constant 0 : i32
    %c0_i32_1 = arith.constant 0 : i32
    return %c0_i32, %c0_i32_0 : i32, i32
  }
  func.func @transform_18(%arg0: i32) -> (i32, i32) {
    %c0_i32 = arith.constant 0 : i32
    %c0_i32_0 = arith.constant 0 : i32
    %c0_i32_1 = arith.constant 0 : i32
    return %c0_i32, %c0_i32_0 : i32, i32
  }
  func.func @transform_19(%arg0: i32) -> (i32, i32) {
    %c0_i32 = arith.constant 0 : i32
    %c0_i32_0 = arith.constant 0 : i32
    return %arg0, %c0_i32 : i32, i32
  }
}

</mosaic_0001>

<llo_original>
// kernel: tpu_custom_call.1
$region0: #{tpu_custom_call.1}
  #allocation0 [shape = 'u32[]', space=smem, size = 0x4, offset = 0x4, fixed_abs, tag = 'smem constant byte address 0x4 - core index']
  #allocation1 [shape = 'u32[72,128]{1,0:T(1,128)}', space=vmem, size = 0x9000, scoped, tag = 'internal scratch']
  %s0 = inlined_call_operand.hbm [shape: bf16[16,128], index: 0, kind: input, shape index: {}]
  %s1 = inlined_call_operand.hbm [shape: bf16[128,128], index: 1, kind: input, shape index: {}]
  %s2 = inlined_call_operand.hbm [shape: f32[1,128], index: 2, kind: input, shape index: {}]
  %s3 = inlined_call_operand.hbm [shape: f32[1,128], index: 3, kind: input, shape index: {}]
  %s4 = inlined_call_operand.hbm [shape: f32[1,128], index: 4, kind: input, shape index: {}]
  %s5 = inlined_call_operand.hbm [shape: bf16[128,128], index: 5, kind: input, shape index: {}]
  %s6 = inlined_call_operand.hbm [shape: f32[1,128], index: 6, kind: input, shape index: {}]
  %s7 = inlined_call_operand.hbm [shape: f32[1,128], index: 7, kind: input, shape index: {}]
  %s8 = inlined_call_operand.hbm [shape: f32[1,128], index: 8, kind: input, shape index: {}]
  %s9 = inlined_call_operand.hbm [shape: bf16[2,128,128], index: 9, kind: input, shape index: {}]
  %s10 = inlined_call_operand.vmem [shape: f32[2,1,128], index: 10, kind: input, shape index: {}]
  %s11 = inlined_call_operand.vmem [shape: f32[2,1,128], index: 11, kind: input, shape index: {}]
  %s12 = inlined_call_operand.vmem [shape: f32[2,1,128], index: 12, kind: input, shape index: {}]
  %s13 = inlined_call_operand.hbm [shape: bf16[2,128,128], index: 13, kind: input, shape index: {}]
  %s14 = inlined_call_operand.vmem [shape: f32[2,1,128], index: 14, kind: input, shape index: {}]
  %s15 = inlined_call_operand.vmem [shape: f32[2,1,128], index: 15, kind: input, shape index: {}]
  %s16 = inlined_call_operand.vmem [shape: f32[2,1,128], index: 16, kind: input, shape index: {}]
  %s17 = inlined_call_operand.hbm [shape: bf16[128,128], index: 17, kind: input, shape index: {}]
  %s18 = inlined_call_operand.vmem [shape: f32[1,128], index: 18, kind: input, shape index: {}]
  %s19 = inlined_call_operand.hbm [shape: f32[16,128], index: 19, kind: output, shape index: {}]
  %s20 = sld [smem:[#allocation0]]
  $region134: #{tpu_custom_call.1} parent=0
    _
  %s22 = ssub.s32 1, %s20
  %s23 = scalar_select 0, %s22, %s20
  $region1: #{tpu_custom_call.1} parent=0
    #allocation2 [shape = 'u8[4096]{0}', space=vmem, size = 0x1000, scoped, tag = 'input window, operand 0, single buffered']
    #allocation3 [shape = 's32[1]{0}', space=sflag, size = 0x4, scoped, tag = 'scoped memory for tpu_custom_call.1']
    #allocation4 [shape = 's32[1]{0}', space=sflag, size = 0x4, scoped, tag = 'scoped memory for tpu_custom_call.1']
    #allocation5 [shape = 'u8[32768]{0}', space=vmem, size = 0x8000, scoped, tag = 'input window, operand 1, single buffered']
    #allocation6 [shape = 's32[1]{0}', space=sflag, size = 0x4, scoped, tag = 'scoped memory for tpu_custom_call.1']
    #allocation7 [shape = 'u8[512]{0}', space=vmem, size = 0x400, scoped, tag = 'input window, operand 2, single buffered']
    #allocation8 [shape = 'u8[512]{0}', space=vmem, size = 0x400, scoped, tag = 'input window, operand 3, single buffered']
    #allocation9 [shape = 's32[1]{0}', space=sflag, size = 0x4, scoped, tag = 'scoped memory for tpu_custom_call.1']
    #allocation10 [shape = 'u8[512]{0}', space=vmem, size = 0x400, scoped, tag = 'input window, operand 4, single buffered']
    #allocation11 [shape = 'u8[32768]{0}', space=vmem, size = 0x8000, scoped, tag = 'input window, operand 5, single buffered']
    #allocation12 [shape = 's32[1]{0}', space=sflag, size = 0x4, scoped, tag = 'scoped memory for tpu_custom_call.1']
    #allocation13 [shape = 'u8[512]{0}', space=vmem, size = 0x400, scoped, tag = 'input window, operand 6, single buffered']
    #allocation14 [shape = 'u8[512]{0}', space=vmem, size = 0x400, scoped, tag = 'input window, operand 7, single buffered']
    #allocation15 [shape = 's32[1]{0}', space=sflag, size = 0x4, scoped, tag = 'scoped memory for tpu_custom_call.1']
    #allocation16 [shape = 'u8[512]{0}', space=vmem, size = 0x400, scoped, tag = 'input window, operand 8, single buffered']
    #allocation17 [shape = 'u8[65536]{0}', space=vmem, size = 0x10000, scoped, tag = 'input window, operand 9, single buffered']
    #allocation18 [shape = 's32[1]{0}', space=sflag, size = 0x4, scoped, tag = 'scoped memory for tpu_custom_call.1']
    #allocation19 [shape = 'u8[65536]{0}', space=vmem, size = 0x10000, scoped, tag = 'input window, operand 13, single buffered']
    #allocation20 [shape = 'u8[32768]{0}', space=vmem, size = 0x8000, scoped, tag = 'input window, operand 17, single buffered']
    #allocation21 [shape = 's32[1]{0}', space=sflag, size = 0x4, scoped, tag = 'scoped memory for tpu_custom_call.1']
    #allocation22 [shape = 'u8[8192]{0}', space=vmem, size = 0x2000, scoped, tag = 'output window, operand 0, single buffered']
    %24 = vsyncpa [#allocation3], 0
    %25 = vsyncpa [#allocation6], 0
    %26 = vsyncpa [#allocation9], 0
    %27 = vsyncpa [#allocation12], 0
    %28 = vsyncpa [#allocation15], 0
    %29 = vsyncpa [#allocation18], 0
    %30 = vsyncpa [#allocation21], 0
    %31 = vsyncpa [#allocation4], 0
    // Predicated region
    $region2: #{tpu_custom_call.1} parent=1 // pred_check
      _
    $region3: #{tpu_custom_call.1} parent=1 // pred_check_branch
      %33 = sbr.rel (0) target = $region5
    $region4: #{tpu_custom_call.1} parent=1 // pred_region
      %35 = vsyncadd [#allocation3], 0
      %s36 = sshll.u32 %s0, 4
      %s37 = int_to_ptr.hbm [resolvable:$true] %s36
      %s38 = sshll.u32 [#allocation2], 4
      %s39 = int_to_ptr.vmem [resolvable:$true] %s38
      %44 = dma.hbm_to_vmem [thread:$0]  %s37, 128, %s39, [#allocation3], 64, 64, 4
    $region5: #{tpu_custom_call.1} parent=1 // pred_fallthru
      _
    // Predicated region
    $region6: #{tpu_custom_call.1} parent=1 // pred_check
      _
    $region7: #{tpu_custom_call.1} parent=1 // pred_check_branch
      %46 = sbr.rel (0) target = $region9
    $region8: #{tpu_custom_call.1} parent=1 // pred_region
      %48 = vsyncadd [#allocation6], 0
      %s49 = sshll.u32 %s1, 4
      %s50 = int_to_ptr.hbm [resolvable:$true] %s49
      %s51 = sshll.u32 [#allocation5], 4
      %s52 = int_to_ptr.vmem [resolvable:$true] %s51
      %57 = dma.hbm_to_vmem [thread:$0]  %s50, 1024, %s52, [#allocation6], 64, 64, 4
    $region9: #{tpu_custom_call.1} parent=1 // pred_fallthru
      _
    // Predicated region
    $region10: #{tpu_custom_call.1} parent=1 // pred_check
      _
    $region11: #{tpu_custom_call.1} parent=1 // pred_check_branch
      %59 = sbr.rel (0) target = $region13
    $region12: #{tpu_custom_call.1} parent=1 // pred_region
      %61 = vsyncadd [#allocation6], 0
      %s63 = sshll.u32 %s2, 4
      %s64 = int_to_ptr.hbm [resolvable:$true] %s63
      %s65 = sshll.u32 [#allocation7], 4
      %s66 = int_to_ptr.vmem [resolvable:$true] %s65
      %68 = dma.hbm_to_vmem [thread:$0]  %s64, 16, %s66, [#allocation6]
    $region13: #{tpu_custom_call.1} parent=1 // pred_fallthru
      _
    // Predicated region
    $region14: #{tpu_custom_call.1} parent=1 // pred_check
      _
    $region15: #{tpu_custom_call.1} parent=1 // pred_check_branch
      %70 = sbr.rel (0) target = $region17
    $region16: #{tpu_custom_call.1} parent=1 // pred_region
      %72 = vsyncadd [#allocation9], 0
      %s74 = sshll.u32 %s3, 4
      %s75 = int_to_ptr.hbm [resolvable:$true] %s74
      %s76 = sshll.u32 [#allocation8], 4
      %s77 = int_to_ptr.vmem [resolvable:$true] %s76
      %79 = dma.hbm_to_vmem [thread:$0]  %s75, 16, %s77, [#allocation9]
    $region17: #{tpu_custom_call.1} parent=1 // pred_fallthru
      _
    // Predicated region
    $region18: #{tpu_custom_call.1} parent=1 // pred_check
      _
    $region19: #{tpu_custom_call.1} parent=1 // pred_check_branch
      %81 = sbr.rel (0) target = $region21
    $region20: #{tpu_custom_call.1} parent=1 // pred_region
      %83 = vsyncadd [#allocation9], 0
      %s85 = sshll.u32 %s4, 4
      %s86 = int_to_ptr.hbm [resolvable:$true] %s85
      %s87 = sshll.u32 [#allocation10], 4
      %s88 = int_to_ptr.vmem [resolvable:$true] %s87
      %90 = dma.hbm_to_vmem [thread:$0]  %s86, 16, %s88, [#allocation9]
    $region21: #{tpu_custom_call.1} parent=1 // pred_fallthru
      _
    // Predicated region
    $region22: #{tpu_custom_call.1} parent=1 // pred_check
      _
    $region23: #{tpu_custom_call.1} parent=1 // pred_check_branch
      %92 = sbr.rel (0) target = $region25
    $region24: #{tpu_custom_call.1} parent=1 // pred_region
      %94 = vsyncadd [#allocation12], 0
      %s95 = sshll.u32 %s5, 4
      %s96 = int_to_ptr.hbm [resolvable:$true] %s95
      %s97 = sshll.u32 [#allocation11], 4
      %s98 = int_to_ptr.vmem [resolvable:$true] %s97
      %103 = dma.hbm_to_vmem [thread:$0]  %s96, 1024, %s98, [#allocation12], 64, 64, 4
    $region25: #{tpu_custom_call.1} parent=1 // pred_fallthru
      _
    // Predicated region
    $region26: #{tpu_custom_call.1} parent=1 // pred_check
      _
    $region27: #{tpu_custom_call.1} parent=1 // pred_check_branch
      %105 = sbr.rel (0) target = $region29
    $region28: #{tpu_custom_call.1} parent=1 // pred_region
      %107 = vsyncadd [#allocation12], 0
      %s109 = sshll.u32 %s6, 4
      %s110 = int_to_ptr.hbm [resolvable:$true] %s109
      %s111 = sshll.u32 [#allocation13], 4
      %s112 = int_to_ptr.vmem [resolvable:$true] %s111
      %114 = dma.hbm_to_vmem [thread:$0]  %s110, 16, %s112, [#allocation12]
    $region29: #{tpu_custom_call.1} parent=1 // pred_fallthru
      _
    // Predicated region
    $region30: #{tpu_custom_call.1} parent=1 // pred_check
      _
    $region31: #{tpu_custom_call.1} parent=1 // pred_check_branch
      %116 = sbr.rel (0) target = $region33
    $region32: #{tpu_custom_call.1} parent=1 // pred_region
      %118 = vsyncadd [#allocation15], 0
      %s120 = sshll.u32 %s7, 4
      %s121 = int_to_ptr.hbm [resolvable:$true] %s120
      %s122 = sshll.u32 [#allocation14], 4
      %s123 = int_to_ptr.vmem [resolvable:$true] %s122
      %125 = dma.hbm_to_vmem [thread:$0]  %s121, 16, %s123, [#allocation15]
    $region33: #{tpu_custom_call.1} parent=1 // pred_fallthru
      _
    // Predicated region
    $region34: #{tpu_custom_call.1} parent=1 // pred_check
      _
    $region35: #{tpu_custom_call.1} parent=1 // pred_check_branch
      %127 = sbr.rel (0) target = $region37
    $region36: #{tpu_custom_call.1} parent=1 // pred_region
      %129 = vsyncadd [#allocation15], 0
      %s131 = sshll.u32 %s8, 4
      %s132 = int_to_ptr.hbm [resolvable:$true] %s131
      %s133 = sshll.u32 [#allocation16], 4
      %s134 = int_to_ptr.vmem [resolvable:$true] %s133
      %136 = dma.hbm_to_vmem [thread:$0]  %s132, 16, %s134, [#allocation15]
    $region37: #{tpu_custom_call.1} parent=1 // pred_fallthru
      _
    // Predicated region
    $region38: #{tpu_custom_call.1} parent=1 // pred_check
      _
    $region39: #{tpu_custom_call.1} parent=1 // pred_check_branch
      %138 = sbr.rel (0) target = $region41
    $region40: #{tpu_custom_call.1} parent=1 // pred_region
      %140 = vsyncadd [#allocation18], 0
      %s141 = sshll.u32 %s9, 4
      %s142 = int_to_ptr.hbm [resolvable:$true] %s141
      %s143 = sshll.u32 [#allocation17], 4
      %s144 = int_to_ptr.vmem [resolvable:$true] %s143
      %149 = dma.hbm_to_vmem [thread:$0]  %s142, 2048, %s144, [#allocation18], 64, 64, 4
    $region41: #{tpu_custom_call.1} parent=1 // pred_fallthru
      _
    // Predicated region
    $region42: #{tpu_custom_call.1} parent=1 // pred_check
      _
    $region43: #{tpu_custom_call.1} parent=1 // pred_check_branch
      %151 = sbr.rel (0) target = $region45
    $region44: #{tpu_custom_call.1} parent=1 // pred_region
      _
    $region45: #{tpu_custom_call.1} parent=1 // pred_fallthru
      _
    // Predicated region
    $region46: #{tpu_custom_call.1} parent=1 // pred_check
      _
    $region47: #{tpu_custom_call.1} parent=1 // pred_check_branch
      %153 = sbr.rel (0) target = $region49
    $region48: #{tpu_custom_call.1} parent=1 // pred_region
      _
    $region49: #{tpu_custom_call.1} parent=1 // pred_fallthru
      _
    // Predicated region
    $region50: #{tpu_custom_call.1} parent=1 // pred_check
      _
    $region51: #{tpu_custom_call.1} parent=1 // pred_check_branch
      %155 = sbr.rel (0) target = $region53
    $region52: #{tpu_custom_call.1} parent=1 // pred_region
      _
    $region53: #{tpu_custom_call.1} parent=1 // pred_fallthru
      _
    // Predicated region
    $region54: #{tpu_custom_call.1} parent=1 // pred_check
      _
    $region55: #{tpu_custom_call.1} parent=1 // pred_check_branch
      %157 = sbr.rel (0) target = $region57
    $region56: #{tpu_custom_call.1} parent=1 // pred_region
      %159 = vsyncadd [#allocation18], 0
      %s160 = sshll.u32 %s13, 4
      %s161 = int_to_ptr.hbm [resolvable:$true] %s160
      %s162 = sshll.u32 [#allocation19], 4
      %s163 = int_to_ptr.vmem [resolvable:$true] %s162
      %168 = dma.hbm_to_vmem [thread:$0]  %s161, 2048, %s163, [#allocation18], 64, 64, 4
    $region57: #{tpu_custom_call.1} parent=1 // pred_fallthru
      _
    // Predicated region
    $region58: #{tpu_custom_call.1} parent=1 // pred_check
      _
    $region59: #{tpu_custom_call.1} parent=1 // pred_check_branch
      %170 = sbr.rel (0) target = $region61
    $region60: #{tpu_custom_call.1} parent=1 // pred_region
      _
    $region61: #{tpu_custom_call.1} parent=1 // pred_fallthru
      _
    // Predicated region
    $region62: #{tpu_custom_call.1} parent=1 // pred_check
      _
    $region63: #{tpu_custom_call.1} parent=1 // pred_check_branch
      %172 = sbr.rel (0) target = $region65
    $region64: #{tpu_custom_call.1} parent=1 // pred_region
      _
    $region65: #{tpu_custom_call.1} parent=1 // pred_fallthru
      _
    // Predicated region
    $region66: #{tpu_custom_call.1} parent=1 // pred_check
      _
    $region67: #{tpu_custom_call.1} parent=1 // pred_check_branch
      %174 = sbr.rel (0) target = $region69
    $region68: #{tpu_custom_call.1} parent=1 // pred_region
      _
    $region69: #{tpu_custom_call.1} parent=1 // pred_fallthru
      _
    // Predicated region
    $region70: #{tpu_custom_call.1} parent=1 // pred_check
      _
    $region71: #{tpu_custom_call.1} parent=1 // pred_check_branch
      %176 = sbr.rel (0) target = $region73
    $region72: #{tpu_custom_call.1} parent=1 // pred_region
      %178 = vsyncadd [#allocation21], 0
      %s179 = sshll.u32 %s17, 4
      %s180 = int_to_ptr.hbm [resolvable:$true] %s179
      %s181 = sshll.u32 [#allocation20], 4
      %s182 = int_to_ptr.vmem [resolvable:$true] %s181
      %187 = dma.hbm_to_vmem [thread:$0]  %s180, 1024, %s182, [#allocation21], 64, 64, 4
    $region73: #{tpu_custom_call.1} parent=1 // pred_fallthru
      _
    // Predicated region
    $region74: #{tpu_custom_call.1} parent=1 // pred_check
      _
    $region75: #{tpu_custom_call.1} parent=1 // pred_check_branch
      %189 = sbr.rel (0) target = $region77
    $region76: #{tpu_custom_call.1} parent=1 // pred_region
      _
    $region77: #{tpu_custom_call.1} parent=1 // pred_fallthru
      _
    // Predicated region
    $region78: #{tpu_custom_call.1} parent=1 // pred_check
      _
    $region79: #{tpu_custom_call.1} parent=1 // pred_check_branch
      %191 = sbr.rel (0) target = $region81
    $region80: #{tpu_custom_call.1} parent=1 // pred_region
      %193 = dma.done [#allocation3], 128
    $region81: #{tpu_custom_call.1} parent=1 // pred_fallthru
      _
    // Predicated region
    $region82: #{tpu_custom_call.1} parent=1 // pred_check
      _
    $region83: #{tpu_custom_call.1} parent=1 // pred_check_branch
      %195 = sbr.rel (0) target = $region85
    $region84: #{tpu_custom_call.1} parent=1 // pred_region
      %197 = dma.done [#allocation6], 1024
    $region85: #{tpu_custom_call.1} parent=1 // pred_fallthru
      _
    // Predicated region
    $region86: #{tpu_custom_call.1} parent=1 // pred_check
      _
    $region87: #{tpu_custom_call.1} parent=1 // pred_check_branch
      %199 = sbr.rel (0) target = $region89
    $region88: #{tpu_custom_call.1} parent=1 // pred_region
      %201 = dma.done [#allocation6], 16
    $region89: #{tpu_custom_call.1} parent=1 // pred_fallthru
      _
    // Predicated region
    $region90: #{tpu_custom_call.1} parent=1 // pred_check
      _
    $region91: #{tpu_custom_call.1} parent=1 // pred_check_branch
      %203 = sbr.rel (0) target = $region93
    $region92: #{tpu_custom_call.1} parent=1 // pred_region
      %205 = dma.done [#allocation9], 16
    $region93: #{tpu_custom_call.1} parent=1 // pred_fallthru
      _
    // Predicated region
    $region94: #{tpu_custom_call.1} parent=1 // pred_check
      _
    $region95: #{tpu_custom_call.1} parent=1 // pred_check_branch
      %207 = sbr.rel (0) target = $region97
    $region96: #{tpu_custom_call.1} parent=1 // pred_region
      %209 = dma.done [#allocation9], 16
    $region97: #{tpu_custom_call.1} parent=1 // pred_fallthru
      _
    // Predicated region
    $region98: #{tpu_custom_call.1} parent=1 // pred_check
      _
    $region99: #{tpu_custom_call.1} parent=1 // pred_check_branch
      %211 = sbr.rel (0) target = $region101
    $region100: #{tpu_custom_call.1} parent=1 // pred_region
      %213 = dma.done [#allocation12], 1024
    $region101: #{tpu_custom_call.1} parent=1 // pred_fallthru
      _
    // Predicated region
    $region102: #{tpu_custom_call.1} parent=1 // pred_check
      _
    $region103: #{tpu_custom_call.1} parent=1 // pred_check_branch
      %215 = sbr.rel (0) target = $region105
    $region104: #{tpu_custom_call.1} parent=1 // pred_region
      %217 = dma.done [#allocation12], 16
    $region105: #{tpu_custom_call.1} parent=1 // pred_fallthru
      _
    // Predicated region
    $region106: #{tpu_custom_call.1} parent=1 // pred_check
      _
    $region107: #{tpu_custom_call.1} parent=1 // pred_check_branch
      %219 = sbr.rel (0) target = $region109
    $region108: #{tpu_custom_call.1} parent=1 // pred_region
      %221 = dma.done [#allocation15], 16
    $region109: #{tpu_custom_call.1} parent=1 // pred_fallthru
      _
    // Predicated region
    $region110: #{tpu_custom_call.1} parent=1 // pred_check
      _
    $region111: #{tpu_custom_call.1} parent=1 // pred_check_branch
      %223 = sbr.rel (0) target = $region113
    $region112: #{tpu_custom_call.1} parent=1 // pred_region
      %225 = dma.done [#allocation15], 16
    $region113: #{tpu_custom_call.1} parent=1 // pred_fallthru
      _
    // Predicated region
    $region114: #{tpu_custom_call.1} parent=1 // pred_check
      _
    $region115: #{tpu_custom_call.1} parent=1 // pred_check_branch
      %227 = sbr.rel (0) target = $region117
    $region116: #{tpu_custom_call.1} parent=1 // pred_region
      %229 = dma.done [#allocation18], 2048
    $region117: #{tpu_custom_call.1} parent=1 // pred_fallthru
      _
    // Predicated region
    $region118: #{tpu_custom_call.1} parent=1 // pred_check
      _
    $region119: #{tpu_custom_call.1} parent=1 // pred_check_branch
      %231 = sbr.rel (0) target = $region121
    $region120: #{tpu_custom_call.1} parent=1 // pred_region
      %233 = dma.done [#allocation18], 2048
    $region121: #{tpu_custom_call.1} parent=1 // pred_fallthru
      _
    // Predicated region
    $region122: #{tpu_custom_call.1} parent=1 // pred_check
      _
    $region123: #{tpu_custom_call.1} parent=1 // pred_check_branch
      %235 = sbr.rel (0) target = $region125
    $region124: #{tpu_custom_call.1} parent=1 // pred_region
      %237 = dma.done [#allocation21], 1024
    $region125: #{tpu_custom_call.1} parent=1 // pred_fallthru
      _
    %v238 = vld [vmem:[#allocation2] sm:$0xf]
    %v239 = vld [vmem:[#allocation2 + $0x4] sm:$0xf]
    %v240 = vld [vmem:[#allocation5] sm:$0xf]
    %v241 = vld [vmem:[#allocation5 + $0x4] sm:$0xf]
    %v242 = vld [vmem:[#allocation5 + $0x8] sm:$0xf]
    %v243 = vld [vmem:[#allocation5 + $0xc] sm:$0xf]
    %v244 = vld [vmem:[#allocation5 + $0x10] sm:$0xf]
    %v245 = vld [vmem:[#allocation5 + $0x14] sm:$0xf]
    %v246 = vld [vmem:[#allocation5 + $0x18] sm:$0xf]
    %v247 = vld [vmem:[#allocation5 + $0x1c] sm:$0xf]
    %v248 = vld [vmem:[#allocation5 + $0x20] sm:$0xf]
    %v249 = vld [vmem:[#allocation5 + $0x24] sm:$0xf]
    %v250 = vld [vmem:[#allocation5 + $0x28] sm:$0xf]
    %v251 = vld [vmem:[#allocation5 + $0x2c] sm:$0xf]
    %v252 = vld [vmem:[#allocation5 + $0x30] sm:$0xf]
    %v253 = vld [vmem:[#allocation5 + $0x34] sm:$0xf]
    %v254 = vld [vmem:[#allocation5 + $0x38] sm:$0xf]
    %v255 = vld [vmem:[#allocation5 + $0x3c] sm:$0xf]
    %v256 = vld [vmem:[#allocation7] sm:$0x1]
    %v258 = vperm.slane %v256, 0
    %v262 = vunpack.c.l.b16 %v238
    %v263 = vunpack.c.l.b16 %v239
    %v264 = vpack.c.b16 %v263, %v262
    %v282 = vunpack.c.l.b16 %v240
    %v283 = vunpack.c.l.b16 %v241
    %v284 = vunpack.c.l.b16 %v242
    %v285 = vunpack.c.l.b16 %v243
    %v286 = vunpack.c.l.b16 %v244
    %v287 = vunpack.c.l.b16 %v245
    %v288 = vunpack.c.l.b16 %v246
    %v289 = vunpack.c.l.b16 %v247
    %v290 = vunpack.c.l.b16 %v248
    %v291 = vunpack.c.l.b16 %v249
    %v292 = vunpack.c.l.b16 %v250
    %v293 = vunpack.c.l.b16 %v251
    %v294 = vunpack.c.l.b16 %v252
    %v295 = vunpack.c.l.b16 %v253
    %v296 = vunpack.c.l.b16 %v254
    %v297 = vunpack.c.l.b16 %v255
    %v298 = vpack.c.b16 %v283, %v282
    %v299 = vpack.c.b16 %v285, %v284
    %v300 = vpack.c.b16 %v287, %v286
    %v301 = vpack.c.b16 %v289, %v288
    %v302 = vpack.c.b16 %v291, %v290
    %v303 = vpack.c.b16 %v293, %v292
    %v304 = vpack.c.b16 %v295, %v294
    %v305 = vpack.c.b16 %v297, %v296
    %314 = vmatpush.bf16.msra.mxu0 %v305
    %315 = vmatpush.bf16.msra.mxu0 %v304
    %316 = vmatpush.bf16.msra.mxu0 %v303
    %317 = vmatpush.bf16.msra.mxu0 %v302
    %318 = vmatpush.bf16.msra.mxu0 %v301
    %319 = vmatpush.bf16.msra.mxu0 %v300
    %320 = vmatpush.bf16.msra.mxu0 %v299
    %321 = vmatpush.bf16.msra.mxu0 %v298
    %322 = vmatmul.bf16.gmra.mxu0 %v264
    %v323 = vpop.f32.mrf.mxu0
    %v324 = vadd.f32 %v258, %v323
    %v325 = vpop.f32.mrf.mxu0
    %v326 = vadd.f32 %v258, %v325
    %327 = vdwg.mxu0
    %v328 = vld [vmem:[#allocation8] sm:$0x1]
    %v329 = vld [vmem:[#allocation10] sm:$0x1]
    %v330 = vlaneseq
    %v331 = vshrl.u32 %v330, 7
    %v332 = vadd.s32 %v331, 8
    %vm333 = vcmp.lt.s32.totalorder %v331, 8
    %vm334 = vcmp.lt.s32.totalorder %v332, 8
    %v335 = vsel %vm333, 1, 0
    %v336 = vsel %vm334, 1, 0
    %v337 = vcvt.s32.f32 %v335
    %v338 = vcvt.s32.f32 %v336
    %v339 = vmul.f32 %v324, %v337
    %v340 = vmul.f32 %v326, %v338
    %v341 = vadd.f32 %v339, %v340
    %v342 = vrot.slane %v341, 4
    %v343 = vadd.f32 %v341, %v342
    %v344 = vrot.slane %v343, 2
    %v345 = vadd.f32 %v343, %v344
    %v346 = vrot.slane %v345, 1
    %v347 = vadd.f32 %v345, %v346
    %v348 = vmul.f32 %v347, 0.125
    %v349 = vsub.f32 %v324, %v348
    %v350 = vsub.f32 %v326, %v348
    %v351 = vmul.f32 %v349, %v337
    %v352 = vmul.f32 %v350, %v338
    %v353 = vmul.f32 %v351, %v351
    %v354 = vmul.f32 %v352, %v352
    %v355 = vadd.f32 %v353, %v354
    %v356 = vrot.slane %v355, 4
    %v357 = vadd.f32 %v355, %v356
    %v358 = vrot.slane %v357, 2
    %v359 = vadd.f32 %v357, %v358
    %v360 = vrot.slane %v359, 1
    %v361 = vadd.f32 %v359, %v360
    %v362 = vmul.f32 %v361, 0.125
    %v363 = vadd.f32 %v362, 1e-05
    %v364 = vrsqrt.pop %v363
    %v365 = vmul.f32 %v364, %v363
    %v366 = vmul.f32 %v365, %v364
    %v367 = vmul.f32 0.5, %v366
    %v368 = vsub.f32 1.5, %v367
    %v369 = vmul.f32 %v364, %v368
    %vm370 = vweird.f32 %v363
    %vm371 = vweird.f32 %v364
    %vm372 = vmor %vm370, %vm371
    %v373 = vsel %vm372, %v364, %v369
    %v374 = vmul.f32 %v349, %v373
    %v375 = vmul.f32 %v350, %v373
    %v377 = vperm.slane %v328, 0
    %v379 = vmul.f32 %v374, %v377
    %v380 = vmul.f32 %v375, %v377
    %v382 = vperm.slane %v329, 0
    %v384 = vadd.f32 %v379, %v382
    %v385 = vadd.f32 %v380, %v382
    %v386 = vmul.f32 %v384, 0.5
    %v387 = vmul.f32 %v385, 0.5
    %v388 = vmul.f32 %v384, 0.044715
    %v389 = vmul.f32 %v385, 0.044715
    %v390 = vmul.f32 %v388, %v384
    %v391 = vmul.f32 %v389, %v385
    %v392 = vmul.f32 %v390, %v384
    %v393 = vmul.f32 %v391, %v385
    %v394 = vadd.f32 %v384, %v392
    %v395 = vadd.f32 %v385, %v393
    %v396 = vmul.f32 %v394, 0.7978846
    %v397 = vmul.f32 %v395, 0.7978846
    %v398 = vtanh.pop %v396
    %v399 = vtanh.pop %v397
    %v400 = vadd.f32 %v398, 1.0
    %v401 = vadd.f32 %v399, 1.0
    %v402 = vmul.f32 %v386, %v400
    %v403 = vmul.f32 %v387, %v401
    %v404 = vld [vmem:[#allocation11] sm:$0xf]
    %v405 = vld [vmem:[#allocation11 + $0x4] sm:$0xf]
    %v406 = vld [vmem:[#allocation11 + $0x8] sm:$0xf]
    %v407 = vld [vmem:[#allocation11 + $0xc] sm:$0xf]
    %v408 = vld [vmem:[#allocation11 + $0x10] sm:$0xf]
    %v409 = vld [vmem:[#allocation11 + $0x14] sm:$0xf]
    %v410 = vld [vmem:[#allocation11 + $0x18] sm:$0xf]
    %v411 = vld [vmem:[#allocation11 + $0x1c] sm:$0xf]
    %v412 = vld [vmem:[#allocation11 + $0x20] sm:$0xf]
    %v413 = vld [vmem:[#allocation11 + $0x24] sm:$0xf]
    %v414 = vld [vmem:[#allocation11 + $0x28] sm:$0xf]
    %v415 = vld [vmem:[#allocation11 + $0x2c] sm:$0xf]
    %v416 = vld [vmem:[#allocation11 + $0x30] sm:$0xf]
    %v417 = vld [vmem:[#allocation11 + $0x34] sm:$0xf]
    %v418 = vld [vmem:[#allocation11 + $0x38] sm:$0xf]
    %v419 = vld [vmem:[#allocation11 + $0x3c] sm:$0xf]
    %v420 = vpack.c.bf16 %v403, %v402
    %v421 = vld [vmem:[#allocation13] sm:$0x1]
    %v423 = vperm.slane %v421, 0
    %v441 = vunpack.c.l.b16 %v404
    %v442 = vunpack.c.l.b16 %v405
    %v443 = vunpack.c.l.b16 %v406
    %v444 = vunpack.c.l.b16 %v407
    %v445 = vunpack.c.l.b16 %v408
    %v446 = vunpack.c.l.b16 %v409
    %v447 = vunpack.c.l.b16 %v410
    %v448 = vunpack.c.l.b16 %v411
    %v449 = vunpack.c.l.b16 %v412
    %v450 = vunpack.c.l.b16 %v413
    %v451 = vunpack.c.l.b16 %v414
    %v452 = vunpack.c.l.b16 %v415
    %v453 = vunpack.c.l.b16 %v416
    %v454 = vunpack.c.l.b16 %v417
    %v455 = vunpack.c.l.b16 %v418
    %v456 = vunpack.c.l.b16 %v419
    %v457 = vpack.c.b16 %v442, %v441
    %v458 = vpack.c.b16 %v444, %v443
    %v459 = vpack.c.b16 %v446, %v445
    %v460 = vpack.c.b16 %v448, %v447
    %v461 = vpack.c.b16 %v450, %v449
    %v462 = vpack.c.b16 %v452, %v451
    %v463 = vpack.c.b16 %v454, %v453
    %v464 = vpack.c.b16 %v456, %v455
    %473 = vmatpush.bf16.msra.mxu0 %v464
    %474 = vmatpush.bf16.msra.mxu0 %v463
    %475 = vmatpush.bf16.msra.mxu0 %v462
    %476 = vmatpush.bf16.msra.mxu0 %v461
    %477 = vmatpush.bf16.msra.mxu0 %v460
    %478 = vmatpush.bf16.msra.mxu0 %v459
    %479 = vmatpush.bf16.msra.mxu0 %v458
    %480 = vmatpush.bf16.msra.mxu0 %v457
    %481 = vmatmul.bf16.gmra.mxu0 %v420
    %v482 = vpop.f32.mrf.mxu0
    %v483 = vadd.f32 %v423, %v482
    %v484 = vpop.f32.mrf.mxu0
    %v485 = vadd.f32 %v423, %v484
    %486 = vdwg.mxu0
    %v487 = vld [vmem:[#allocation14] sm:$0x1]
    %v488 = vld [vmem:[#allocation16] sm:$0x1]
    %v489 = vmul.f32 %v483, %v337
    %v490 = vmul.f32 %v485, %v338
    %v491 = vadd.f32 %v489, %v490
    %v492 = vrot.slane %v491, 4
    %v493 = vadd.f32 %v491, %v492
    %v494 = vrot.slane %v493, 2
    %v495 = vadd.f32 %v493, %v494
    %v496 = vrot.slane %v495, 1
    %v497 = vadd.f32 %v495, %v496
    %v498 = vmul.f32 %v497, 0.125
    %v499 = vsub.f32 %v483, %v498
    %v500 = vsub.f32 %v485, %v498
    %v501 = vmul.f32 %v499, %v337
    %v502 = vmul.f32 %v500, %v338
    %v503 = vmul.f32 %v501, %v501
    %v504 = vmul.f32 %v502, %v502
    %v505 = vadd.f32 %v503, %v504
    %v506 = vrot.slane %v505, 4
    %v507 = vadd.f32 %v505, %v506
    %v508 = vrot.slane %v507, 2
    %v509 = vadd.f32 %v507, %v508
    %v510 = vrot.slane %v509, 1
    %v511 = vadd.f32 %v509, %v510
    %v512 = vmul.f32 %v511, 0.125
    %v513 = vadd.f32 %v512, 1e-05
    %v514 = vrsqrt.pop %v513
    %v515 = vmul.f32 %v514, %v513
    %v516 = vmul.f32 %v515, %v514
    %v517 = vmul.f32 0.5, %v516
    %v518 = vsub.f32 1.5, %v517
    %v519 = vmul.f32 %v514, %v518
    %vm520 = vweird.f32 %v513
    %vm521 = vweird.f32 %v514
    %vm522 = vmor %vm520, %vm521
    %v523 = vsel %vm522, %v514, %v519
    %v524 = vmul.f32 %v499, %v523
    %v525 = vmul.f32 %v500, %v523
    %v527 = vperm.slane %v487, 0
    %v529 = vmul.f32 %v524, %v527
    %v530 = vmul.f32 %v525, %v527
    %v532 = vperm.slane %v488, 0
    %v534 = vadd.f32 %v529, %v532
    %v535 = vadd.f32 %v530, %v532
    %v536 = vmul.f32 %v534, 0.5
    %v537 = vmul.f32 %v535, 0.5
    %v538 = vmul.f32 %v534, 0.044715
    %v539 = vmul.f32 %v535, 0.044715
    %v540 = vmul.f32 %v538, %v534
    %v541 = vmul.f32 %v539, %v535
    %v542 = vmul.f32 %v540, %v534
    %v543 = vmul.f32 %v541, %v535
    %v544 = vadd.f32 %v534, %v542
    %v545 = vadd.f32 %v535, %v543
    %v546 = vmul.f32 %v544, 0.7978846
    %v547 = vmul.f32 %v545, 0.7978846
    %v548 = vtanh.pop %v546
    %v549 = vtanh.pop %v547
    %v550 = vadd.f32 %v548, 1.0
    %v551 = vadd.f32 %v549, 1.0
    %v552 = vmul.f32 %v536, %v550
    %v553 = vmul.f32 %v537, %v551
    %v554 = vld [vmem:[#allocation17] sm:$0xf]
    %v555 = vld [vmem:[#allocation17 + $0x4] sm:$0xf]
    %v556 = vld [vmem:[#allocation17 + $0x8] sm:$0xf]
    %v557 = vld [vmem:[#allocation17 + $0xc] sm:$0xf]
    %v558 = vld [vmem:[#allocation17 + $0x10] sm:$0xf]
    %v559 = vld [vmem:[#allocation17 + $0x14] sm:$0xf]
    %v560 = vld [vmem:[#allocation17 + $0x18] sm:$0xf]
    %v561 = vld [vmem:[#allocation17 + $0x1c] sm:$0xf]
    %v562 = vld [vmem:[#allocation17 + $0x20] sm:$0xf]
    %v563 = vld [vmem:[#allocation17 + $0x24] sm:$0xf]
    %v564 = vld [vmem:[#allocation17 + $0x28] sm:$0xf]
    %v565 = vld [vmem:[#allocation17 + $0x2c] sm:$0xf]
    %v566 = vld [vmem:[#allocation17 + $0x30] sm:$0xf]
    %v567 = vld [vmem:[#allocation17 + $0x34] sm:$0xf]
    %v568 = vld [vmem:[#allocation17 + $0x38] sm:$0xf]
    %v569 = vld [vmem:[#allocation17 + $0x3c] sm:$0xf]
    %v570 = vpack.c.bf16 %v553, %v552
    %v571 = vld [vmem:[%s10] sm:$0x1]
    %v573 = vperm.slane %v571, 0
    %v591 = vunpack.c.l.b16 %v554
    %v592 = vunpack.c.l.b16 %v555
    %v593 = vunpack.c.l.b16 %v556
    %v594 = vunpack.c.l.b16 %v557
    %v595 = vunpack.c.l.b16 %v558
    %v596 = vunpack.c.l.b16 %v559
    %v597 = vunpack.c.l.b16 %v560
    %v598 = vunpack.c.l.b16 %v561
    %v599 = vunpack.c.l.b16 %v562
    %v600 = vunpack.c.l.b16 %v563
    %v601 = vunpack.c.l.b16 %v564
    %v602 = vunpack.c.l.b16 %v565
    %v603 = vunpack.c.l.b16 %v566
    %v604 = vunpack.c.l.b16 %v567
    %v605 = vunpack.c.l.b16 %v568
    %v606 = vunpack.c.l.b16 %v569
    %v607 = vpack.c.b16 %v592, %v591
    %v608 = vpack.c.b16 %v594, %v593
    %v609 = vpack.c.b16 %v596, %v595
    %v610 = vpack.c.b16 %v598, %v597
    %v611 = vpack.c.b16 %v600, %v599
    %v612 = vpack.c.b16 %v602, %v601
    %v613 = vpack.c.b16 %v604, %v603
    %v614 = vpack.c.b16 %v606, %v605
    %623 = vmatpush.bf16.msra.mxu0 %v614
    %624 = vmatpush.bf16.msra.mxu0 %v613
    %625 = vmatpush.bf16.msra.mxu0 %v612
    %626 = vmatpush.bf16.msra.mxu0 %v611
    %627 = vmatpush.bf16.msra.mxu0 %v610
    %628 = vmatpush.bf16.msra.mxu0 %v609
    %629 = vmatpush.bf16.msra.mxu0 %v608
    %630 = vmatpush.bf16.msra.mxu0 %v607
    %631 = vmatmul.bf16.gmra.mxu0 %v570
    %v632 = vpop.f32.mrf.mxu0
    %v633 = vadd.f32 %v573, %v632
    %v634 = vpop.f32.mrf.mxu0
    %v635 = vadd.f32 %v573, %v634
    %636 = vdwg.mxu0
    %v637 = vld [vmem:[%s11] sm:$0x1]
    %v638 = vld [vmem:[%s12] sm:$0x1]
    %v639 = vmul.f32 %v633, %v337
    %v640 = vmul.f32 %v635, %v338
    %v641 = vadd.f32 %v639, %v640
    %v642 = vrot.slane %v641, 4
    %v643 = vadd.f32 %v641, %v642
    %v644 = vrot.slane %v643, 2
    %v645 = vadd.f32 %v643, %v644
    %v646 = vrot.slane %v645, 1
    %v647 = vadd.f32 %v645, %v646
    %v648 = vmul.f32 %v647, 0.125
    %v649 = vsub.f32 %v633, %v648
    %v650 = vsub.f32 %v635, %v648
    %v651 = vmul.f32 %v649, %v337
    %v652 = vmul.f32 %v650, %v338
    %v653 = vmul.f32 %v651, %v651
    %v654 = vmul.f32 %v652, %v652
    %v655 = vadd.f32 %v653, %v654
    %v656 = vrot.slane %v655, 4
    %v657 = vadd.f32 %v655, %v656
    %v658 = vrot.slane %v657, 2
    %v659 = vadd.f32 %v657, %v658
    %v660 = vrot.slane %v659, 1
    %v661 = vadd.f32 %v659, %v660
    %v662 = vmul.f32 %v661, 0.125
    %v663 = vadd.f32 %v662, 1e-05
    %v664 = vrsqrt.pop %v663
    %v665 = vmul.f32 %v664, %v663
    %v666 = vmul.f32 %v665, %v664
    %v667 = vmul.f32 0.5, %v666
    %v668 = vsub.f32 1.5, %v667
    %v669 = vmul.f32 %v664, %v668
    %vm670 = vweird.f32 %v663
    %vm671 = vweird.f32 %v664
    %vm672 = vmor %vm670, %vm671
    %v673 = vsel %vm672, %v664, %v669
    %v674 = vmul.f32 %v649, %v673
    %v675 = vmul.f32 %v650, %v673
    %v677 = vperm.slane %v637, 0
    %v679 = vmul.f32 %v674, %v677
    %v680 = vmul.f32 %v675, %v677
    %v682 = vperm.slane %v638, 0
    %v684 = vadd.f32 %v679, %v682
    %v685 = vadd.f32 %v680, %v682
    %v686 = vmul.f32 %v684, 0.5
    %v687 = vmul.f32 %v685, 0.5
    %v688 = vmul.f32 %v684, 0.044715
    %v689 = vmul.f32 %v685, 0.044715
    %v690 = vmul.f32 %v688, %v684
    %v691 = vmul.f32 %v689, %v685
    %v692 = vmul.f32 %v690, %v684
    %v693 = vmul.f32 %v691, %v685
    %v694 = vadd.f32 %v684, %v692
    %v695 = vadd.f32 %v685, %v693
    %v696 = vmul.f32 %v694, 0.7978846
    %v697 = vmul.f32 %v695, 0.7978846
    %v698 = vtanh.pop %v696
    %v699 = vtanh.pop %v697
    %v700 = vadd.f32 %v698, 1.0
    %v701 = vadd.f32 %v699, 1.0
    %v702 = vmul.f32 %v686, %v700
    %v703 = vmul.f32 %v687, %v701
    %v704 = vld [vmem:[#allocation19] sm:$0xf]
    %v705 = vld [vmem:[#allocation19 + $0x4] sm:$0xf]
    %v706 = vld [vmem:[#allocation19 + $0x8] sm:$0xf]
    %v707 = vld [vmem:[#allocation19 + $0xc] sm:$0xf]
    %v708 = vld [vmem:[#allocation19 + $0x10] sm:$0xf]
    %v709 = vld [vmem:[#allocation19 + $0x14] sm:$0xf]
    %v710 = vld [vmem:[#allocation19 + $0x18] sm:$0xf]
    %v711 = vld [vmem:[#allocation19 + $0x1c] sm:$0xf]
    %v712 = vld [vmem:[#allocation19 + $0x20] sm:$0xf]
    %v713 = vld [vmem:[#allocation19 + $0x24] sm:$0xf]
    %v714 = vld [vmem:[#allocation19 + $0x28] sm:$0xf]
    %v715 = vld [vmem:[#allocation19 + $0x2c] sm:$0xf]
    %v716 = vld [vmem:[#allocation19 + $0x30] sm:$0xf]
    %v717 = vld [vmem:[#allocation19 + $0x34] sm:$0xf]
    %v718 = vld [vmem:[#allocation19 + $0x38] sm:$0xf]
    %v719 = vld [vmem:[#allocation19 + $0x3c] sm:$0xf]
    %v720 = vpack.c.bf16 %v703, %v702
    %v721 = vld [vmem:[%s14] sm:$0x1]
    %v723 = vperm.slane %v721, 0
    %v741 = vunpack.c.l.b16 %v704
    %v742 = vunpack.c.l.b16 %v705
    %v743 = vunpack.c.l.b16 %v706
    %v744 = vunpack.c.l.b16 %v707
    %v745 = vunpack.c.l.b16 %v708
    %v746 = vunpack.c.l.b16 %v709
    %v747 = vunpack.c.l.b16 %v710
    %v748 = vunpack.c.l.b16 %v711
    %v749 = vunpack.c.l.b16 %v712
    %v750 = vunpack.c.l.b16 %v713
    %v751 = vunpack.c.l.b16 %v714
    %v752 = vunpack.c.l.b16 %v715
    %v753 = vunpack.c.l.b16 %v716
    %v754 = vunpack.c.l.b16 %v717
    %v755 = vunpack.c.l.b16 %v718
    %v756 = vunpack.c.l.b16 %v719
    %v757 = vpack.c.b16 %v742, %v741
    %v758 = vpack.c.b16 %v744, %v743
    %v759 = vpack.c.b16 %v746, %v745
    %v760 = vpack.c.b16 %v748, %v747
    %v761 = vpack.c.b16 %v750, %v749
    %v762 = vpack.c.b16 %v752, %v751
    %v763 = vpack.c.b16 %v754, %v753
    %v764 = vpack.c.b16 %v756, %v755
    %773 = vmatpush.bf16.msra.mxu0 %v764
    %774 = vmatpush.bf16.msra.mxu0 %v763
    %775 = vmatpush.bf16.msra.mxu0 %v762
    %776 = vmatpush.bf16.msra.mxu0 %v761
    %777 = vmatpush.bf16.msra.mxu0 %v760
    %778 = vmatpush.bf16.msra.mxu0 %v759
    %779 = vmatpush.bf16.msra.mxu0 %v758
    %780 = vmatpush.bf16.msra.mxu0 %v757
    %781 = vmatmul.bf16.gmra.mxu0 %v720
    %v782 = vpop.f32.mrf.mxu0
    %v783 = vadd.f32 %v723, %v782
    %v784 = vpop.f32.mrf.mxu0
    %v785 = vadd.f32 %v723, %v784
    %786 = vdwg.mxu0
    %v787 = vld [vmem:[%s15] sm:$0x1]
    %v788 = vld [vmem:[%s16] sm:$0x1]
    %v789 = vmul.f32 %v783, %v337
    %v790 = vmul.f32 %v785, %v338
    %v791 = vadd.f32 %v789, %v790
    %v792 = vrot.slane %v791, 4
    %v793 = vadd.f32 %v791, %v792
    %v794 = vrot.slane %v793, 2
    %v795 = vadd.f32 %v793, %v794
    %v796 = vrot.slane %v795, 1
    %v797 = vadd.f32 %v795, %v796
    %v798 = vmul.f32 %v797, 0.125
    %v799 = vsub.f32 %v783, %v798
    %v800 = vsub.f32 %v785, %v798
    %v801 = vmul.f32 %v799, %v337
    %v802 = vmul.f32 %v800, %v338
    %v803 = vmul.f32 %v801, %v801
    %v804 = vmul.f32 %v802, %v802
    %v805 = vadd.f32 %v803, %v804
    %v806 = vrot.slane %v805, 4
    %v807 = vadd.f32 %v805, %v806
    %v808 = vrot.slane %v807, 2
    %v809 = vadd.f32 %v807, %v808
    %v810 = vrot.slane %v809, 1
    %v811 = vadd.f32 %v809, %v810
    %v812 = vmul.f32 %v811, 0.125
    %v813 = vadd.f32 %v812, 1e-05
    %v814 = vrsqrt.pop %v813
    %v815 = vmul.f32 %v814, %v813
    %v816 = vmul.f32 %v815, %v814
    %v817 = vmul.f32 0.5, %v816
    %v818 = vsub.f32 1.5, %v817
    %v819 = vmul.f32 %v814, %v818
    %vm820 = vweird.f32 %v813
    %vm821 = vweird.f32 %v814
    %vm822 = vmor %vm820, %vm821
    %v823 = vsel %vm822, %v814, %v819
    %v824 = vmul.f32 %v799, %v823
    %v825 = vmul.f32 %v800, %v823
    %v827 = vperm.slane %v787, 0
    %v829 = vmul.f32 %v824, %v827
    %v830 = vmul.f32 %v825, %v827
    %v832 = vperm.slane %v788, 0
    %v834 = vadd.f32 %v829, %v832
    %v835 = vadd.f32 %v830, %v832
    %v836 = vadd.f32 %v834, %v552
    %v837 = vadd.f32 %v835, %v553
    %v838 = vmul.f32 %v836, 0.5
    %v839 = vmul.f32 %v837, 0.5
    %v840 = vmul.f32 %v836, 0.044715
    %v841 = vmul.f32 %v837, 0.044715
    %v842 = vmul.f32 %v840, %v836
    %v843 = vmul.f32 %v841, %v837
    %v844 = vmul.f32 %v842, %v836
    %v845 = vmul.f32 %v843, %v837
    %v846 = vadd.f32 %v836, %v844
    %v847 = vadd.f32 %v837, %v845
    %v848 = vmul.f32 %v846, 0.7978846
    %v849 = vmul.f32 %v847, 0.7978846
    %v850 = vtanh.pop %v848
    %v851 = vtanh.pop %v849
    %v852 = vadd.f32 %v850, 1.0
    %v853 = vadd.f32 %v851, 1.0
    %v854 = vmul.f32 %v838, %v852
    %v855 = vmul.f32 %v839, %v853
    %s856 = scalar_lea.vmem [#allocation17], 64
    %v857 = vld [vmem:[%s856] sm:$0xf]
    %v858 = vld [vmem:[%s856 + $0x4] sm:$0xf]
    %v859 = vld [vmem:[%s856 + $0x8] sm:$0xf]
    %v860 = vld [vmem:[%s856 + $0xc] sm:$0xf]
    %v861 = vld [vmem:[%s856 + $0x10] sm:$0xf]
    %v862 = vld [vmem:[%s856 + $0x14] sm:$0xf]
    %v863 = vld [vmem:[%s856 + $0x18] sm:$0xf]
    %v864 = vld [vmem:[%s856 + $0x1c] sm:$0xf]
    %v865 = vld [vmem:[%s856 + $0x20] sm:$0xf]
    %v866 = vld [vmem:[%s856 + $0x24] sm:$0xf]
    %v867 = vld [vmem:[%s856 + $0x28] sm:$0xf]
    %v868 = vld [vmem:[%s856 + $0x2c] sm:$0xf]
    %v869 = vld [vmem:[%s856 + $0x30] sm:$0xf]
    %v870 = vld [vmem:[%s856 + $0x34] sm:$0xf]
    %v871 = vld [vmem:[%s856 + $0x38] sm:$0xf]
    %v872 = vld [vmem:[%s856 + $0x3c] sm:$0xf]
    %v873 = vpack.c.bf16 %v855, %v854
    %s874 = scalar_lea.vmem %s10, 1
    %v875 = vld [vmem:[%s874] sm:$0x1]
    %v877 = vperm.slane %v875, 0
    %v895 = vunpack.c.l.b16 %v857
    %v896 = vunpack.c.l.b16 %v858
    %v897 = vunpack.c.l.b16 %v859
    %v898 = vunpack.c.l.b16 %v860
    %v899 = vunpack.c.l.b16 %v861
    %v900 = vunpack.c.l.b16 %v862
    %v901 = vunpack.c.l.b16 %v863
    %v902 = vunpack.c.l.b16 %v864
    %v903 = vunpack.c.l.b16 %v865
    %v904 = vunpack.c.l.b16 %v866
    %v905 = vunpack.c.l.b16 %v867
    %v906 = vunpack.c.l.b16 %v868
    %v907 = vunpack.c.l.b16 %v869
    %v908 = vunpack.c.l.b16 %v870
    %v909 = vunpack.c.l.b16 %v871
    %v910 = vunpack.c.l.b16 %v872
    %v911 = vpack.c.b16 %v896, %v895
    %v912 = vpack.c.b16 %v898, %v897
    %v913 = vpack.c.b16 %v900, %v899
    %v914 = vpack.c.b16 %v902, %v901
    %v915 = vpack.c.b16 %v904, %v903
    %v916 = vpack.c.b16 %v906, %v905
    %v917 = vpack.c.b16 %v908, %v907
    %v918 = vpack.c.b16 %v910, %v909
    %927 = vmatpush.bf16.msra.mxu0 %v918
    %928 = vmatpush.bf16.msra.mxu0 %v917
    %929 = vmatpush.bf16.msra.mxu0 %v916
    %930 = vmatpush.bf16.msra.mxu0 %v915
    %931 = vmatpush.bf16.msra.mxu0 %v914
    %932 = vmatpush.bf16.msra.mxu0 %v913
    %933 = vmatpush.bf16.msra.mxu0 %v912
    %934 = vmatpush.bf16.msra.mxu0 %v911
    %935 = vmatmul.bf16.gmra.mxu0 %v873
    %v936 = vpop.f32.mrf.mxu0
    %v937 = vadd.f32 %v877, %v936
    %v938 = vpop.f32.mrf.mxu0
    %v939 = vadd.f32 %v877, %v938
    %940 = vdwg.mxu0
    %s941 = scalar_lea.vmem %s11, 1
    %v942 = vld [vmem:[%s941] sm:$0x1]
    %s943 = scalar_lea.vmem %s12, 1
    %v944 = vld [vmem:[%s943] sm:$0x1]
    %v945 = vmul.f32 %v937, %v337
    %v946 = vmul.f32 %v939, %v338
    %v947 = vadd.f32 %v945, %v946
    %v948 = vrot.slane %v947, 4
    %v949 = vadd.f32 %v947, %v948
    %v950 = vrot.slane %v949, 2
    %v951 = vadd.f32 %v949, %v950
    %v952 = vrot.slane %v951, 1
    %v953 = vadd.f32 %v951, %v952
    %v954 = vmul.f32 %v953, 0.125
    %v955 = vsub.f32 %v937, %v954
    %v956 = vsub.f32 %v939, %v954
    %v957 = vmul.f32 %v955, %v337
    %v958 = vmul.f32 %v956, %v338
    %v959 = vmul.f32 %v957, %v957
    %v960 = vmul.f32 %v958, %v958
    %v961 = vadd.f32 %v959, %v960
    %v962 = vrot.slane %v961, 4
    %v963 = vadd.f32 %v961, %v962
    %v964 = vrot.slane %v963, 2
    %v965 = vadd.f32 %v963, %v964
    %v966 = vrot.slane %v965, 1
    %v967 = vadd.f32 %v965, %v966
    %v968 = vmul.f32 %v967, 0.125
    %v969 = vadd.f32 %v968, 1e-05
    %v970 = vrsqrt.pop %v969
    %v971 = vmul.f32 %v970, %v969
    %v972 = vmul.f32 %v971, %v970
    %v973 = vmul.f32 0.5, %v972
    %v974 = vsub.f32 1.5, %v973
    %v975 = vmul.f32 %v970, %v974
    %vm976 = vweird.f32 %v969
    %vm977 = vweird.f32 %v970
    %vm978 = vmor %vm976, %vm977
    %v979 = vsel %vm978, %v970, %v975
    %v980 = vmul.f32 %v955, %v979
    %v981 = vmul.f32 %v956, %v979
    %v983 = vperm.slane %v942, 0
    %v985 = vmul.f32 %v980, %v983
    %v986 = vmul.f32 %v981, %v983
    %v988 = vperm.slane %v944, 0
    %v990 = vadd.f32 %v985, %v988
    %v991 = vadd.f32 %v986, %v988
    %v992 = vmul.f32 %v990, 0.5
    %v993 = vmul.f32 %v991, 0.5
    %v994 = vmul.f32 %v990, 0.044715
    %v995 = vmul.f32 %v991, 0.044715
    %v996 = vmul.f32 %v994, %v990
    %v997 = vmul.f32 %v995, %v991
    %v998 = vmul.f32 %v996, %v990
    %v999 = vmul.f32 %v997, %v991
    %v1000 = vadd.f32 %v990, %v998
    %v1001 = vadd.f32 %v991, %v999
    %v1002 = vmul.f32 %v1000, 0.7978846
    %v1003 = vmul.f32 %v1001, 0.7978846
    %v1004 = vtanh.pop %v1002
    %v1005 = vtanh.pop %v1003
    %v1006 = vadd.f32 %v1004, 1.0
    %v1007 = vadd.f32 %v1005, 1.0
    %v1008 = vmul.f32 %v992, %v1006
    %v1009 = vmul.f32 %v993, %v1007
    %s1010 = scalar_lea.vmem [#allocation19], 64
    %v1011 = vld [vmem:[%s1010] sm:$0xf]
    %v1012 = vld [vmem:[%s1010 + $0x4] sm:$0xf]
    %v1013 = vld [vmem:[%s1010 + $0x8] sm:$0xf]
    %v1014 = vld [vmem:[%s1010 + $0xc] sm:$0xf]
    %v1015 = vld [vmem:[%s1010 + $0x10] sm:$0xf]
    %v1016 = vld [vmem:[%s1010 + $0x14] sm:$0xf]
    %v1017 = vld [vmem:[%s1010 + $0x18] sm:$0xf]
    %v1018 = vld [vmem:[%s1010 + $0x1c] sm:$0xf]
    %v1019 = vld [vmem:[%s1010 + $0x20] sm:$0xf]
    %v1020 = vld [vmem:[%s1010 + $0x24] sm:$0xf]
    %v1021 = vld [vmem:[%s1010 + $0x28] sm:$0xf]
    %v1022 = vld [vmem:[%s1010 + $0x2c] sm:$0xf]
    %v1023 = vld [vmem:[%s1010 + $0x30] sm:$0xf]
    %v1024 = vld [vmem:[%s1010 + $0x34] sm:$0xf]
    %v1025 = vld [vmem:[%s1010 + $0x38] sm:$0xf]
    %v1026 = vld [vmem:[%s1010 + $0x3c] sm:$0xf]
    %v1027 = vpack.c.bf16 %v1009, %v1008
    %s1028 = scalar_lea.vmem %s14, 1
    %v1029 = vld [vmem:[%s1028] sm:$0x1]
    %v1031 = vperm.slane %v1029, 0
    %v1049 = vunpack.c.l.b16 %v1011
    %v1050 = vunpack.c.l.b16 %v1012
    %v1051 = vunpack.c.l.b16 %v1013
    %v1052 = vunpack.c.l.b16 %v1014
    %v1053 = vunpack.c.l.b16 %v1015
    %v1054 = vunpack.c.l.b16 %v1016
    %v1055 = vunpack.c.l.b16 %v1017
    %v1056 = vunpack.c.l.b16 %v1018
    %v1057 = vunpack.c.l.b16 %v1019
    %v1058 = vunpack.c.l.b16 %v1020
    %v1059 = vunpack.c.l.b16 %v1021
    %v1060 = vunpack.c.l.b16 %v1022
    %v1061 = vunpack.c.l.b16 %v1023
    %v1062 = vunpack.c.l.b16 %v1024
    %v1063 = vunpack.c.l.b16 %v1025
    %v1064 = vunpack.c.l.b16 %v1026
    %v1065 = vpack.c.b16 %v1050, %v1049
    %v1066 = vpack.c.b16 %v1052, %v1051
    %v1067 = vpack.c.b16 %v1054, %v1053
    %v1068 = vpack.c.b16 %v1056, %v1055
    %v1069 = vpack.c.b16 %v1058, %v1057
    %v1070 = vpack.c.b16 %v1060, %v1059
    %v1071 = vpack.c.b16 %v1062, %v1061
    %v1072 = vpack.c.b16 %v1064, %v1063
    %1081 = vmatpush.bf16.msra.mxu0 %v1072
    %1082 = vmatpush.bf16.msra.mxu0 %v1071
    %1083 = vmatpush.bf16.msra.mxu0 %v1070
    %1084 = vmatpush.bf16.msra.mxu0 %v1069
    %1085 = vmatpush.bf16.msra.mxu0 %v1068
    %1086 = vmatpush.bf16.msra.mxu0 %v1067
    %1087 = vmatpush.bf16.msra.mxu0 %v1066
    %1088 = vmatpush.bf16.msra.mxu0 %v1065
    %1089 = vmatmul.bf16.gmra.mxu0 %v1027
    %v1090 = vpop.f32.mrf.mxu0
    %v1091 = vadd.f32 %v1031, %v1090
    %v1092 = vpop.f32.mrf.mxu0
    %v1093 = vadd.f32 %v1031, %v1092
    %1094 = vdwg.mxu0
    %s1095 = scalar_lea.vmem %s15, 1
    %v1096 = vld [vmem:[%s1095] sm:$0x1]
    %s1097 = scalar_lea.vmem %s16, 1
    %v1098 = vld [vmem:[%s1097] sm:$0x1]
    %v1099 = vmul.f32 %v1091, %v337
    %v1100 = vmul.f32 %v1093, %v338
    %v1101 = vadd.f32 %v1099, %v1100
    %v1102 = vrot.slane %v1101, 4
    %v1103 = vadd.f32 %v1101, %v1102
    %v1104 = vrot.slane %v1103, 2
    %v1105 = vadd.f32 %v1103, %v1104
    %v1106 = vrot.slane %v1105, 1
    %v1107 = vadd.f32 %v1105, %v1106
    %v1108 = vmul.f32 %v1107, 0.125
    %v1109 = vsub.f32 %v1091, %v1108
    %v1110 = vsub.f32 %v1093, %v1108
    %v1111 = vmul.f32 %v1109, %v337
    %v1112 = vmul.f32 %v1110, %v338
    %v1113 = vmul.f32 %v1111, %v1111
    %v1114 = vmul.f32 %v1112, %v1112
    %v1115 = vadd.f32 %v1113, %v1114
    %v1116 = vrot.slane %v1115, 4
    %v1117 = vadd.f32 %v1115, %v1116
    %v1118 = vrot.slane %v1117, 2
    %v1119 = vadd.f32 %v1117, %v1118
    %v1120 = vrot.slane %v1119, 1
    %v1121 = vadd.f32 %v1119, %v1120
    %v1122 = vmul.f32 %v1121, 0.125
    %v1123 = vadd.f32 %v1122, 1e-05
    %v1124 = vrsqrt.pop %v1123
    %v1125 = vmul.f32 %v1124, %v1123
    %v1126 = vmul.f32 %v1125, %v1124
    %v1127 = vmul.f32 0.5, %v1126
    %v1128 = vsub.f32 1.5, %v1127
    %v1129 = vmul.f32 %v1124, %v1128
    %vm1130 = vweird.f32 %v1123
    %vm1131 = vweird.f32 %v1124
    %vm1132 = vmor %vm1130, %vm1131
    %v1133 = vsel %vm1132, %v1124, %v1129
    %v1134 = vmul.f32 %v1109, %v1133
    %v1135 = vmul.f32 %v1110, %v1133
    %v1137 = vperm.slane %v1096, 0
    %v1139 = vmul.f32 %v1134, %v1137
    %v1140 = vmul.f32 %v1135, %v1137
    %v1142 = vperm.slane %v1098, 0
    %v1144 = vadd.f32 %v1139, %v1142
    %v1145 = vadd.f32 %v1140, %v1142
    %v1146 = vadd.f32 %v1144, %v854
    %v1147 = vadd.f32 %v1145, %v855
    %v1148 = vmul.f32 %v1146, 0.5
    %v1149 = vmul.f32 %v1147, 0.5
    %v1150 = vmul.f32 %v1146, 0.044715
    %v1151 = vmul.f32 %v1147, 0.044715
    %v1152 = vmul.f32 %v1150, %v1146
    %v1153 = vmul.f32 %v1151, %v1147
    %v1154 = vmul.f32 %v1152, %v1146
    %v1155 = vmul.f32 %v1153, %v1147
    %v1156 = vadd.f32 %v1146, %v1154
    %v1157 = vadd.f32 %v1147, %v1155
    %v1158 = vmul.f32 %v1156, 0.7978846
    %v1159 = vmul.f32 %v1157, 0.7978846
    %v1160 = vtanh.pop %v1158
    %v1161 = vtanh.pop %v1159
    %v1162 = vadd.f32 %v1160, 1.0
    %v1163 = vadd.f32 %v1161, 1.0
    %v1164 = vmul.f32 %v1148, %v1162
    %v1165 = vmul.f32 %v1149, %v1163
    %v1166 = vld [vmem:[#allocation20] sm:$0xf]
    %v1167 = vld [vmem:[#allocation20 + $0x4] sm:$0xf]
    %v1168 = vld [vmem:[#allocation20 + $0x8] sm:$0xf]
    %v1169 = vld [vmem:[#allocation20 + $0xc] sm:$0xf]
    %v1170 = vld [vmem:[#allocation20 + $0x10] sm:$0xf]
    %v1171 = vld [vmem:[#allocation20 + $0x14] sm:$0xf]
    %v1172 = vld [vmem:[#allocation20 + $0x18] sm:$0xf]
    %v1173 = vld [vmem:[#allocation20 + $0x1c] sm:$0xf]
    %v1174 = vld [vmem:[#allocation20 + $0x20] sm:$0xf]
    %v1175 = vld [vmem:[#allocation20 + $0x24] sm:$0xf]
    %v1176 = vld [vmem:[#allocation20 + $0x28] sm:$0xf]
    %v1177 = vld [vmem:[#allocation20 + $0x2c] sm:$0xf]
    %v1178 = vld [vmem:[#allocation20 + $0x30] sm:$0xf]
    %v1179 = vld [vmem:[#allocation20 + $0x34] sm:$0xf]
    %v1180 = vld [vmem:[#allocation20 + $0x38] sm:$0xf]
    %v1181 = vld [vmem:[#allocation20 + $0x3c] sm:$0xf]
    %v1182 = vpack.c.bf16 %v1165, %v1164
    %v1183 = vld [vmem:[%s18] sm:$0x1]
    %v1185 = vperm.slane %v1183, 0
    %v1203 = vunpack.c.l.b16 %v1166
    %v1204 = vunpack.c.l.b16 %v1167
    %v1205 = vunpack.c.l.b16 %v1168
    %v1206 = vunpack.c.l.b16 %v1169
    %v1207 = vunpack.c.l.b16 %v1170
    %v1208 = vunpack.c.l.b16 %v1171
    %v1209 = vunpack.c.l.b16 %v1172
    %v1210 = vunpack.c.l.b16 %v1173
    %v1211 = vunpack.c.l.b16 %v1174
    %v1212 = vunpack.c.l.b16 %v1175
    %v1213 = vunpack.c.l.b16 %v1176
    %v1214 = vunpack.c.l.b16 %v1177
    %v1215 = vunpack.c.l.b16 %v1178
    %v1216 = vunpack.c.l.b16 %v1179
    %v1217 = vunpack.c.l.b16 %v1180
    %v1218 = vunpack.c.l.b16 %v1181
    %v1219 = vpack.c.b16 %v1204, %v1203
    %v1220 = vpack.c.b16 %v1206, %v1205
    %v1221 = vpack.c.b16 %v1208, %v1207
    %v1222 = vpack.c.b16 %v1210, %v1209
    %v1223 = vpack.c.b16 %v1212, %v1211
    %v1224 = vpack.c.b16 %v1214, %v1213
    %v1225 = vpack.c.b16 %v1216, %v1215
    %v1226 = vpack.c.b16 %v1218, %v1217
    %1235 = vmatpush.bf16.msra.mxu0 %v1226
    %1236 = vmatpush.bf16.msra.mxu0 %v1225
    %1237 = vmatpush.bf16.msra.mxu0 %v1224
    %1238 = vmatpush.bf16.msra.mxu0 %v1223
    %1239 = vmatpush.bf16.msra.mxu0 %v1222
    %1240 = vmatpush.bf16.msra.mxu0 %v1221
    %1241 = vmatpush.bf16.msra.mxu0 %v1220
    %1242 = vmatpush.bf16.msra.mxu0 %v1219
    %1243 = vmatmul.bf16.gmra.mxu0 %v1182
    %v1244 = vpop.f32.mrf.mxu0
    %v1245 = vadd.f32 %v1185, %v1244
    %v1246 = vpop.f32.mrf.mxu0
    %v1247 = vadd.f32 %v1185, %v1246
    %1248 = vdwg.mxu0
    %1249 = vst [vmem:[#allocation22] sm:$0xff] %v1245
    %1250 = vst [vmem:[#allocation22 + $0x8] sm:$0xff] %v1247
    // Predicated region
    $region126: #{tpu_custom_call.1} parent=1 // pred_check
      _
    $region127: #{tpu_custom_call.1} parent=1 // pred_check_branch
      %1252 = sbr.rel (0) target = $region129
    $region128: #{tpu_custom_call.1} parent=1 // pred_region
      %1254 = vsyncadd [#allocation4], 0
      %s1255 = sshll.u32 [#allocation22], 4
      %s1256 = int_to_ptr.vmem [resolvable:$true] %s1255
      %s1257 = sshll.u32 %s19, 4
      %s1258 = int_to_ptr.hbm [resolvable:$true] %s1257
      %1263 = dma.vmem_to_hbm [thread:$0]  %s1256, 256, %s1258, [#allocation4], 128, 128, 8
    $region129: #{tpu_custom_call.1} parent=1 // pred_fallthru
      _
    // Predicated region
    $region130: #{tpu_custom_call.1} parent=1 // pred_check
      _
    $region131: #{tpu_custom_call.1} parent=1 // pred_check_branch
      %1265 = sbr.rel (0) target = $region133
    $region132: #{tpu_custom_call.1} parent=1 // pred_region
      %1267 = dma.done [#allocation4], 256
    $region133: #{tpu_custom_call.1} parent=1 // pred_fallthru
      _
    %1268 = vsyncpa [#allocation3], 1
    %1269 = vsyncpa [#allocation6], 1
    %1270 = vsyncpa [#allocation9], 1
    %1271 = vsyncpa [#allocation12], 1
    %1272 = vsyncpa [#allocation15], 1
    %1273 = vsyncpa [#allocation18], 1
    %1274 = vsyncpa [#allocation21], 1
    %1275 = vsyncpa [#allocation4], 1

// kernel: tpu_custom_call.1
$region0: #{tpu_custom_call.1}
  #allocation0 [shape = 'u32[]', space=smem, size = 0x4, offset = 0x4, fixed_abs, tag = 'smem constant byte address 0x4 - core index']
  #allocation1 [shape = 'u32[72,128]{1,0:T(1,128)}', space=vmem, size = 0x9000, scoped, tag = 'internal scratch']
  %s0 = inlined_call_operand.hbm [shape: bf16[16,128], index: 0, kind: input, shape index: {}]
  %s1 = inlined_call_operand.hbm [shape: bf16[128,128], index: 1, kind: input, shape index: {}]
  %s2 = inlined_call_operand.hbm [shape: f32[1,128], index: 2, kind: input, shape index: {}]
  %s3 = inlined_call_operand.hbm [shape: f32[1,128], index: 3, kind: input, shape index: {}]
  %s4 = inlined_call_operand.hbm [shape: f32[1,128], index: 4, kind: input, shape index: {}]
  %s5 = inlined_call_operand.hbm [shape: bf16[128,128], index: 5, kind: input, shape index: {}]
  %s6 = inlined_call_operand.hbm [shape: f32[1,128], index: 6, kind: input, shape index: {}]
  %s7 = inlined_call_operand.hbm [shape: f32[1,128], index: 7, kind: input, shape index: {}]
  %s8 = inlined_call_operand.hbm [shape: f32[1,128], index: 8, kind: input, shape index: {}]
  %s9 = inlined_call_operand.hbm [shape: bf16[2,128,128], index: 9, kind: input, shape index: {}]
  %s10 = inlined_call_operand.vmem [shape: f32[2,1,128], index: 10, kind: input, shape index: {}]
  %s11 = inlined_call_operand.vmem [shape: f32[2,1,128], index: 11, kind: input, shape index: {}]
  %s12 = inlined_call_operand.vmem [shape: f32[2,1,128], index: 12, kind: input, shape index: {}]
  %s13 = inlined_call_operand.hbm [shape: bf16[2,128,128], index: 13, kind: input, shape index: {}]
  %s14 = inlined_call_operand.vmem [shape: f32[2,1,128], index: 14, kind: input, shape index: {}]
  %s15 = inlined_call_operand.vmem [shape: f32[2,1,128], index: 15, kind: input, shape index: {}]
  %s16 = inlined_call_operand.vmem [shape: f32[2,1,128], index: 16, kind: input, shape index: {}]
  %s17 = inlined_call_operand.hbm [shape: bf16[128,128], index: 17, kind: input, shape index: {}]
  %s18 = inlined_call_operand.vmem [shape: f32[1,128], index: 18, kind: input, shape index: {}]
  %s19 = inlined_call_operand.hbm [shape: f32[16,128], index: 19, kind: output, shape index: {}]
  %s20 = sld [smem:[#allocation0]]
  $region134: #{tpu_custom_call.1} parent=0
    _
  %s22 = ssub.s32 1, %s20
  %s23 = scalar_select 0, %s22, %s20
  $region1: #{tpu_custom_call.1} parent=0
    #allocation2 [shape = 'u8[4096]{0}', space=vmem, size = 0x1000, scoped, tag = 'input window, operand 0, single buffered']
    #allocation3 [shape = 's32[1]{0}', space=sflag, size = 0x4, scoped, tag = 'scoped memory for tpu_custom_call.1']
    #allocation4 [shape = 's32[1]{0}', space=sflag, size = 0x4, scoped, tag = 'scoped memory for tpu_custom_call.1']
    #allocation5 [shape = 'u8[32768]{0}', space=vmem, size = 0x8000, scoped, tag = 'input window, operand 1, single buffered']
    #allocation6 [shape = 's32[1]{0}', space=sflag, size = 0x4, scoped, tag = 'scoped memory for tpu_custom_call.1']
    #allocation7 [shape = 'u8[512]{0}', space=vmem, size = 0x400, scoped, tag = 'input window, operand 2, single buffered']
    #allocation8 [shape = 'u8[512]{0}', space=vmem, size = 0x400, scoped, tag = 'input window, operand 3, single buffered']
    #allocation9 [shape = 's32[1]{0}', space=sflag, size = 0x4, scoped, tag = 'scoped memory for tpu_custom_call.1']
    #allocation10 [shape = 'u8[512]{0}', space=vmem, size = 0x400, scoped, tag = 'input window, operand 4, single buffered']
    #allocation11 [shape = 'u8[32768]{0}', space=vmem, size = 0x8000, scoped, tag = 'input window, operand 5, single buffered']
    #allocation12 [shape = 's32[1]{0}', space=sflag, size = 0x4, scoped, tag = 'scoped memory for tpu_custom_call.1']
    #allocation13 [shape = 'u8[512]{0}', space=vmem, size = 0x400, scoped, tag = 'input window, operand 6, single buffered']
    #allocation14 [shape = 'u8[512]{0}', space=vmem, size = 0x400, scoped, tag = 'input window, operand 7, single buffered']
    #allocation15 [shape = 's32[1]{0}', space=sflag, size = 0x4, scoped, tag = 'scoped memory for tpu_custom_call.1']
    #allocation16 [shape = 'u8[512]{0}', space=vmem, size = 0x400, scoped, tag = 'input window, operand 8, single buffered']
    #allocation17 [shape = 'u8[65536]{0}', space=vmem, size = 0x10000, scoped, tag = 'input window, operand 9, single buffered']
    #allocation18 [shape = 's32[1]{0}', space=sflag, size = 0x4, scoped, tag = 'scoped memory for tpu_custom_call.1']
    #allocation19 [shape = 'u8[65536]{0}', space=vmem, size = 0x10000, scoped, tag = 'input window, operand 13, single buffered']
    #allocation20 [shape = 'u8[32768]{0}', space=vmem, size = 0x8000, scoped, tag = 'input window, operand 17, single buffered']
    #allocation21 [shape = 's32[1]{0}', space=sflag, size = 0x4, scoped, tag = 'scoped memory for tpu_custom_call.1']
    #allocation22 [shape = 'u8[8192]{0}', space=vmem, size = 0x2000, scoped, tag = 'output window, operand 0, single buffered']
    %24 = vsyncpa [#allocation3], 0
    %25 = vsyncpa [#allocation6], 0
    %26 = vsyncpa [#allocation9], 0
    %27 = vsyncpa [#allocation12], 0
    %28 = vsyncpa [#allocation15], 0
    %29 = vsyncpa [#allocation18], 0
    %30 = vsyncpa [#allocation21], 0
    %31 = vsyncpa [#allocation4], 0
    // Predicated region
    $region2: #{tpu_custom_call.1} parent=1 // pred_check
      _
    $region3: #{tpu_custom_call.1} parent=1 // pred_check_branch
      %33 = sbr.rel (0) target = $region5
    $region4: #{tpu_custom_call.1} parent=1 // pred_region
      %35 = vsyncadd [#allocation3], 0
      %s36 = sshll.u32 %s0, 4
      %s37 = int_to_ptr.hbm [resolvable:$true] %s36
      %s38 = sshll.u32 [#allocation2], 4
      %s39 = int_to_ptr.vmem [resolvable:$true] %s38
      %44 = dma.hbm_to_vmem [thread:$0]  %s37, 128, %s39, [#allocation3], 64, 64, 4
    $region5: #{tpu_custom_call.1} parent=1 // pred_fallthru
      _
    // Predicated region
    $region6: #{tpu_custom_call.1} parent=1 // pred_check
      _
    $region7: #{tpu_custom_call.1} parent=1 // pred_check_branch
      %46 = sbr.rel (0) target = $region9
    $region8: #{tpu_custom_call.1} parent=1 // pred_region
      %48 = vsyncadd [#allocation6], 0
      %s49 = sshll.u32 %s1, 4
      %s50 = int_to_ptr.hbm [resolvable:$true] %s49
      %s51 = sshll.u32 [#allocation5], 4
      %s52 = int_to_ptr.vmem [resolvable:$true] %s51
      %57 = dma.hbm_to_vmem [thread:$0]  %s50, 1024, %s52, [#allocation6], 64, 64, 4
    $region9: #{tpu_custom_call.1} parent=1 // pred_fallthru
      _
    // Predicated region
    $region10: #{tpu_custom_call.1} parent=1 // pred_check
      _
    $region11: #{tpu_custom_call.1} parent=1 // pred_check_branch
      %59 = sbr.rel (0) target = $region13
    $region12: #{tpu_custom_call.1} parent=1 // pred_region
      %61 = vsyncadd [#allocation6], 0
      %s63 = sshll.u32 %s2, 4
      %s64 = int_to_ptr.hbm [resolvable:$true] %s63
      %s65 = sshll.u32 [#allocation7], 4
      %s66 = int_to_ptr.vmem [resolvable:$true] %s65
      %68 = dma.hbm_to_vmem [thread:$0]  %s64, 16, %s66, [#allocation6]
    $region13: #{tpu_custom_call.1} parent=1 // pred_fallthru
      _
    // Predicated region
    $region14: #{tpu_custom_call.1} parent=1 // pred_check
      _
    $region15: #{tpu_custom_call.1} parent=1 // pred_check_branch
      %70 = sbr.rel (0) target = $region17
    $region16: #{tpu_custom_call.1} parent=1 // pred_region
      %72 = vsyncadd [#allocation9], 0
      %s74 = sshll.u32 %s3, 4
      %s75 = int_to_ptr.hbm [resolvable:$true] %s74
      %s76 = sshll.u32 [#allocation8], 4
      %s77 = int_to_ptr.vmem [resolvable:$true] %s76
      %79 = dma.hbm_to_vmem [thread:$0]  %s75, 16, %s77, [#allocation9]
    $region17: #{tpu_custom_call.1} parent=1 // pred_fallthru
      _
    // Predicated region
    $region18: #{tpu_custom_call.1} parent=1 // pred_check
      _
    $region19: #{tpu_custom_call.1} parent=1 // pred_check_branch
      %81 = sbr.rel (0) target = $region21
    $region20: #{tpu_custom_call.1} parent=1 // pred_region
      %83 = vsyncadd [#allocation9], 0
      %s85 = sshll.u32 %s4, 4
      %s86 = int_to_ptr.hbm [resolvable:$true] %s85
      %s87 = sshll.u32 [#allocation10], 4
      %s88 = int_to_ptr.vmem [resolvable:$true] %s87
      %90 = dma.hbm_to_vmem [thread:$0]  %s86, 16, %s88, [#allocation9]
    $region21: #{tpu_custom_call.1} parent=1 // pred_fallthru
      _
    // Predicated region
    $region22: #{tpu_custom_call.1} parent=1 // pred_check
      _
    $region23: #{tpu_custom_call.1} parent=1 // pred_check_branch
      %92 = sbr.rel (0) target = $region25
    $region24: #{tpu_custom_call.1} parent=1 // pred_region
      %94 = vsyncadd [#allocation12], 0
      %s95 = sshll.u32 %s5, 4
      %s96 = int_to_ptr.hbm [resolvable:$true] %s95
      %s97 = sshll.u32 [#allocation11], 4
      %s98 = int_to_ptr.vmem [resolvable:$true] %s97
      %103 = dma.hbm_to_vmem [thread:$0]  %s96, 1024, %s98, [#allocation12], 64, 64, 4
    $region25: #{tpu_custom_call.1} parent=1 // pred_fallthru
      _
    // Predicated region
    $region26: #{tpu_custom_call.1} parent=1 // pred_check
      _
    $region27: #{tpu_custom_call.1} parent=1 // pred_check_branch
      %105 = sbr.rel (0) target = $region29
    $region28: #{tpu_custom_call.1} parent=1 // pred_region
      %107 = vsyncadd [#allocation12], 0
      %s109 = sshll.u32 %s6, 4
      %s110 = int_to_ptr.hbm [resolvable:$true] %s109
      %s111 = sshll.u32 [#allocation13], 4
      %s112 = int_to_ptr.vmem [resolvable:$true] %s111
      %114 = dma.hbm_to_vmem [thread:$0]  %s110, 16, %s112, [#allocation12]
    $region29: #{tpu_custom_call.1} parent=1 // pred_fallthru
      _
    // Predicated region
    $region30: #{tpu_custom_call.1} parent=1 // pred_check
      _
    $region31: #{tpu_custom_call.1} parent=1 // pred_check_branch
      %116 = sbr.rel (0) target = $region33
    $region32: #{tpu_custom_call.1} parent=1 // pred_region
      %118 = vsyncadd [#allocation15], 0
      %s120 = sshll.u32 %s7, 4
      %s121 = int_to_ptr.hbm [resolvable:$true] %s120
      %s122 = sshll.u32 [#allocation14], 4
      %s123 = int_to_ptr.vmem [resolvable:$true] %s122
      %125 = dma.hbm_to_vmem [thread:$0]  %s121, 16, %s123, [#allocation15]
    $region33: #{tpu_custom_call.1} parent=1 // pred_fallthru
      _
    // Predicated region
    $region34: #{tpu_custom_call.1} parent=1 // pred_check
      _
    $region35: #{tpu_custom_call.1} parent=1 // pred_check_branch
      %127 = sbr.rel (0) target = $region37
    $region36: #{tpu_custom_call.1} parent=1 // pred_region
      %129 = vsyncadd [#allocation15], 0
      %s131 = sshll.u32 %s8, 4
      %s132 = int_to_ptr.hbm [resolvable:$true] %s131
      %s133 = sshll.u32 [#allocation16], 4
      %s134 = int_to_ptr.vmem [resolvable:$true] %s133
      %136 = dma.hbm_to_vmem [thread:$0]  %s132, 16, %s134, [#allocation15]
    $region37: #{tpu_custom_call.1} parent=1 // pred_fallthru
      _
    // Predicated region
    $region38: #{tpu_custom_call.1} parent=1 // pred_check
      _
    $region39: #{tpu_custom_call.1} parent=1 // pred_check_branch
      %138 = sbr.rel (0) target = $region41
    $region40: #{tpu_custom_call.1} parent=1 // pred_region
      %140 = vsyncadd [#allocation18], 0
      %s141 = sshll.u32 %s9, 4
      %s142 = int_to_ptr.hbm [resolvable:$true] %s141
      %s143 = sshll.u32 [#allocation17], 4
      %s144 = int_to_ptr.vmem [resolvable:$true] %s143
      %149 = dma.hbm_to_vmem [thread:$0]  %s142, 2048, %s144, [#allocation18], 64, 64, 4
    $region41: #{tpu_custom_call.1} parent=1 // pred_fallthru
      _
    // Predicated region
    $region42: #{tpu_custom_call.1} parent=1 // pred_check
      _
    $region43: #{tpu_custom_call.1} parent=1 // pred_check_branch
      %151 = sbr.rel (0) target = $region45
    $region44: #{tpu_custom_call.1} parent=1 // pred_region
      _
    $region45: #{tpu_custom_call.1} parent=1 // pred_fallthru
      _
    // Predicated region
    $region46: #{tpu_custom_call.1} parent=1 // pred_check
      _
    $region47: #{tpu_custom_call.1} parent=1 // pred_check_branch
      %153 = sbr.rel (0) target = $region49
    $region48: #{tpu_custom_call.1} parent=1 // pred_region
      _
    $region49: #{tpu_custom_call.1} parent=1 // pred_fallthru
      _
    // Predicated region
    $region50: #{tpu_custom_call.1} parent=1 // pred_check
      _
    $region51: #{tpu_custom_call.1} parent=1 // pred_check_branch
      %155 = sbr.rel (0) target = $region53
    $region52: #{tpu_custom_call.1} parent=1 // pred_region
      _
    $region53: #{tpu_custom_call.1} parent=1 // pred_fallthru
      _
    // Predicated region
    $region54: #{tpu_custom_call.1} parent=1 // pred_check
      _
    $region55: #{tpu_custom_call.1} parent=1 // pred_check_branch
      %157 = sbr.rel (0) target = $region57
    $region56: #{tpu_custom_call.1} parent=1 // pred_region
      %159 = vsyncadd [#allocation18], 0
      %s160 = sshll.u32 %s13, 4
      %s161 = int_to_ptr.hbm [resolvable:$true] %s160
      %s162 = sshll.u32 [#allocation19], 4
      %s163 = int_to_ptr.vmem [resolvable:$true] %s162
      %168 = dma.hbm_to_vmem [thread:$0]  %s161, 2048, %s163, [#allocation18], 64, 64, 4
    $region57: #{tpu_custom_call.1} parent=1 // pred_fallthru
      _
    // Predicated region
    $region58: #{tpu_custom_call.1} parent=1 // pred_check
      _
    $region59: #{tpu_custom_call.1} parent=1 // pred_check_branch
      %170 = sbr.rel (0) target = $region61
    $region60: #{tpu_custom_call.1} parent=1 // pred_region
      _
    $region61: #{tpu_custom_call.1} parent=1 // pred_fallthru
      _
    // Predicated region
    $region62: #{tpu_custom_call.1} parent=1 // pred_check
      _
    $region63: #{tpu_custom_call.1} parent=1 // pred_check_branch
      %172 = sbr.rel (0) target = $region65
    $region64: #{tpu_custom_call.1} parent=1 // pred_region
      _
    $region65: #{tpu_custom_call.1} parent=1 // pred_fallthru
      _
    // Predicated region
    $region66: #{tpu_custom_call.1} parent=1 // pred_check
      _
    $region67: #{tpu_custom_call.1} parent=1 // pred_check_branch
      %174 = sbr.rel (0) target = $region69
    $region68: #{tpu_custom_call.1} parent=1 // pred_region
      _
    $region69: #{tpu_custom_call.1} parent=1 // pred_fallthru
      _
    // Predicated region
    $region70: #{tpu_custom_call.1} parent=1 // pred_check
      _
    $region71: #{tpu_custom_call.1} parent=1 // pred_check_branch
      %176 = sbr.rel (0) target = $region73
    $region72: #{tpu_custom_call.1} parent=1 // pred_region
      %178 = vsyncadd [#allocation21], 0
      %s179 = sshll.u32 %s17, 4
      %s180 = int_to_ptr.hbm [resolvable:$true] %s179
      %s181 = sshll.u32 [#allocation20], 4
      %s182 = int_to_ptr.vmem [resolvable:$true] %s181
      %187 = dma.hbm_to_vmem [thread:$0]  %s180, 1024, %s182, [#allocation21], 64, 64, 4
    $region73: #{tpu_custom_call.1} parent=1 // pred_fallthru
      _
    // Predicated region
    $region74: #{tpu_custom_call.1} parent=1 // pred_check
      _
    $region75: #{tpu_custom_call.1} parent=1 // pred_check_branch
      %189 = sbr.rel (0) target = $region77
    $region76: #{tpu_custom_call.1} parent=1 // pred_region
      _
    $region77: #{tpu_custom_call.1} parent=1 // pred_fallthru
      _
    // Predicated region
    $region78: #{tpu_custom_call.1} parent=1 // pred_check
      _
    $region79: #{tpu_custom_call.1} parent=1 // pred_check_branch
      %191 = sbr.rel (0) target = $region81
    $region80: #{tpu_custom_call.1} parent=1 // pred_region
      %193 = dma.done [#allocation3], 128
    $region81: #{tpu_custom_call.1} parent=1 // pred_fallthru
      _
    // Predicated region
    $region82: #{tpu_custom_call.1} parent=1 // pred_check
      _
    $region83: #{tpu_custom_call.1} parent=1 // pred_check_branch
      %195 = sbr.rel (0) target = $region85
    $region84: #{tpu_custom_call.1} parent=1 // pred_region
      %197 = dma.done [#allocation6], 1024
    $region85: #{tpu_custom_call.1} parent=1 // pred_fallthru
      _
    // Predicated region
    $region86: #{tpu_custom_call.1} parent=1 // pred_check
      _
    $region87: #{tpu_custom_call.1} parent=1 // pred_check_branch
      %199 = sbr.rel (0) target = $region89
    $region88: #{tpu_custom_call.1} parent=1 // pred_region
      %201 = dma.done [#allocation6], 16
    $region89: #{tpu_custom_call.1} parent=1 // pred_fallthru
      _
    // Predicated region
    $region90: #{tpu_custom_call.1} parent=1 // pred_check
      _
    $region91: #{tpu_custom_call.1} parent=1 // pred_check_branch
      %203 = sbr.rel (0) target = $region93
    $region92: #{tpu_custom_call.1} parent=1 // pred_region
      %205 = dma.done [#allocation9], 16
    $region93: #{tpu_custom_call.1} parent=1 // pred_fallthru
      _
    // Predicated region
    $region94: #{tpu_custom_call.1} parent=1 // pred_check
      _
    $region95: #{tpu_custom_call.1} parent=1 // pred_check_branch
      %207 = sbr.rel (0) target = $region97
    $region96: #{tpu_custom_call.1} parent=1 // pred_region
      %209 = dma.done [#allocation9], 16
    $region97: #{tpu_custom_call.1} parent=1 // pred_fallthru
      _
    // Predicated region
    $region98: #{tpu_custom_call.1} parent=1 // pred_check
      _
    $region99: #{tpu_custom_call.1} parent=1 // pred_check_branch
      %211 = sbr.rel (0) target = $region101
    $region100: #{tpu_custom_call.1} parent=1 // pred_region
      %213 = dma.done [#allocation12], 1024
    $region101: #{tpu_custom_call.1} parent=1 // pred_fallthru
      _
    // Predicated region
    $region102: #{tpu_custom_call.1} parent=1 // pred_check
      _
    $region103: #{tpu_custom_call.1} parent=1 // pred_check_branch
      %215 = sbr.rel (0) target = $region105
    $region104: #{tpu_custom_call.1} parent=1 // pred_region
      %217 = dma.done [#allocation12], 16
    $region105: #{tpu_custom_call.1} parent=1 // pred_fallthru
      _
    // Predicated region
    $region106: #{tpu_custom_call.1} parent=1 // pred_check
      _
    $region107: #{tpu_custom_call.1} parent=1 // pred_check_branch
      %219 = sbr.rel (0) target = $region109
    $region108: #{tpu_custom_call.1} parent=1 // pred_region
      %221 = dma.done [#allocation15], 16
    $region109: #{tpu_custom_call.1} parent=1 // pred_fallthru
      _
    // Predicated region
    $region110: #{tpu_custom_call.1} parent=1 // pred_check
      _
    $region111: #{tpu_custom_call.1} parent=1 // pred_check_branch
      %223 = sbr.rel (0) target = $region113
    $region112: #{tpu_custom_call.1} parent=1 // pred_region
      %225 = dma.done [#allocation15], 16
    $region113: #{tpu_custom_call.1} parent=1 // pred_fallthru
      _
    // Predicated region
    $region114: #{tpu_custom_call.1} parent=1 // pred_check
      _
    $region115: #{tpu_custom_call.1} parent=1 // pred_check_branch
      %227 = sbr.rel (0) target = $region117
    $region116: #{tpu_custom_call.1} parent=1 // pred_region
      %229 = dma.done [#allocation18], 2048
    $region117: #{tpu_custom_call.1} parent=1 // pred_fallthru
      _
    // Predicated region
    $region118: #{tpu_custom_call.1} parent=1 // pred_check
      _
    $region119: #{tpu_custom_call.1} parent=1 // pred_check_branch
      %231 = sbr.rel (0) target = $region121
    $region120: #{tpu_custom_call.1} parent=1 // pred_region
      %233 = dma.done [#allocation18], 2048
    $region121: #{tpu_custom_call.1} parent=1 // pred_fallthru
      _
    // Predicated region
    $region122: #{tpu_custom_call.1} parent=1 // pred_check
      _
    $region123: #{tpu_custom_call.1} parent=1 // pred_check_branch
      %235 = sbr.rel (0) target = $region125
    $region124: #{tpu_custom_call.1} parent=1 // pred_region
      %237 = dma.done [#allocation21], 1024
    $region125: #{tpu_custom_call.1} parent=1 // pred_fallthru
      _
    %v238 = vld [vmem:[#allocation2] sm:$0xf]
    %v239 = vld [vmem:[#allocation2 + $0x4] sm:$0xf]
    %v240 = vld [vmem:[#allocation5] sm:$0xf]
    %v241 = vld [vmem:[#allocation5 + $0x4] sm:$0xf]
    %v242 = vld [vmem:[#allocation5 + $0x8] sm:$0xf]
    %v243 = vld [vmem:[#allocation5 + $0xc] sm:$0xf]
    %v244 = vld [vmem:[#allocation5 + $0x10] sm:$0xf]
    %v245 = vld [vmem:[#allocation5 + $0x14] sm:$0xf]
    %v246 = vld [vmem:[#allocation5 + $0x18] sm:$0xf]
    %v247 = vld [vmem:[#allocation5 + $0x1c] sm:$0xf]
    %v248 = vld [vmem:[#allocation5 + $0x20] sm:$0xf]
    %v249 = vld [vmem:[#allocation5 + $0x24] sm:$0xf]
    %v250 = vld [vmem:[#allocation5 + $0x28] sm:$0xf]
    %v251 = vld [vmem:[#allocation5 + $0x2c] sm:$0xf]
    %v252 = vld [vmem:[#allocation5 + $0x30] sm:$0xf]
    %v253 = vld [vmem:[#allocation5 + $0x34] sm:$0xf]
    %v254 = vld [vmem:[#allocation5 + $0x38] sm:$0xf]
    %v255 = vld [vmem:[#allocation5 + $0x3c] sm:$0xf]
    %v256 = vld [vmem:[#allocation7] sm:$0x1]
    %v258 = vperm.slane %v256, 0
    %v262 = vunpack.c.l.b16 %v238
    %v263 = vunpack.c.l.b16 %v239
    %v264 = vpack.c.b16 %v263, %v262
    %v282 = vunpack.c.l.b16 %v240
    %v283 = vunpack.c.l.b16 %v241
    %v284 = vunpack.c.l.b16 %v242
    %v285 = vunpack.c.l.b16 %v243
    %v286 = vunpack.c.l.b16 %v244
    %v287 = vunpack.c.l.b16 %v245
    %v288 = vunpack.c.l.b16 %v246
    %v289 = vunpack.c.l.b16 %v247
    %v290 = vunpack.c.l.b16 %v248
    %v291 = vunpack.c.l.b16 %v249
    %v292 = vunpack.c.l.b16 %v250
    %v293 = vunpack.c.l.b16 %v251
    %v294 = vunpack.c.l.b16 %v252
    %v295 = vunpack.c.l.b16 %v253
    %v296 = vunpack.c.l.b16 %v254
    %v297 = vunpack.c.l.b16 %v255
    %v298 = vpack.c.b16 %v283, %v282
    %v299 = vpack.c.b16 %v285, %v284
    %v300 = vpack.c.b16 %v287, %v286
    %v301 = vpack.c.b16 %v289, %v288
    %v302 = vpack.c.b16 %v291, %v290
    %v303 = vpack.c.b16 %v293, %v292
    %v304 = vpack.c.b16 %v295, %v294
    %v305 = vpack.c.b16 %v297, %v296
    %314 = vmatpush.bf16.msra.mxu0 %v305
    %315 = vmatpush.bf16.msra.mxu0 %v304
    %316 = vmatpush.bf16.msra.mxu0 %v303
    %317 = vmatpush.bf16.msra.mxu0 %v302
    %318 = vmatpush.bf16.msra.mxu0 %v301
    %319 = vmatpush.bf16.msra.mxu0 %v300
    %320 = vmatpush.bf16.msra.mxu0 %v299
    %321 = vmatpush.bf16.msra.mxu0 %v298
    %322 = vmatmul.bf16.gmra.mxu0 %v264
    %v323 = vpop.f32.mrf.mxu0
    %v324 = vadd.f32 %v258, %v323
    %v325 = vpop.f32.mrf.mxu0
    %v326 = vadd.f32 %v258, %v325
    %327 = vdwg.mxu0
    %v328 = vld [vmem:[#allocation8] sm:$0x1]
    %v329 = vld [vmem:[#allocation10] sm:$0x1]
    %v330 = vlaneseq
    %v331 = vshrl.u32 %v330, 7
    %v332 = vadd.s32 %v331, 8
    %vm333 = vcmp.lt.s32.totalorder %v331, 8
    %vm334 = vcmp.lt.s32.totalorder %v332, 8
    %v335 = vsel %vm333, 1, 0
    %v336 = vsel %vm334, 1, 0
    %v337 = vcvt.s32.f32 %v335
    %v338 = vcvt.s32.f32 %v336
    %v339 = vmul.f32 %v324, %v337
    %v340 = vmul.f32 %v326, %v338
    %v341 = vadd.f32 %v339, %v340
    %v342 = vrot.slane %v341, 4
    %v343 = vadd.f32 %v341, %v342
    %v344 = vrot.slane %v343, 2
    %v345 = vadd.f32 %v343, %v344
    %v346 = vrot.slane %v345, 1
    %v347 = vadd.f32 %v345, %v346
    %v348 = vmul.f32 %v347, 0.125
    %v349 = vsub.f32 %v324, %v348
    %v350 = vsub.f32 %v326, %v348
    %v351 = vmul.f32 %v349, %v337
    %v352 = vmul.f32 %v350, %v338
    %v353 = vmul.f32 %v351, %v351
    %v354 = vmul.f32 %v352, %v352
    %v355 = vadd.f32 %v353, %v354
    %v356 = vrot.slane %v355, 4
    %v357 = vadd.f32 %v355, %v356
    %v358 = vrot.slane %v357, 2
    %v359 = vadd.f32 %v357, %v358
    %v360 = vrot.slane %v359, 1
    %v361 = vadd.f32 %v359, %v360
    %v362 = vmul.f32 %v361, 0.125
    %v363 = vadd.f32 %v362, 1e-05
    %v364 = vrsqrt.pop %v363
    %v365 = vmul.f32 %v364, %v363
    %v366 = vmul.f32 %v365, %v364
    %v367 = vmul.f32 0.5, %v366
    %v368 = vsub.f32 1.5, %v367
    %v369 = vmul.f32 %v364, %v368
    %vm370 = vweird.f32 %v363
    %vm371 = vweird.f32 %v364
    %vm372 = vmor %vm370, %vm371
    %v373 = vsel %vm372, %v364, %v369
    %v374 = vmul.f32 %v349, %v373
    %v375 = vmul.f32 %v350, %v373
    %v377 = vperm.slane %v328, 0
    %v379 = vmul.f32 %v374, %v377
    %v380 = vmul.f32 %v375, %v377
    %v382 = vperm.slane %v329, 0
    %v384 = vadd.f32 %v379, %v382
    %v385 = vadd.f32 %v380, %v382
    %v386 = vmul.f32 %v384, 0.5
    %v387 = vmul.f32 %v385, 0.5
    %v388 = vmul.f32 %v384, 0.044715
    %v389 = vmul.f32 %v385, 0.044715
    %v390 = vmul.f32 %v388, %v384
    %v391 = vmul.f32 %v389, %v385
    %v392 = vmul.f32 %v390, %v384
    %v393 = vmul.f32 %v391, %v385
    %v394 = vadd.f32 %v384, %v392
    %v395 = vadd.f32 %v385, %v393
    %v396 = vmul.f32 %v394, 0.7978846
    %v397 = vmul.f32 %v395, 0.7978846
    %v398 = vtanh.pop %v396
    %v399 = vtanh.pop %v397
    %v400 = vadd.f32 %v398, 1.0
    %v401 = vadd.f32 %v399, 1.0
    %v402 = vmul.f32 %v386, %v400
    %v403 = vmul.f32 %v387, %v401
    %v404 = vld [vmem:[#allocation11] sm:$0xf]
    %v405 = vld [vmem:[#allocation11 + $0x4] sm:$0xf]
    %v406 = vld [vmem:[#allocation11 + $0x8] sm:$0xf]
    %v407 = vld [vmem:[#allocation11 + $0xc] sm:$0xf]
    %v408 = vld [vmem:[#allocation11 + $0x10] sm:$0xf]
    %v409 = vld [vmem:[#allocation11 + $0x14] sm:$0xf]
    %v410 = vld [vmem:[#allocation11 + $0x18] sm:$0xf]
    %v411 = vld [vmem:[#allocation11 + $0x1c] sm:$0xf]
    %v412 = vld [vmem:[#allocation11 + $0x20] sm:$0xf]
    %v413 = vld [vmem:[#allocation11 + $0x24] sm:$0xf]
    %v414 = vld [vmem:[#allocation11 + $0x28] sm:$0xf]
    %v415 = vld [vmem:[#allocation11 + $0x2c] sm:$0xf]
    %v416 = vld [vmem:[#allocation11 + $0x30] sm:$0xf]
    %v417 = vld [vmem:[#allocation11 + $0x34] sm:$0xf]
    %v418 = vld [vmem:[#allocation11 + $0x38] sm:$0xf]
    %v419 = vld [vmem:[#allocation11 + $0x3c] sm:$0xf]
    %v420 = vpack.c.bf16 %v403, %v402
    %v421 = vld [vmem:[#allocation13] sm:$0x1]
    %v423 = vperm.slane %v421, 0
    %v441 = vunpack.c.l.b16 %v404
    %v442 = vunpack.c.l.b16 %v405
    %v443 = vunpack.c.l.b16 %v406
    %v444 = vunpack.c.l.b16 %v407
    %v445 = vunpack.c.l.b16 %v408
    %v446 = vunpack.c.l.b16 %v409
    %v447 = vunpack.c.l.b16 %v410
    %v448 = vunpack.c.l.b16 %v411
    %v449 = vunpack.c.l.b16 %v412
    %v450 = vunpack.c.l.b16 %v413
    %v451 = vunpack.c.l.b16 %v414
    %v452 = vunpack.c.l.b16 %v415
    %v453 = vunpack.c.l.b16 %v416
    %v454 = vunpack.c.l.b16 %v417
    %v455 = vunpack.c.l.b16 %v418
    %v456 = vunpack.c.l.b16 %v419
    %v457 = vpack.c.b16 %v442, %v441
    %v458 = vpack.c.b16 %v444, %v443
    %v459 = vpack.c.b16 %v446, %v445
    %v460 = vpack.c.b16 %v448, %v447
    %v461 = vpack.c.b16 %v450, %v449
    %v462 = vpack.c.b16 %v452, %v451
    %v463 = vpack.c.b16 %v454, %v453
    %v464 = vpack.c.b16 %v456, %v455
    %473 = vmatpush.bf16.msra.mxu0 %v464
    %474 = vmatpush.bf16.msra.mxu0 %v463
    %475 = vmatpush.bf16.msra.mxu0 %v462
    %476 = vmatpush.bf16.msra.mxu0 %v461
    %477 = vmatpush.bf16.msra.mxu0 %v460
    %478 = vmatpush.bf16.msra.mxu0 %v459
    %479 = vmatpush.bf16.msra.mxu0 %v458
    %480 = vmatpush.bf16.msra.mxu0 %v457
    %481 = vmatmul.bf16.gmra.mxu0 %v420
    %v482 = vpop.f32.mrf.mxu0
    %v483 = vadd.f32 %v423, %v482
    %v484 = vpop.f32.mrf.mxu0
    %v485 = vadd.f32 %v423, %v484
    %486 = vdwg.mxu0
    %v487 = vld [vmem:[#allocation14] sm:$0x1]
    %v488 = vld [vmem:[#allocation16] sm:$0x1]
    %v489 = vmul.f32 %v483, %v337
    %v490 = vmul.f32 %v485, %v338
    %v491 = vadd.f32 %v489, %v490
    %v492 = vrot.slane %v491, 4
    %v493 = vadd.f32 %v491, %v492
    %v494 = vrot.slane %v493, 2
    %v495 = vadd.f32 %v493, %v494
    %v496 = vrot.slane %v495, 1
    %v497 = vadd.f32 %v495, %v496
    %v498 = vmul.f32 %v497, 0.125
    %v499 = vsub.f32 %v483, %v498
    %v500 = vsub.f32 %v485, %v498
    %v501 = vmul.f32 %v499, %v337
    %v502 = vmul.f32 %v500, %v338
    %v503 = vmul.f32 %v501, %v501
    %v504 = vmul.f32 %v502, %v502
    %v505 = vadd.f32 %v503, %v504
    %v506 = vrot.slane %v505, 4
    %v507 = vadd.f32 %v505, %v506
    %v508 = vrot.slane %v507, 2
    %v509 = vadd.f32 %v507, %v508
    %v510 = vrot.slane %v509, 1
    %v511 = vadd.f32 %v509, %v510
    %v512 = vmul.f32 %v511, 0.125
    %v513 = vadd.f32 %v512, 1e-05
    %v514 = vrsqrt.pop %v513
    %v515 = vmul.f32 %v514, %v513
    %v516 = vmul.f32 %v515, %v514
    %v517 = vmul.f32 0.5, %v516
    %v518 = vsub.f32 1.5, %v517
    %v519 = vmul.f32 %v514, %v518
    %vm520 = vweird.f32 %v513
    %vm521 = vweird.f32 %v514
    %vm522 = vmor %vm520, %vm521
    %v523 = vsel %vm522, %v514, %v519
    %v524 = vmul.f32 %v499, %v523
    %v525 = vmul.f32 %v500, %v523
    %v527 = vperm.slane %v487, 0
    %v529 = vmul.f32 %v524, %v527
    %v530 = vmul.f32 %v525, %v527
    %v532 = vperm.slane %v488, 0
    %v534 = vadd.f32 %v529, %v532
    %v535 = vadd.f32 %v530, %v532
    %v536 = vmul.f32 %v534, 0.5
    %v537 = vmul.f32 %v535, 0.5
    %v538 = vmul.f32 %v534, 0.044715
    %v539 = vmul.f32 %v535, 0.044715
    %v540 = vmul.f32 %v538, %v534
    %v541 = vmul.f32 %v539, %v535
    %v542 = vmul.f32 %v540, %v534
    %v543 = vmul.f32 %v541, %v535
    %v544 = vadd.f32 %v534, %v542
    %v545 = vadd.f32 %v535, %v543
    %v546 = vmul.f32 %v544, 0.7978846
    %v547 = vmul.f32 %v545, 0.7978846
    %v548 = vtanh.pop %v546
    %v549 = vtanh.pop %v547
    %v550 = vadd.f32 %v548, 1.0
    %v551 = vadd.f32 %v549, 1.0
    %v552 = vmul.f32 %v536, %v550
    %v553 = vmul.f32 %v537, %v551
    %v554 = vld [vmem:[#allocation17] sm:$0xf]
    %v555 = vld [vmem:[#allocation17 + $0x4] sm:$0xf]
    %v556 = vld [vmem:[#allocation17 + $0x8] sm:$0xf]
    %v557 = vld [vmem:[#allocation17 + $0xc] sm:$0xf]
    %v558 = vld [vmem:[#allocation17 + $0x10] sm:$0xf]
    %v559 = vld [vmem:[#allocation17 + $0x14] sm:$0xf]
    %v560 = vld [vmem:[#allocation17 + $0x18] sm:$0xf]
    %v561 = vld [vmem:[#allocation17 + $0x1c] sm:$0xf]
    %v562 = vld [vmem:[#allocation17 + $0x20] sm:$0xf]
    %v563 = vld [vmem:[#allocation17 + $0x24] sm:$0xf]
    %v564 = vld [vmem:[#allocation17 + $0x28] sm:$0xf]
    %v565 = vld [vmem:[#allocation17 + $0x2c] sm:$0xf]
    %v566 = vld [vmem:[#allocation17 + $0x30] sm:$0xf]
    %v567 = vld [vmem:[#allocation17 + $0x34] sm:$0xf]
    %v568 = vld [vmem:[#allocation17 + $0x38] sm:$0xf]
    %v569 = vld [vmem:[#allocation17 + $0x3c] sm:$0xf]
    %v570 = vpack.c.bf16 %v553, %v552
    %v571 = vld [vmem:[%s10] sm:$0x1]
    %v573 = vperm.slane %v571, 0
    %v591 = vunpack.c.l.b16 %v554
    %v592 = vunpack.c.l.b16 %v555
    %v593 = vunpack.c.l.b16 %v556
    %v594 = vunpack.c.l.b16 %v557
    %v595 = vunpack.c.l.b16 %v558
    %v596 = vunpack.c.l.b16 %v559
    %v597 = vunpack.c.l.b16 %v560
    %v598 = vunpack.c.l.b16 %v561
    %v599 = vunpack.c.l.b16 %v562
    %v600 = vunpack.c.l.b16 %v563
    %v601 = vunpack.c.l.b16 %v564
    %v602 = vunpack.c.l.b16 %v565
    %v603 = vunpack.c.l.b16 %v566
    %v604 = vunpack.c.l.b16 %v567
    %v605 = vunpack.c.l.b16 %v568
    %v606 = vunpack.c.l.b16 %v569
    %v607 = vpack.c.b16 %v592, %v591
    %v608 = vpack.c.b16 %v594, %v593
    %v609 = vpack.c.b16 %v596, %v595
    %v610 = vpack.c.b16 %v598, %v597
    %v611 = vpack.c.b16 %v600, %v599
    %v612 = vpack.c.b16 %v602, %v601
    %v613 = vpack.c.b16 %v604, %v603
    %v614 = vpack.c.b16 %v606, %v605
    %623 = vmatpush.bf16.msra.mxu0 %v614
    %624 = vmatpush.bf16.msra.mxu0 %v613
    %625 = vmatpush.bf16.msra.mxu0 %v612
    %626 = vmatpush.bf16.msra.mxu0 %v611
    %627 = vmatpush.bf16.msra.mxu0 %v610
    %628 = vmatpush.bf16.msra.mxu0 %v609
    %629 = vmatpush.bf16.msra.mxu0 %v608
    %630 = vmatpush.bf16.msra.mxu0 %v607
    %631 = vmatmul.bf16.gmra.mxu0 %v570
    %v632 = vpop.f32.mrf.mxu0
    %v633 = vadd.f32 %v573, %v632
    %v634 = vpop.f32.mrf.mxu0
    %v635 = vadd.f32 %v573, %v634
    %636 = vdwg.mxu0
    %v637 = vld [vmem:[%s11] sm:$0x1]
    %v638 = vld [vmem:[%s12] sm:$0x1]
    %v639 = vmul.f32 %v633, %v337
    %v640 = vmul.f32 %v635, %v338
    %v641 = vadd.f32 %v639, %v640
    %v642 = vrot.slane %v641, 4
    %v643 = vadd.f32 %v641, %v642
    %v644 = vrot.slane %v643, 2
    %v645 = vadd.f32 %v643, %v644
    %v646 = vrot.slane %v645, 1
    %v647 = vadd.f32 %v645, %v646
    %v648 = vmul.f32 %v647, 0.125
    %v649 = vsub.f32 %v633, %v648
    %v650 = vsub.f32 %v635, %v648
    %v651 = vmul.f32 %v649, %v337
    %v652 = vmul.f32 %v650, %v338
    %v653 = vmul.f32 %v651, %v651
    %v654 = vmul.f32 %v652, %v652
    %v655 = vadd.f32 %v653, %v654
    %v656 = vrot.slane %v655, 4
    %v657 = vadd.f32 %v655, %v656
    %v658 = vrot.slane %v657, 2
    %v659 = vadd.f32 %v657, %v658
    %v660 = vrot.slane %v659, 1
    %v661 = vadd.f32 %v659, %v660
    %v662 = vmul.f32 %v661, 0.125
    %v663 = vadd.f32 %v662, 1e-05
    %v664 = vrsqrt.pop %v663
    %v665 = vmul.f32 %v664, %v663
    %v666 = vmul.f32 %v665, %v664
    %v667 = vmul.f32 0.5, %v666
    %v668 = vsub.f32 1.5, %v667
    %v669 = vmul.f32 %v664, %v668
    %vm670 = vweird.f32 %v663
    %vm671 = vweird.f32 %v664
    %vm672 = vmor %vm670, %vm671
    %v673 = vsel %vm672, %v664, %v669
    %v674 = vmul.f32 %v649, %v673
    %v675 = vmul.f32 %v650, %v673
    %v677 = vperm.slane %v637, 0
    %v679 = vmul.f32 %v674, %v677
    %v680 = vmul.f32 %v675, %v677
    %v682 = vperm.slane %v638, 0
    %v684 = vadd.f32 %v679, %v682
    %v685 = vadd.f32 %v680, %v682
    %v686 = vmul.f32 %v684, 0.5
    %v687 = vmul.f32 %v685, 0.5
    %v688 = vmul.f32 %v684, 0.044715
    %v689 = vmul.f32 %v685, 0.044715
    %v690 = vmul.f32 %v688, %v684
    %v691 = vmul.f32 %v689, %v685
    %v692 = vmul.f32 %v690, %v684
    %v693 = vmul.f32 %v691, %v685
    %v694 = vadd.f32 %v684, %v692
    %v695 = vadd.f32 %v685, %v693
    %v696 = vmul.f32 %v694, 0.7978846
    %v697 = vmul.f32 %v695, 0.7978846
    %v698 = vtanh.pop %v696
    %v699 = vtanh.pop %v697
    %v700 = vadd.f32 %v698, 1.0
    %v701 = vadd.f32 %v699, 1.0
    %v702 = vmul.f32 %v686, %v700
    %v703 = vmul.f32 %v687, %v701
    %v704 = vld [vmem:[#allocation19] sm:$0xf]
    %v705 = vld [vmem:[#allocation19 + $0x4] sm:$0xf]
    %v706 = vld [vmem:[#allocation19 + $0x8] sm:$0xf]
    %v707 = vld [vmem:[#allocation19 + $0xc] sm:$0xf]
    %v708 = vld [vmem:[#allocation19 + $0x10] sm:$0xf]
    %v709 = vld [vmem:[#allocation19 + $0x14] sm:$0xf]
    %v710 = vld [vmem:[#allocation19 + $0x18] sm:$0xf]
    %v711 = vld [vmem:[#allocation19 + $0x1c] sm:$0xf]
    %v712 = vld [vmem:[#allocation19 + $0x20] sm:$0xf]
    %v713 = vld [vmem:[#allocation19 + $0x24] sm:$0xf]
    %v714 = vld [vmem:[#allocation19 + $0x28] sm:$0xf]
    %v715 = vld [vmem:[#allocation19 + $0x2c] sm:$0xf]
    %v716 = vld [vmem:[#allocation19 + $0x30] sm:$0xf]
    %v717 = vld [vmem:[#allocation19 + $0x34] sm:$0xf]
    %v718 = vld [vmem:[#allocation19 + $0x38] sm:$0xf]
    %v719 = vld [vmem:[#allocation19 + $0x3c] sm:$0xf]
    %v720 = vpack.c.bf16 %v703, %v702
    %v721 = vld [vmem:[%s14] sm:$0x1]
    %v723 = vperm.slane %v721, 0
    %v741 = vunpack.c.l.b16 %v704
    %v742 = vunpack.c.l.b16 %v705
    %v743 = vunpack.c.l.b16 %v706
    %v744 = vunpack.c.l.b16 %v707
    %v745 = vunpack.c.l.b16 %v708
    %v746 = vunpack.c.l.b16 %v709
    %v747 = vunpack.c.l.b16 %v710
    %v748 = vunpack.c.l.b16 %v711
    %v749 = vunpack.c.l.b16 %v712
    %v750 = vunpack.c.l.b16 %v713
    %v751 = vunpack.c.l.b16 %v714
    %v752 = vunpack.c.l.b16 %v715
    %v753 = vunpack.c.l.b16 %v716
    %v754 = vunpack.c.l.b16 %v717
    %v755 = vunpack.c.l.b16 %v718
    %v756 = vunpack.c.l.b16 %v719
    %v757 = vpack.c.b16 %v742, %v741
    %v758 = vpack.c.b16 %v744, %v743
    %v759 = vpack.c.b16 %v746, %v745
    %v760 = vpack.c.b16 %v748, %v747
    %v761 = vpack.c.b16 %v750, %v749
    %v762 = vpack.c.b16 %v752, %v751
    %v763 = vpack.c.b16 %v754, %v753
    %v764 = vpack.c.b16 %v756, %v755
    %773 = vmatpush.bf16.msra.mxu0 %v764
    %774 = vmatpush.bf16.msra.mxu0 %v763
    %775 = vmatpush.bf16.msra.mxu0 %v762
    %776 = vmatpush.bf16.msra.mxu0 %v761
    %777 = vmatpush.bf16.msra.mxu0 %v760
    %778 = vmatpush.bf16.msra.mxu0 %v759
    %779 = vmatpush.bf16.msra.mxu0 %v758
    %780 = vmatpush.bf16.msra.mxu0 %v757
    %781 = vmatmul.bf16.gmra.mxu0 %v720
    %v782 = vpop.f32.mrf.mxu0
    %v783 = vadd.f32 %v723, %v782
    %v784 = vpop.f32.mrf.mxu0
    %v785 = vadd.f32 %v723, %v784
    %786 = vdwg.mxu0
    %v787 = vld [vmem:[%s15] sm:$0x1]
    %v788 = vld [vmem:[%s16] sm:$0x1]
    %v789 = vmul.f32 %v783, %v337
    %v790 = vmul.f32 %v785, %v338
    %v791 = vadd.f32 %v789, %v790
    %v792 = vrot.slane %v791, 4
    %v793 = vadd.f32 %v791, %v792
    %v794 = vrot.slane %v793, 2
    %v795 = vadd.f32 %v793, %v794
    %v796 = vrot.slane %v795, 1
    %v797 = vadd.f32 %v795, %v796
    %v798 = vmul.f32 %v797, 0.125
    %v799 = vsub.f32 %v783, %v798
    %v800 = vsub.f32 %v785, %v798
    %v801 = vmul.f32 %v799, %v337
    %v802 = vmul.f32 %v800, %v338
    %v803 = vmul.f32 %v801, %v801
    %v804 = vmul.f32 %v802, %v802
    %v805 = vadd.f32 %v803, %v804
    %v806 = vrot.slane %v805, 4
    %v807 = vadd.f32 %v805, %v806
    %v808 = vrot.slane %v807, 2
    %v809 = vadd.f32 %v807, %v808
    %v810 = vrot.slane %v809, 1
    %v811 = vadd.f32 %v809, %v810
    %v812 = vmul.f32 %v811, 0.125
    %v813 = vadd.f32 %v812, 1e-05
    %v814 = vrsqrt.pop %v813
    %v815 = vmul.f32 %v814, %v813
    %v816 = vmul.f32 %v815, %v814
    %v817 = vmul.f32 0.5, %v816
    %v818 = vsub.f32 1.5, %v817
    %v819 = vmul.f32 %v814, %v818
    %vm820 = vweird.f32 %v813
    %vm821 = vweird.f32 %v814
    %vm822 = vmor %vm820, %vm821
    %v823 = vsel %vm822, %v814, %v819
    %v824 = vmul.f32 %v799, %v823
    %v825 = vmul.f32 %v800, %v823
    %v827 = vperm.slane %v787, 0
    %v829 = vmul.f32 %v824, %v827
    %v830 = vmul.f32 %v825, %v827
    %v832 = vperm.slane %v788, 0
    %v834 = vadd.f32 %v829, %v832
    %v835 = vadd.f32 %v830, %v832
    %v836 = vadd.f32 %v834, %v552
    %v837 = vadd.f32 %v835, %v553
    %v838 = vmul.f32 %v836, 0.5
    %v839 = vmul.f32 %v837, 0.5
    %v840 = vmul.f32 %v836, 0.044715
    %v841 = vmul.f32 %v837, 0.044715
    %v842 = vmul.f32 %v840, %v836
    %v843 = vmul.f32 %v841, %v837
    %v844 = vmul.f32 %v842, %v836
    %v845 = vmul.f32 %v843, %v837
    %v846 = vadd.f32 %v836, %v844
    %v847 = vadd.f32 %v837, %v845
    %v848 = vmul.f32 %v846, 0.7978846
    %v849 = vmul.f32 %v847, 0.7978846
    %v850 = vtanh.pop %v848
    %v851 = vtanh.pop %v849
    %v852 = vadd.f32 %v850, 1.0
    %v853 = vadd.f32 %v851, 1.0
    %v854 = vmul.f32 %v838, %v852
    %v855 = vmul.f32 %v839, %v853
    %s856 = scalar_lea.vmem [#allocation17], 64
    %v857 = vld [vmem:[%s856] sm:$0xf]
    %v858 = vld [vmem:[%s856 + $0x4] sm:$0xf]
    %v859 = vld [vmem:[%s856 + $0x8] sm:$0xf]
    %v860 = vld [vmem:[%s856 + $0xc] sm:$0xf]
    %v861 = vld [vmem:[%s856 + $0x10] sm:$0xf]
    %v862 = vld [vmem:[%s856 + $0x14] sm:$0xf]
    %v863 = vld [vmem:[%s856 + $0x18] sm:$0xf]
    %v864 = vld [vmem:[%s856 + $0x1c] sm:$0xf]
    %v865 = vld [vmem:[%s856 + $0x20] sm:$0xf]
    %v866 = vld [vmem:[%s856 + $0x24] sm:$0xf]
    %v867 = vld [vmem:[%s856 + $0x28] sm:$0xf]
    %v868 = vld [vmem:[%s856 + $0x2c] sm:$0xf]
    %v869 = vld [vmem:[%s856 + $0x30] sm:$0xf]
    %v870 = vld [vmem:[%s856 + $0x34] sm:$0xf]
    %v871 = vld [vmem:[%s856 + $0x38] sm:$0xf]
    %v872 = vld [vmem:[%s856 + $0x3c] sm:$0xf]
    %v873 = vpack.c.bf16 %v855, %v854
    %s874 = scalar_lea.vmem %s10, 1
    %v875 = vld [vmem:[%s874] sm:$0x1]
    %v877 = vperm.slane %v875, 0
    %v895 = vunpack.c.l.b16 %v857
    %v896 = vunpack.c.l.b16 %v858
    %v897 = vunpack.c.l.b16 %v859
    %v898 = vunpack.c.l.b16 %v860
    %v899 = vunpack.c.l.b16 %v861
    %v900 = vunpack.c.l.b16 %v862
    %v901 = vunpack.c.l.b16 %v863
    %v902 = vunpack.c.l.b16 %v864
    %v903 = vunpack.c.l.b16 %v865
    %v904 = vunpack.c.l.b16 %v866
    %v905 = vunpack.c.l.b16 %v867
    %v906 = vunpack.c.l.b16 %v868
    %v907 = vunpack.c.l.b16 %v869
    %v908 = vunpack.c.l.b16 %v870
    %v909 = vunpack.c.l.b16 %v871
    %v910 = vunpack.c.l.b16 %v872
    %v911 = vpack.c.b16 %v896, %v895
    %v912 = vpack.c.b16 %v898, %v897
    %v913 = vpack.c.b16 %v900, %v899
    %v914 = vpack.c.b16 %v902, %v901
    %v915 = vpack.c.b16 %v904, %v903
    %v916 = vpack.c.b16 %v906, %v905
    %v917 = vpack.c.b16 %v908, %v907
    %v918 = vpack.c.b16 %v910, %v909
    %927 = vmatpush.bf16.msra.mxu0 %v918
    %928 = vmatpush.bf16.msra.mxu0 %v917
    %929 = vmatpush.bf16.msra.mxu0 %v916
    %930 = vmatpush.bf16.msra.mxu0 %v915
    %931 = vmatpush.bf16.msra.mxu0 %v914
    %932 = vmatpush.bf16.msra.mxu0 %v913
    %933 = vmatpush.bf16.msra.mxu0 %v912
    %934 = vmatpush.bf16.msra.mxu0 %v911
    %935 = vmatmul.bf16.gmra.mxu0 %v873
    %v936 = vpop.f32.mrf.mxu0
    %v937 = vadd.f32 %v877, %v936
    %v938 = vpop.f32.mrf.mxu0
    %v939 = vadd.f32 %v877, %v938
    %940 = vdwg.mxu0
    %s941 = scalar_lea.vmem %s11, 1
    %v942 = vld [vmem:[%s941] sm:$0x1]
    %s943 = scalar_lea.vmem %s12, 1
    %v944 = vld [vmem:[%s943] sm:$0x1]
    %v945 = vmul.f32 %v937, %v337
    %v946 = vmul.f32 %v939, %v338
    %v947 = vadd.f32 %v945, %v946
    %v948 = vrot.slane %v947, 4
    %v949 = vadd.f32 %v947, %v948
    %v950 = vrot.slane %v949, 2
    %v951 = vadd.f32 %v949, %v950
    %v952 = vrot.slane %v951, 1
    %v953 = vadd.f32 %v951, %v952
    %v954 = vmul.f32 %v953, 0.125
    %v955 = vsub.f32 %v937, %v954
    %v956 = vsub.f32 %v939, %v954
    %v957 = vmul.f32 %v955, %v337
    %v958 = vmul.f32 %v956, %v338
    %v959 = vmul.f32 %v957, %v957
    %v960 = vmul.f32 %v958, %v958
    %v961 = vadd.f32 %v959, %v960
    %v962 = vrot.slane %v961, 4
    %v963 = vadd.f32 %v961, %v962
    %v964 = vrot.slane %v963, 2
    %v965 = vadd.f32 %v963, %v964
    %v966 = vrot.slane %v965, 1
    %v967 = vadd.f32 %v965, %v966
    %v968 = vmul.f32 %v967, 0.125
    %v969 = vadd.f32 %v968, 1e-05
    %v970 = vrsqrt.pop %v969
    %v971 = vmul.f32 %v970, %v969
    %v972 = vmul.f32 %v971, %v970
    %v973 = vmul.f32 0.5, %v972
    %v974 = vsub.f32 1.5, %v973
    %v975 = vmul.f32 %v970, %v974
    %vm976 = vweird.f32 %v969
    %vm977 = vweird.f32 %v970
    %vm978 = vmor %vm976, %vm977
    %v979 = vsel %vm978, %v970, %v975
    %v980 = vmul.f32 %v955, %v979
    %v981 = vmul.f32 %v956, %v979
    %v983 = vperm.slane %v942, 0
    %v985 = vmul.f32 %v980, %v983
    %v986 = vmul.f32 %v981, %v983
    %v988 = vperm.slane %v944, 0
    %v990 = vadd.f32 %v985, %v988
    %v991 = vadd.f32 %v986, %v988
    %v992 = vmul.f32 %v990, 0.5
    %v993 = vmul.f32 %v991, 0.5
    %v994 = vmul.f32 %v990, 0.044715
    %v995 = vmul.f32 %v991, 0.044715
    %v996 = vmul.f32 %v994, %v990
    %v997 = vmul.f32 %v995, %v991
    %v998 = vmul.f32 %v996, %v990
    %v999 = vmul.f32 %v997, %v991
    %v1000 = vadd.f32 %v990, %v998
    %v1001 = vadd.f32 %v991, %v999
    %v1002 = vmul.f32 %v1000, 0.7978846
    %v1003 = vmul.f32 %v1001, 0.7978846
    %v1004 = vtanh.pop %v1002
    %v1005 = vtanh.pop %v1003
    %v1006 = vadd.f32 %v1004, 1.0
    %v1007 = vadd.f32 %v1005, 1.0
    %v1008 = vmul.f32 %v992, %v1006
    %v1009 = vmul.f32 %v993, %v1007
    %s1010 = scalar_lea.vmem [#allocation19], 64
    %v1011 = vld [vmem:[%s1010] sm:$0xf]
    %v1012 = vld [vmem:[%s1010 + $0x4] sm:$0xf]
    %v1013 = vld [vmem:[%s1010 + $0x8] sm:$0xf]
    %v1014 = vld [vmem:[%s1010 + $0xc] sm:$0xf]
    %v1015 = vld [vmem:[%s1010 + $0x10] sm:$0xf]
    %v1016 = vld [vmem:[%s1010 + $0x14] sm:$0xf]
    %v1017 = vld [vmem:[%s1010 + $0x18] sm:$0xf]
    %v1018 = vld [vmem:[%s1010 + $0x1c] sm:$0xf]
    %v1019 = vld [vmem:[%s1010 + $0x20] sm:$0xf]
    %v1020 = vld [vmem:[%s1010 + $0x24] sm:$0xf]
    %v1021 = vld [vmem:[%s1010 + $0x28] sm:$0xf]
    %v1022 = vld [vmem:[%s1010 + $0x2c] sm:$0xf]
    %v1023 = vld [vmem:[%s1010 + $0x30] sm:$0xf]
    %v1024 = vld [vmem:[%s1010 + $0x34] sm:$0xf]
    %v1025 = vld [vmem:[%s1010 + $0x38] sm:$0xf]
    %v1026 = vld [vmem:[%s1010 + $0x3c] sm:$0xf]
    %v1027 = vpack.c.bf16 %v1009, %v1008
    %s1028 = scalar_lea.vmem %s14, 1
    %v1029 = vld [vmem:[%s1028] sm:$0x1]
    %v1031 = vperm.slane %v1029, 0
    %v1049 = vunpack.c.l.b16 %v1011
    %v1050 = vunpack.c.l.b16 %v1012
    %v1051 = vunpack.c.l.b16 %v1013
    %v1052 = vunpack.c.l.b16 %v1014
    %v1053 = vunpack.c.l.b16 %v1015
    %v1054 = vunpack.c.l.b16 %v1016
    %v1055 = vunpack.c.l.b16 %v1017
    %v1056 = vunpack.c.l.b16 %v1018
    %v1057 = vunpack.c.l.b16 %v1019
    %v1058 = vunpack.c.l.b16 %v1020
    %v1059 = vunpack.c.l.b16 %v1021
    %v1060 = vunpack.c.l.b16 %v1022
    %v1061 = vunpack.c.l.b16 %v1023
    %v1062 = vunpack.c.l.b16 %v1024
    %v1063 = vunpack.c.l.b16 %v1025
    %v1064 = vunpack.c.l.b16 %v1026
    %v1065 = vpack.c.b16 %v1050, %v1049
    %v1066 = vpack.c.b16 %v1052, %v1051
    %v1067 = vpack.c.b16 %v1054, %v1053
    %v1068 = vpack.c.b16 %v1056, %v1055
    %v1069 = vpack.c.b16 %v1058, %v1057
    %v1070 = vpack.c.b16 %v1060, %v1059
    %v1071 = vpack.c.b16 %v1062, %v1061
    %v1072 = vpack.c.b16 %v1064, %v1063
    %1081 = vmatpush.bf16.msra.mxu0 %v1072
    %1082 = vmatpush.bf16.msra.mxu0 %v1071
    %1083 = vmatpush.bf16.msra.mxu0 %v1070
    %1084 = vmatpush.bf16.msra.mxu0 %v1069
    %1085 = vmatpush.bf16.msra.mxu0 %v1068
    %1086 = vmatpush.bf16.msra.mxu0 %v1067
    %1087 = vmatpush.bf16.msra.mxu0 %v1066
    %1088 = vmatpush.bf16.msra.mxu0 %v1065
    %1089 = vmatmul.bf16.gmra.mxu0 %v1027
    %v1090 = vpop.f32.mrf.mxu0
    %v1091 = vadd.f32 %v1031, %v1090
    %v1092 = vpop.f32.mrf.mxu0
    %v1093 = vadd.f32 %v1031, %v1092
    %1094 = vdwg.mxu0
    %s1095 = scalar_lea.vmem %s15, 1
    %v1096 = vld [vmem:[%s1095] sm:$0x1]
    %s1097 = scalar_lea.vmem %s16, 1
    %v1098 = vld [vmem:[%s1097] sm:$0x1]
    %v1099 = vmul.f32 %v1091, %v337
    %v1100 = vmul.f32 %v1093, %v338
    %v1101 = vadd.f32 %v1099, %v1100
    %v1102 = vrot.slane %v1101, 4
    %v1103 = vadd.f32 %v1101, %v1102
    %v1104 = vrot.slane %v1103, 2
    %v1105 = vadd.f32 %v1103, %v1104
    %v1106 = vrot.slane %v1105, 1
    %v1107 = vadd.f32 %v1105, %v1106
    %v1108 = vmul.f32 %v1107, 0.125
    %v1109 = vsub.f32 %v1091, %v1108
    %v1110 = vsub.f32 %v1093, %v1108
    %v1111 = vmul.f32 %v1109, %v337
    %v1112 = vmul.f32 %v1110, %v338
    %v1113 = vmul.f32 %v1111, %v1111
    %v1114 = vmul.f32 %v1112, %v1112
    %v1115 = vadd.f32 %v1113, %v1114
    %v1116 = vrot.slane %v1115, 4
    %v1117 = vadd.f32 %v1115, %v1116
    %v1118 = vrot.slane %v1117, 2
    %v1119 = vadd.f32 %v1117, %v1118
    %v1120 = vrot.slane %v1119, 1
    %v1121 = vadd.f32 %v1119, %v1120
    %v1122 = vmul.f32 %v1121, 0.125
    %v1123 = vadd.f32 %v1122, 1e-05
    %v1124 = vrsqrt.pop %v1123
    %v1125 = vmul.f32 %v1124, %v1123
    %v1126 = vmul.f32 %v1125, %v1124
    %v1127 = vmul.f32 0.5, %v1126
    %v1128 = vsub.f32 1.5, %v1127
    %v1129 = vmul.f32 %v1124, %v1128
    %vm1130 = vweird.f32 %v1123
    %vm1131 = vweird.f32 %v1124
    %vm1132 = vmor %vm1130, %vm1131
    %v1133 = vsel %vm1132, %v1124, %v1129
    %v1134 = vmul.f32 %v1109, %v1133
    %v1135 = vmul.f32 %v1110, %v1133
    %v1137 = vperm.slane %v1096, 0
    %v1139 = vmul.f32 %v1134, %v1137
    %v1140 = vmul.f32 %v1135, %v1137
    %v1142 = vperm.slane %v1098, 0
    %v1144 = vadd.f32 %v1139, %v1142
    %v1145 = vadd.f32 %v1140, %v1142
    %v1146 = vadd.f32 %v1144, %v854
    %v1147 = vadd.f32 %v1145, %v855
    %v1148 = vmul.f32 %v1146, 0.5
    %v1149 = vmul.f32 %v1147, 0.5
    %v1150 = vmul.f32 %v1146, 0.044715
    %v1151 = vmul.f32 %v1147, 0.044715
    %v1152 = vmul.f32 %v1150, %v1146
    %v1153 = vmul.f32 %v1151, %v1147
    %v1154 = vmul.f32 %v1152, %v1146
    %v1155 = vmul.f32 %v1153, %v1147
    %v1156 = vadd.f32 %v1146, %v1154
    %v1157 = vadd.f32 %v1147, %v1155
    %v1158 = vmul.f32 %v1156, 0.7978846
    %v1159 = vmul.f32 %v1157, 0.7978846
    %v1160 = vtanh.pop %v1158
    %v1161 = vtanh.pop %v1159
    %v1162 = vadd.f32 %v1160, 1.0
    %v1163 = vadd.f32 %v1161, 1.0
    %v1164 = vmul.f32 %v1148, %v1162
    %v1165 = vmul.f32 %v1149, %v1163
    %v1166 = vld [vmem:[#allocation20] sm:$0xf]
    %v1167 = vld [vmem:[#allocation20 + $0x4] sm:$0xf]
    %v1168 = vld [vmem:[#allocation20 + $0x8] sm:$0xf]
    %v1169 = vld [vmem:[#allocation20 + $0xc] sm:$0xf]
    %v1170 = vld [vmem:[#allocation20 + $0x10] sm:$0xf]
    %v1171 = vld [vmem:[#allocation20 + $0x14] sm:$0xf]
    %v1172 = vld [vmem:[#allocation20 + $0x18] sm:$0xf]
    %v1173 = vld [vmem:[#allocation20 + $0x1c] sm:$0xf]
    %v1174 = vld [vmem:[#allocation20 + $0x20] sm:$0xf]
    %v1175 = vld [vmem:[#allocation20 + $0x24] sm:$0xf]
    %v1176 = vld [vmem:[#allocation20 + $0x28] sm:$0xf]
    %v1177 = vld [vmem:[#allocation20 + $0x2c] sm:$0xf]
    %v1178 = vld [vmem:[#allocation20 + $0x30] sm:$0xf]
    %v1179 = vld [vmem:[#allocation20 + $0x34] sm:$0xf]
    %v1180 = vld [vmem:[#allocation20 + $0x38] sm:$0xf]
    %v1181 = vld [vmem:[#allocation20 + $0x3c] sm:$0xf]
    %v1182 = vpack.c.bf16 %v1165, %v1164
    %v1183 = vld [vmem:[%s18] sm:$0x1]
    %v1185 = vperm.slane %v1183, 0
    %v1203 = vunpack.c.l.b16 %v1166
    %v1204 = vunpack.c.l.b16 %v1167
    %v1205 = vunpack.c.l.b16 %v1168
    %v1206 = vunpack.c.l.b16 %v1169
    %v1207 = vunpack.c.l.b16 %v1170
    %v1208 = vunpack.c.l.b16 %v1171
    %v1209 = vunpack.c.l.b16 %v1172
    %v1210 = vunpack.c.l.b16 %v1173
    %v1211 = vunpack.c.l.b16 %v1174
    %v1212 = vunpack.c.l.b16 %v1175
    %v1213 = vunpack.c.l.b16 %v1176
    %v1214 = vunpack.c.l.b16 %v1177
    %v1215 = vunpack.c.l.b16 %v1178
    %v1216 = vunpack.c.l.b16 %v1179
    %v1217 = vunpack.c.l.b16 %v1180
    %v1218 = vunpack.c.l.b16 %v1181
    %v1219 = vpack.c.b16 %v1204, %v1203
    %v1220 = vpack.c.b16 %v1206, %v1205
    %v1221 = vpack.c.b16 %v1208, %v1207
    %v1222 = vpack.c.b16 %v1210, %v1209
    %v1223 = vpack.c.b16 %v1212, %v1211
    %v1224 = vpack.c.b16 %v1214, %v1213
    %v1225 = vpack.c.b16 %v1216, %v1215
    %v1226 = vpack.c.b16 %v1218, %v1217
    %1235 = vmatpush.bf16.msra.mxu0 %v1226
    %1236 = vmatpush.bf16.msra.mxu0 %v1225
    %1237 = vmatpush.bf16.msra.mxu0 %v1224
    %1238 = vmatpush.bf16.msra.mxu0 %v1223
    %1239 = vmatpush.bf16.msra.mxu0 %v1222
    %1240 = vmatpush.bf16.msra.mxu0 %v1221
    %1241 = vmatpush.bf16.msra.mxu0 %v1220
    %1242 = vmatpush.bf16.msra.mxu0 %v1219
    %1243 = vmatmul.bf16.gmra.mxu0 %v1182
    %v1244 = vpop.f32.mrf.mxu0
    %v1245 = vadd.f32 %v1185, %v1244
    %v1246 = vpop.f32.mrf.mxu0
    %v1247 = vadd.f32 %v1185, %v1246
    %1248 = vdwg.mxu0
    %1249 = vst [vmem:[#allocation22] sm:$0xff] %v1245
    %1250 = vst [vmem:[#allocation22 + $0x8] sm:$0xff] %v1247
    // Predicated region
    $region126: #{tpu_custom_call.1} parent=1 // pred_check
      _
    $region127: #{tpu_custom_call.1} parent=1 // pred_check_branch
      %1252 = sbr.rel (0) target = $region129
    $region128: #{tpu_custom_call.1} parent=1 // pred_region
      %1254 = vsyncadd [#allocation4], 0
      %s1255 = sshll.u32 [#allocation22], 4
      %s1256 = int_to_ptr.vmem [resolvable:$true] %s1255
      %s1257 = sshll.u32 %s19, 4
      %s1258 = int_to_ptr.hbm [resolvable:$true] %s1257
      %1263 = dma.vmem_to_hbm [thread:$0]  %s1256, 256, %s1258, [#allocation4], 128, 128, 8
    $region129: #{tpu_custom_call.1} parent=1 // pred_fallthru
      _
    // Predicated region
    $region130: #{tpu_custom_call.1} parent=1 // pred_check
      _
    $region131: #{tpu_custom_call.1} parent=1 // pred_check_branch
      %1265 = sbr.rel (0) target = $region133
    $region132: #{tpu_custom_call.1} parent=1 // pred_region
      %1267 = dma.done [#allocation4], 256
    $region133: #{tpu_custom_call.1} parent=1 // pred_fallthru
      _
    %1268 = vsyncpa [#allocation3], 1
    %1269 = vsyncpa [#allocation6], 1
    %1270 = vsyncpa [#allocation9], 1
    %1271 = vsyncpa [#allocation12], 1
    %1272 = vsyncpa [#allocation15], 1
    %1273 = vsyncpa [#allocation18], 1
    %1274 = vsyncpa [#allocation21], 1
    %1275 = vsyncpa [#allocation4], 1

</llo_original>
